<compile_context>
chip_gen: v6e
topology: v6e:2x2x1
jax: 0.10.0
libtpu: 0.0.40
codegen_flags: <defaults>
</compile_context>

<pallas_src>
import functools
import math

import jax
import jax.numpy as jnp
from jax import lax
from jax.experimental import pallas as pl
from jax.experimental.pallas import tpu as pltpu

_EPS = 1e-5  # nn.BatchNorm1d default eps


# ----------------------------------------------------------------------------
# In-kernel helpers
# ----------------------------------------------------------------------------
def _lstm_cell(gates, c, H):
    """Gate column order (i, f, o, g).  gates: [B, 4H], c: [B, H]  (all f32)."""
    s = jax.nn.sigmoid(gates[:, :3 * H])      # one EUP slab: i | f | o
    g = jnp.tanh(gates[:, 3 * H:4 * H])
    i = s[:, 0 * H:1 * H]
    f = s[:, 1 * H:2 * H]
    o = s[:, 2 * H:3 * H]
    c_new = f * c + i * g
    h_new = o * jnp.tanh(c_new)
    return h_new, c_new


# ----------------------------------------------------------------------------
# Kernel 1: fused bidirectional LSTM layer 0  ->  [T*B, 2H] hidden sequence
# ----------------------------------------------------------------------------
def _lstm_layer0_kernel(x_ref, wih_ref, whh_ref, b_ref, out_ref, gx_ref,
                        *, T, B, H):
    """x_ref:  [T*B, D]   bf16, time-major.
    wih_ref: [D, 8H]      bf16  (fwd gate cols 0:4H | rev gate cols 4H:8H).
    whh_ref: [2H, 8H]     f32 block-diagonal (fwd block | rev block).
    b_ref:   [1, 8H]      f32 (b_ih + b_hh, both directions).
    out_ref: [T*B, 2H]    f32 (fwd hidden lanes 0:H, rev hidden lanes H:2H).
    gx_ref:  [T*B, 8H]    f32 VMEM scratch (hoisted input projection)."""
    h4 = 4 * H

    # Hoisted input projection for BOTH directions: one big MXU matmul,
    # bias folded in once, one bulk store.
    gx_ref[...] = (jnp.dot(x_ref[...], wih_ref[...],
                           preferred_element_type=jnp.float32) + b_ref[...])

    whh = whh_ref[...]
    zeros = jnp.zeros((B, 2 * H), jnp.float32)

    def step(s, carry):
        h_fb, c_fb = carry                               # [B, 2H] each
        off_f = pl.multiple_of(s * B, B)                 # forward time  s
        off_b = pl.multiple_of((T - 1 - s) * B, B)       # reverse time  T-1-s
        # One block-diagonal recurrent matmul for both directions.
        rec = jnp.dot(h_fb, whh, preferred_element_type=jnp.float32)   # [B, 8H]
        row_f = gx_ref[pl.ds(off_f, B), :]
        row_b = gx_ref[pl.ds(off_b, B), :]
        g_f = row_f[:, :h4] + rec[:, :h4]
        g_b = row_b[:, h4:] + rec[:, h4:]
        h_f, c_f = _lstm_cell(g_f, c_fb[:, :H], H)
        h_b, c_b = _lstm_cell(g_b, c_fb[:, H:], H)
        out_ref[pl.ds(off_f, B), 0:H] = h_f.astype(out_ref.dtype)
        out_ref[pl.ds(off_b, B), H:2 * H] = h_b.astype(out_ref.dtype)
        return (jnp.concatenate([h_f, h_b], axis=1),
                jnp.concatenate([c_f, c_b], axis=1))

    lax.fori_loop(0, T, step, (zeros, zeros), unroll=min(T, 8))


# ----------------------------------------------------------------------------
# Kernel 2: fused bidirectional LSTM layer 1 + AvgPool + Linear/BN/ReLU head
# ----------------------------------------------------------------------------
def _lstm_layer1_pool_head_kernel(x_ref, wih_ref, whh_ref, b_ref,
                                  w2_ref, s2_ref, t2_ref,
                                  w1_ref, s1_ref, t1_ref,
                                  wc_ref, bc_ref, out_ref, gx_ref,
                                  *, T, B, H):
    """x_ref: [T*B, 2H] layer-0 hidden sequence (f32, cast to bf16 for the MXU).
    Head params are pre-folded (eval-mode BN + Linear bias -> scale/shift).
    out_ref: [B, num_classes] logits.  gx_ref: [T*B, 8H] f32 scratch."""
    h4 = 4 * H

    # Hoisted input projection for both directions, one bulk store.
    x_bf = x_ref[...].astype(jnp.bfloat16)
    gx_ref[...] = (jnp.dot(x_bf, wih_ref[...],
                           preferred_element_type=jnp.float32) + b_ref[...])

    whh = whh_ref[...]
    zeros = jnp.zeros((B, 2 * H), jnp.float32)

    def step(s, carry):
        h_fb, c_fb, acc = carry
        off_f = pl.multiple_of(s * B, B)
        off_b = pl.multiple_of((T - 1 - s) * B, B)
        rec = jnp.dot(h_fb, whh, preferred_element_type=jnp.float32)   # [B, 8H]
        row_f = gx_ref[pl.ds(off_f, B), :]
        row_b = gx_ref[pl.ds(off_b, B), :]
        g_f = row_f[:, :h4] + rec[:, :h4]
        g_b = row_b[:, h4:] + rec[:, h4:]
        h_f, c_f = _lstm_cell(g_f, c_fb[:, :H], H)
        h_b, c_b = _lstm_cell(g_b, c_fb[:, H:], H)
        h_fb = jnp.concatenate([h_f, h_b], axis=1)
        c_fb = jnp.concatenate([c_f, c_b], axis=1)
        # Fused AdaptiveAvgPool1d(1): running sum over time.
        return h_fb, c_fb, acc + h_fb

    _, _, pooled = lax.fori_loop(0, T, step, (zeros, zeros, zeros),
                                 unroll=min(T, 8))

    # Pool mean -> Linear -> BN(eval)+bias fused scale/shift -> ReLU  (x2),
    # then classifier.  Head widths are small; left lane-sparse (negligible).
    z2 = jnp.dot(pooled * (1.0 / T), w2_ref[...],
                 preferred_element_type=jnp.float32)
    z2 = jnp.maximum(z2 * s2_ref[...] + t2_ref[...], 0.0)
    z1 = jnp.dot(z2, w1_ref[...], preferred_element_type=jnp.float32)
    z1 = jnp.maximum(z1 * s1_ref[...] + t1_ref[...], 0.0)
    out_ref[...] = (jnp.dot(z1, wc_ref[...], preferred_element_type=jnp.float32)
                    + bc_ref[...])


# ----------------------------------------------------------------------------
# VMEM budget helper
# ----------------------------------------------------------------------------
def _vmem_limit_bytes(tensors, extra_bytes=0):
    need = int(extra_bytes)
    for t in tensors:
        need += math.prod(t.shape) * t.dtype.itemsize
    try:
        cap = int(pltpu.get_tpu_info().vmem_capacity_bytes)
    except Exception:
        cap = 64 << 20                        # conservative (v7x physical)
    cap = (cap * 4) // 5                      # headroom for Mosaic internals
    return int(min(max(2 * need, 4 << 20), cap))


# ----------------------------------------------------------------------------
# pallas_call wrappers
# ----------------------------------------------------------------------------
_VMEM_SPEC = pl.BlockSpec(memory_space=pltpu.MemorySpace.VMEM)


def _lstm_layer0(x_flat, packed, *, T, B, H):
    args = (x_flat, packed["wih0"], packed["whh0"], packed["bias0"])
    out_shape = jax.ShapeDtypeStruct((T * B, 2 * H), jnp.float32)
    scratch_bytes = 4 * T * B * 8 * H
    vmem = _vmem_limit_bytes(list(args) + [out_shape], scratch_bytes)
    return pl.pallas_call(
        functools.partial(_lstm_layer0_kernel, T=T, B=B, H=H),
        out_shape=out_shape,
        in_specs=[_VMEM_SPEC] * len(args),
        out_specs=_VMEM_SPEC,
        scratch_shapes=[pltpu.VMEM((T * B, 8 * H), jnp.float32)],
        compiler_params=pltpu.CompilerParams(vmem_limit_bytes=vmem),
    )(*args)


def _lstm_layer1_head(h01, packed, *, T, B, H):
    C = packed["wc"].shape[1]
    args = (h01, packed["wih1"], packed["whh1"], packed["bias1"],
            packed["w2"], packed["s2"], packed["t2"],
            packed["w1"], packed["s1"], packed["t1"],
            packed["wc"], packed["bc"])
    out_shape = jax.ShapeDtypeStruct((B, C), jnp.float32)
    scratch_bytes = 4 * T * B * 8 * H
    vmem = _vmem_limit_bytes(list(args) + [out_shape], scratch_bytes)
    return pl.pallas_call(
        functools.partial(_lstm_layer1_pool_head_kernel, T=T, B=B, H=H),
        out_shape=out_shape,
        in_specs=[_VMEM_SPEC] * len(args),
        out_specs=_VMEM_SPEC,
        scratch_shapes=[pltpu.VMEM((T * B, 8 * H), jnp.float32)],
        compiler_params=pltpu.CompilerParams(vmem_limit_bytes=vmem),
    )(*args)


# ----------------------------------------------------------------------------
# One-time weight packing (done once, outside the per-call jit path)
# ----------------------------------------------------------------------------
def prepare_params(params):
    H = params["w_hh_l0"].shape[1]
    idx = jnp.arange(H)
    # PyTorch gate row order (i, f, g, o) -> (i, f, o, g).
    perm = jnp.concatenate([idx, idx + H, idx + 3 * H, idx + 2 * H])

    packed = {"embedding": params["embedding"]}
    for layer in (0, 1):
        wih_f = params[f"w_ih_l{layer}"][perm].T          # [D_in, 4H]
        wih_b = params[f"w_ih_l{layer}_rev"][perm].T
        packed[f"wih{layer}"] = jnp.concatenate(
            [wih_f, wih_b], axis=1).astype(jnp.bfloat16)  # [D_in, 8H]

        whh_f = params[f"w_hh_l{layer}"][perm].T          # [H, 4H]
        whh_b = params[f"w_hh_l{layer}_rev"][perm].T
        bd = jnp.zeros((2 * H, 8 * H), jnp.float32)
        bd = bd.at[:H, :4 * H].set(whh_f).at[H:, 4 * H:].set(whh_b)
        packed[f"whh{layer}"] = bd                        # block-diagonal

        packed[f"bias{layer}"] = jnp.concatenate(
            [params[f"b_l{layer}"][perm],
             params[f"b_l{layer}_rev"][perm]]).reshape(1, -1)

    # Fold eval-mode BatchNorm (+ preceding Linear bias) into scale/shift.
    s2 = params["bn2_gamma"] * lax.rsqrt(params["bn2_var"] + _EPS)
    t2 = (params["b2"] - params["bn2_mean"]) * s2 + params["bn2_beta"]
    s1 = params["bn1_gamma"] * lax.rsqrt(params["bn1_var"] + _EPS)
    t1 = (params["b1"] - params["bn1_mean"]) * s1 + params["bn1_beta"]

    packed["w2"] = params["w2"].T                         # [2H, P2]
    packed["s2"] = s2.reshape(1, -1)
    packed["t2"] = t2.reshape(1, -1)
    packed["w1"] = params["w1"].T                         # [P2, P1]
    packed["s1"] = s1.reshape(1, -1)
    packed["t1"] = t1.reshape(1, -1)
    packed["wc"] = params["wc"].T                         # [P1, C]
    packed["bc"] = params["bc"].reshape(1, -1)
    return packed


# ----------------------------------------------------------------------------
# Forward
# ----------------------------------------------------------------------------
def basic_rnn_forward(token_ids, packed):
    B, T = token_ids.shape
    H = packed["whh0"].shape[0] // 2
    B_pad = max(8, ((B + 7) // 8) * 8)        # sublane-friendly recurrence (M>=8)

    # TODO(synk): embedding row gather has no clean Pallas equivalent; plain JAX.
    emb = packed["embedding"][token_ids].astype(jnp.float32)   # [B, T, E]
    x = jnp.transpose(emb, (1, 0, 2))                          # time-major [T, B, E]
    if B_pad != B:
        x = jnp.pad(x, ((0, 0), (0, B_pad - B), (0, 0)))
    x_flat = x.reshape(T * B_pad, -1).astype(jnp.bfloat16)     # [T*B_pad, E]
    # Dropout is identity in eval mode.

    h0 = _lstm_layer0(x_flat, packed, T=T, B=B_pad, H=H)       # [T*B_pad, 2H]
    logits = _lstm_layer1_head(h0, packed, T=T, B=B_pad, H=H)  # [B_pad, C]
    return logits[:B]


# ----------------------------------------------------------------------------
# Deterministic parameter initialization (shapes follow Basic_RNN.__init__)
# ----------------------------------------------------------------------------
def init_params(key, *, vocab_size, emb_dim, hidden, d_pre2, d_pre1,
                num_classes, pad_idx=0):
    keys = iter(jax.random.split(key, 64))
    p = {}

    def u(shape, scale):
        return jax.random.uniform(next(keys), shape, jnp.float32, -scale, scale)

    emb = jax.random.normal(next(keys), (vocab_size, emb_dim), jnp.float32)
    p["embedding"] = emb.at[pad_idx].set(0.0)

    k = 1.0 / jnp.sqrt(hidden)
    for layer, d_in in ((0, emb_dim), (1, 2 * hidden)):
        for suf in ("", "_rev"):
            p[f"w_ih_l{layer}{suf}"] = u((4 * hidden, d_in), k)
            p[f"w_hh_l{layer}{suf}"] = u((4 * hidden, hidden), k)
            p[f"b_l{layer}{suf}"] = u((4 * hidden,), k) + u((4 * hidden,), k)

    p["w2"] = u((d_pre2, 2 * hidden), 1.0 / jnp.sqrt(2 * hidden))
    p["b2"] = u((d_pre2,), 1.0 / jnp.sqrt(2 * hidden))
    p["bn2_gamma"] = jnp.ones((d_pre2,), jnp.float32)
    p["bn2_beta"] = jnp.zeros((d_pre2,), jnp.float32)
    p["bn2_mean"] = jnp.zeros((d_pre2,), jnp.float32)
    p["bn2_var"] = jnp.ones((d_pre2,), jnp.float32)

    p["w1"] = u((d_pre1, d_pre2), 1.0 / jnp.sqrt(d_pre2))
    p["b1"] = u((d_pre1,), 1.0 / jnp.sqrt(d_pre2))
    p["bn1_gamma"] = jnp.ones((d_pre1,), jnp.float32)
    p["bn1_beta"] = jnp.zeros((d_pre1,), jnp.float32)
    p["bn1_mean"] = jnp.zeros((d_pre1,), jnp.float32)
    p["bn1_var"] = jnp.ones((d_pre1,), jnp.float32)

    p["wc"] = u((num_classes, d_pre1), 1.0 / jnp.sqrt(d_pre1))
    p["bc"] = u((num_classes,), 1.0 / jnp.sqrt(d_pre1))
    return p


# ----------------------------------------------------------------------------
if __name__ == "__main__":
    # Small shapes consistent with the module (scaled-down hyperparameters).
    B, T = 2, 8
    VOCAB, EMB, HIDDEN = 50, 64, 32
    D_PRE2, D_PRE1, NUM_CLASSES = 32, 16, 3

    key = jax.random.PRNGKey(0)
    k_par, k_tok = jax.random.split(key)
    params = init_params(k_par, vocab_size=VOCAB, emb_dim=EMB, hidden=HIDDEN,
                         d_pre2=D_PRE2, d_pre1=D_PRE1, num_classes=NUM_CLASSES)
    packed = prepare_params(params)            # one-time weight packing
    token_ids = jax.random.randint(k_tok, (B, T), 1, VOCAB, dtype=jnp.int32)

    fwd = jax.jit(basic_rnn_forward)
    logits = fwd(token_ids, packed)
    jax.block_until_ready(logits)
    assert logits.shape == (B, NUM_CLASSES), logits.shape
    print("KERNEL_OK")
</pallas_src>

<mosaic_0001>
module attributes {stable_mosaic.version = 11 : i64} {
  func.func @_lstm_layer0_kernel(%arg0: memref<64x64xbf16, #tpu.memory_space<vmem>>, %arg1: memref<64x256xbf16, #tpu.memory_space<vmem>>, %arg2: memref<64x256xf32, #tpu.memory_space<vmem>>, %arg3: memref<1x256xf32, #tpu.memory_space<vmem>>, %arg4: memref<64x64xf32, #tpu.memory_space<vmem>>, %arg5: memref<64x256xf32, #tpu.memory_space<vmem>>) attributes {dimension_semantics = [], scalar_prefetch = 0 : i64, scratch_operands = 1 : i64, tpu.core_type = #tpu.core_type<tc>} {
    %c0 = arith.constant 0 : index
    %c0_0 = arith.constant 0 : index
    %0 = vector.load %arg0[%c0, %c0_0] : memref<64x64xbf16, #tpu.memory_space<vmem>>, vector<64x64xbf16>
    %c0_1 = arith.constant 0 : index
    %c0_2 = arith.constant 0 : index
    %1 = vector.load %arg1[%c0_1, %c0_2] : memref<64x256xbf16, #tpu.memory_space<vmem>>, vector<64x256xbf16>
    %cst = arith.constant dense<0.000000e+00> : vector<64x256xf32>
    %2 = tpu.matmul %0, %1, %cst {dimension_numbers = #tpu.dot_dimension_numbers<[1], [0], [0], [1], [0, 0, 1, 1], [], []>} : vector<64x64xbf16>, vector<64x256xbf16>, vector<64x256xf32> -> vector<64x256xf32>
    %c0_3 = arith.constant 0 : index
    %c0_4 = arith.constant 0 : index
    %3 = vector.load %arg3[%c0_3, %c0_4] : memref<1x256xf32, #tpu.memory_space<vmem>>, vector<1x256xf32>
    %4 = vector.broadcast %3 : vector<1x256xf32> to vector<64x256xf32>
    %5 = arith.addf %2, %4 : vector<64x256xf32>
    %c0_5 = arith.constant 0 : index
    %c0_6 = arith.constant 0 : index
    %6 = vector.load %arg5[%c0_5, %c0_6] : memref<64x256xf32, #tpu.memory_space<vmem>>, vector<64x256xf32>
    tpu.vector_store %arg5[%c0_5, %c0_6], %5 {strides = array<i32>} : memref<64x256xf32, #tpu.memory_space<vmem>>, vector<64x256xf32>,
    %c0_7 = arith.constant 0 : index
    %c0_8 = arith.constant 0 : index
    %7 = vector.load %arg2[%c0_7, %c0_8] : memref<64x256xf32, #tpu.memory_space<vmem>>, vector<64x256xf32>
    %cst_9 = arith.constant 0.000000e+00 : f32
    %8 = vector.broadcast %cst_9 : f32 to vector<8x64xf32>
    %c0_i32 = arith.constant 0 : i32
    %c8_i32 = arith.constant 8 : i32
    %9 = arith.muli %c0_i32, %c8_i32 : i32
    %10 = tpu.assume_multiple %9, 8 : i32
    %c7_i32 = arith.constant 7 : i32
    %11 = arith.subi %c7_i32, %c0_i32 : i32
    %c8_i32_10 = arith.constant 8 : i32
    %12 = arith.muli %11, %c8_i32_10 : i32
    %13 = tpu.assume_multiple %12, 8 : i32
    %cst_11 = arith.constant dense<0.000000e+00> : vector<8x256xf32>
    %14 = tpu.matmul %8, %7, %cst_11 {dimension_numbers = #tpu.dot_dimension_numbers<[1], [0], [0], [1], [0, 0, 1, 1], [], []>} : vector<8x64xf32>, vector<64x256xf32>, vector<8x256xf32> -> vector<8x256xf32>
    %15 = arith.index_cast %10 : i32 to index
    %c0_12 = arith.constant 0 : index
    %16 = vector.load %arg5[%15, %c0_12] : memref<64x256xf32, #tpu.memory_space<vmem>>, vector<8x256xf32>
    %17 = arith.index_cast %13 : i32 to index
    %c0_13 = arith.constant 0 : index
    %18 = vector.load %arg5[%17, %c0_13] : memref<64x256xf32, #tpu.memory_space<vmem>>, vector<8x256xf32>
    %19 = vector.extract_strided_slice %16 {offsets = [0, 0], sizes = [8, 128], strides = [1, 1]} : vector<8x256xf32> to vector<8x128xf32>
    %20 = vector.extract_strided_slice %14 {offsets = [0, 0], sizes = [8, 128], strides = [1, 1]} : vector<8x256xf32> to vector<8x128xf32>
    %21 = arith.addf %19, %20 : vector<8x128xf32>
    %22 = vector.extract_strided_slice %18 {offsets = [0, 128], sizes = [8, 128], strides = [1, 1]} : vector<8x256xf32> to vector<8x128xf32>
    %23 = vector.extract_strided_slice %14 {offsets = [0, 128], sizes = [8, 128], strides = [1, 1]} : vector<8x256xf32> to vector<8x128xf32>
    %24 = arith.addf %22, %23 : vector<8x128xf32>
    %25 = vector.extract_strided_slice %8 {offsets = [0, 0], sizes = [8, 32], strides = [1, 1]} : vector<8x64xf32> to vector<8x32xf32>
    %26 = vector.extract_strided_slice %21 {offsets = [0, 0], sizes = [8, 96], strides = [1, 1]} : vector<8x128xf32> to vector<8x96xf32>
    %27 = arith.negf %26 : vector<8x96xf32>
    %28 = math.exp %27 : vector<8x96xf32>
    %cst_14 = arith.constant 1.000000e+00 : f32
    %29 = vector.broadcast %cst_14 : f32 to vector<8x96xf32>
    %30 = arith.addf %29, %28 : vector<8x96xf32>
    %31 = arith.divf %29, %30 : vector<8x96xf32>
    %32 = vector.extract_strided_slice %21 {offsets = [0, 96], sizes = [8, 32], strides = [1, 1]} : vector<8x128xf32> to vector<8x32xf32>
    %33 = math.tanh %32 : vector<8x32xf32>
    %34 = vector.extract_strided_slice %31 {offsets = [0, 0], sizes = [8, 32], strides = [1, 1]} : vector<8x96xf32> to vector<8x32xf32>
    %35 = vector.extract_strided_slice %31 {offsets = [0, 32], sizes = [8, 32], strides = [1, 1]} : vector<8x96xf32> to vector<8x32xf32>
    %36 = vector.extract_strided_slice %31 {offsets = [0, 64], sizes = [8, 32], strides = [1, 1]} : vector<8x96xf32> to vector<8x32xf32>
    %37 = arith.mulf %35, %25 : vector<8x32xf32>
    %38 = arith.mulf %34, %33 : vector<8x32xf32>
    %39 = arith.addf %37, %38 : vector<8x32xf32>
    %40 = math.tanh %39 : vector<8x32xf32>
    %41 = arith.mulf %36, %40 : vector<8x32xf32>
    %42 = vector.extract_strided_slice %8 {offsets = [0, 32], sizes = [8, 32], strides = [1, 1]} : vector<8x64xf32> to vector<8x32xf32>
    %43 = vector.extract_strided_slice %24 {offsets = [0, 0], sizes = [8, 96], strides = [1, 1]} : vector<8x128xf32> to vector<8x96xf32>
    %44 = arith.negf %43 : vector<8x96xf32>
    %45 = math.exp %44 : vector<8x96xf32>
    %cst_15 = arith.constant 1.000000e+00 : f32
    %46 = vector.broadcast %cst_15 : f32 to vector<8x96xf32>
    %47 = arith.addf %46, %45 : vector<8x96xf32>
    %48 = arith.divf %46, %47 : vector<8x96xf32>
    %49 = vector.extract_strided_slice %24 {offsets = [0, 96], sizes = [8, 32], strides = [1, 1]} : vector<8x128xf32> to vector<8x32xf32>
    %50 = math.tanh %49 : vector<8x32xf32>
    %51 = vector.extract_strided_slice %48 {offsets = [0, 0], sizes = [8, 32], strides = [1, 1]} : vector<8x96xf32> to vector<8x32xf32>
    %52 = vector.extract_strided_slice %48 {offsets = [0, 32], sizes = [8, 32], strides = [1, 1]} : vector<8x96xf32> to vector<8x32xf32>
    %53 = vector.extract_strided_slice %48 {offsets = [0, 64], sizes = [8, 32], strides = [1, 1]} : vector<8x96xf32> to vector<8x32xf32>
    %54 = arith.mulf %52, %42 : vector<8x32xf32>
    %55 = arith.mulf %51, %50 : vector<8x32xf32>
    %56 = arith.addf %54, %55 : vector<8x32xf32>
    %57 = math.tanh %56 : vector<8x32xf32>
    %58 = arith.mulf %53, %57 : vector<8x32xf32>
    %59 = arith.index_cast %10 : i32 to index
    %c0_16 = arith.constant 0 : index
    %60 = vector.load %arg4[%59, %c0_16] : memref<64x64xf32, #tpu.memory_space<vmem>>, vector<8x32xf32>
    tpu.vector_store %arg4[%59, %c0_16], %41 {strides = array<i32>} : memref<64x64xf32, #tpu.memory_space<vmem>>, vector<8x32xf32>,
    %61 = arith.index_cast %13 : i32 to index
    %c32 = arith.constant 32 : index
    %62 = vector.load %arg4[%61, %c32] : memref<64x64xf32, #tpu.memory_space<vmem>>, vector<8x32xf32>
    tpu.vector_store %arg4[%61, %c32], %58 {strides = array<i32>} : memref<64x64xf32, #tpu.memory_space<vmem>>, vector<8x32xf32>,
    %63 = tpu.concatenate %41, %58 in 1 : vector<8x32xf32>, vector<8x32xf32> -> vector<8x64xf32>
    %64 = tpu.concatenate %39, %56 in 1 : vector<8x32xf32>, vector<8x32xf32> -> vector<8x64xf32>
    %c1_i32 = arith.constant 1 : i32
    %c8_i32_17 = arith.constant 8 : i32
    %65 = arith.muli %c1_i32, %c8_i32_17 : i32
    %66 = tpu.assume_multiple %65, 8 : i32
    %c7_i32_18 = arith.constant 7 : i32
    %67 = arith.subi %c7_i32_18, %c1_i32 : i32
    %c8_i32_19 = arith.constant 8 : i32
    %68 = arith.muli %67, %c8_i32_19 : i32
    %69 = tpu.assume_multiple %68, 8 : i32
    %cst_20 = arith.constant dense<0.000000e+00> : vector<8x256xf32>
    %70 = tpu.matmul %63, %7, %cst_20 {dimension_numbers = #tpu.dot_dimension_numbers<[1], [0], [0], [1], [0, 0, 1, 1], [], []>} : vector<8x64xf32>, vector<64x256xf32>, vector<8x256xf32> -> vector<8x256xf32>
    %71 = arith.index_cast %66 : i32 to index
    %c0_21 = arith.constant 0 : index
    %72 = vector.load %arg5[%71, %c0_21] : memref<64x256xf32, #tpu.memory_space<vmem>>, vector<8x256xf32>
    %73 = arith.index_cast %69 : i32 to index
    %c0_22 = arith.constant 0 : index
    %74 = vector.load %arg5[%73, %c0_22] : memref<64x256xf32, #tpu.memory_space<vmem>>, vector<8x256xf32>
    %75 = vector.extract_strided_slice %72 {offsets = [0, 0], sizes = [8, 128], strides = [1, 1]} : vector<8x256xf32> to vector<8x128xf32>
    %76 = vector.extract_strided_slice %70 {offsets = [0, 0], sizes = [8, 128], strides = [1, 1]} : vector<8x256xf32> to vector<8x128xf32>
    %77 = arith.addf %75, %76 : vector<8x128xf32>
    %78 = vector.extract_strided_slice %74 {offsets = [0, 128], sizes = [8, 128], strides = [1, 1]} : vector<8x256xf32> to vector<8x128xf32>
    %79 = vector.extract_strided_slice %70 {offsets = [0, 128], sizes = [8, 128], strides = [1, 1]} : vector<8x256xf32> to vector<8x128xf32>
    %80 = arith.addf %78, %79 : vector<8x128xf32>
    %81 = vector.extract_strided_slice %64 {offsets = [0, 0], sizes = [8, 32], strides = [1, 1]} : vector<8x64xf32> to vector<8x32xf32>
    %82 = vector.extract_strided_slice %77 {offsets = [0, 0], sizes = [8, 96], strides = [1, 1]} : vector<8x128xf32> to vector<8x96xf32>
    %83 = arith.negf %82 : vector<8x96xf32>
    %84 = math.exp %83 : vector<8x96xf32>
    %cst_23 = arith.constant 1.000000e+00 : f32
    %85 = vector.broadcast %cst_23 : f32 to vector<8x96xf32>
    %86 = arith.addf %85, %84 : vector<8x96xf32>
    %87 = arith.divf %85, %86 : vector<8x96xf32>
    %88 = vector.extract_strided_slice %77 {offsets = [0, 96], sizes = [8, 32], strides = [1, 1]} : vector<8x128xf32> to vector<8x32xf32>
    %89 = math.tanh %88 : vector<8x32xf32>
    %90 = vector.extract_strided_slice %87 {offsets = [0, 0], sizes = [8, 32], strides = [1, 1]} : vector<8x96xf32> to vector<8x32xf32>
    %91 = vector.extract_strided_slice %87 {offsets = [0, 32], sizes = [8, 32], strides = [1, 1]} : vector<8x96xf32> to vector<8x32xf32>
    %92 = vector.extract_strided_slice %87 {offsets = [0, 64], sizes = [8, 32], strides = [1, 1]} : vector<8x96xf32> to vector<8x32xf32>
    %93 = arith.mulf %91, %81 : vector<8x32xf32>
    %94 = arith.mulf %90, %89 : vector<8x32xf32>
    %95 = arith.addf %93, %94 : vector<8x32xf32>
    %96 = math.tanh %95 : vector<8x32xf32>
    %97 = arith.mulf %92, %96 : vector<8x32xf32>
    %98 = vector.extract_strided_slice %64 {offsets = [0, 32], sizes = [8, 32], strides = [1, 1]} : vector<8x64xf32> to vector<8x32xf32>
    %99 = vector.extract_strided_slice %80 {offsets = [0, 0], sizes = [8, 96], strides = [1, 1]} : vector<8x128xf32> to vector<8x96xf32>
    %100 = arith.negf %99 : vector<8x96xf32>
    %101 = math.exp %100 : vector<8x96xf32>
    %cst_24 = arith.constant 1.000000e+00 : f32
    %102 = vector.broadcast %cst_24 : f32 to vector<8x96xf32>
    %103 = arith.addf %102, %101 : vector<8x96xf32>
    %104 = arith.divf %102, %103 : vector<8x96xf32>
    %105 = vector.extract_strided_slice %80 {offsets = [0, 96], sizes = [8, 32], strides = [1, 1]} : vector<8x128xf32> to vector<8x32xf32>
    %106 = math.tanh %105 : vector<8x32xf32>
    %107 = vector.extract_strided_slice %104 {offsets = [0, 0], sizes = [8, 32], strides = [1, 1]} : vector<8x96xf32> to vector<8x32xf32>
    %108 = vector.extract_strided_slice %104 {offsets = [0, 32], sizes = [8, 32], strides = [1, 1]} : vector<8x96xf32> to vector<8x32xf32>
    %109 = vector.extract_strided_slice %104 {offsets = [0, 64], sizes = [8, 32], strides = [1, 1]} : vector<8x96xf32> to vector<8x32xf32>
    %110 = arith.mulf %108, %98 : vector<8x32xf32>
    %111 = arith.mulf %107, %106 : vector<8x32xf32>
    %112 = arith.addf %110, %111 : vector<8x32xf32>
    %113 = math.tanh %112 : vector<8x32xf32>
    %114 = arith.mulf %109, %113 : vector<8x32xf32>
    %115 = arith.index_cast %66 : i32 to index
    %c0_25 = arith.constant 0 : index
    %116 = vector.load %arg4[%115, %c0_25] : memref<64x64xf32, #tpu.memory_space<vmem>>, vector<8x32xf32>
    tpu.vector_store %arg4[%115, %c0_25], %97 {strides = array<i32>} : memref<64x64xf32, #tpu.memory_space<vmem>>, vector<8x32xf32>,
    %117 = arith.index_cast %69 : i32 to index
    %c32_26 = arith.constant 32 : index
    %118 = vector.load %arg4[%117, %c32_26] : memref<64x64xf32, #tpu.memory_space<vmem>>, vector<8x32xf32>
    tpu.vector_store %arg4[%117, %c32_26], %114 {strides = array<i32>} : memref<64x64xf32, #tpu.memory_space<vmem>>, vector<8x32xf32>,
    %119 = tpu.concatenate %97, %114 in 1 : vector<8x32xf32>, vector<8x32xf32> -> vector<8x64xf32>
    %120 = tpu.concatenate %95, %112 in 1 : vector<8x32xf32>, vector<8x32xf32> -> vector<8x64xf32>
    %c2_i32 = arith.constant 2 : i32
    %c8_i32_27 = arith.constant 8 : i32
    %121 = arith.muli %c2_i32, %c8_i32_27 : i32
    %122 = tpu.assume_multiple %121, 8 : i32
    %c7_i32_28 = arith.constant 7 : i32
    %123 = arith.subi %c7_i32_28, %c2_i32 : i32
    %c8_i32_29 = arith.constant 8 : i32
    %124 = arith.muli %123, %c8_i32_29 : i32
    %125 = tpu.assume_multiple %124, 8 : i32
    %cst_30 = arith.constant dense<0.000000e+00> : vector<8x256xf32>
    %126 = tpu.matmul %119, %7, %cst_30 {dimension_numbers = #tpu.dot_dimension_numbers<[1], [0], [0], [1], [0, 0, 1, 1], [], []>} : vector<8x64xf32>, vector<64x256xf32>, vector<8x256xf32> -> vector<8x256xf32>
    %127 = arith.index_cast %122 : i32 to index
    %c0_31 = arith.constant 0 : index
    %128 = vector.load %arg5[%127, %c0_31] : memref<64x256xf32, #tpu.memory_space<vmem>>, vector<8x256xf32>
    %129 = arith.index_cast %125 : i32 to index
    %c0_32 = arith.constant 0 : index
    %130 = vector.load %arg5[%129, %c0_32] : memref<64x256xf32, #tpu.memory_space<vmem>>, vector<8x256xf32>
    %131 = vector.extract_strided_slice %128 {offsets = [0, 0], sizes = [8, 128], strides = [1, 1]} : vector<8x256xf32> to vector<8x128xf32>
    %132 = vector.extract_strided_slice %126 {offsets = [0, 0], sizes = [8, 128], strides = [1, 1]} : vector<8x256xf32> to vector<8x128xf32>
    %133 = arith.addf %131, %132 : vector<8x128xf32>
    %134 = vector.extract_strided_slice %130 {offsets = [0, 128], sizes = [8, 128], strides = [1, 1]} : vector<8x256xf32> to vector<8x128xf32>
    %135 = vector.extract_strided_slice %126 {offsets = [0, 128], sizes = [8, 128], strides = [1, 1]} : vector<8x256xf32> to vector<8x128xf32>
    %136 = arith.addf %134, %135 : vector<8x128xf32>
    %137 = vector.extract_strided_slice %120 {offsets = [0, 0], sizes = [8, 32], strides = [1, 1]} : vector<8x64xf32> to vector<8x32xf32>
    %138 = vector.extract_strided_slice %133 {offsets = [0, 0], sizes = [8, 96], strides = [1, 1]} : vector<8x128xf32> to vector<8x96xf32>
    %139 = arith.negf %138 : vector<8x96xf32>
    %140 = math.exp %139 : vector<8x96xf32>
    %cst_33 = arith.constant 1.000000e+00 : f32
    %141 = vector.broadcast %cst_33 : f32 to vector<8x96xf32>
    %142 = arith.addf %141, %140 : vector<8x96xf32>
    %143 = arith.divf %141, %142 : vector<8x96xf32>
    %144 = vector.extract_strided_slice %133 {offsets = [0, 96], sizes = [8, 32], strides = [1, 1]} : vector<8x128xf32> to vector<8x32xf32>
    %145 = math.tanh %144 : vector<8x32xf32>
    %146 = vector.extract_strided_slice %143 {offsets = [0, 0], sizes = [8, 32], strides = [1, 1]} : vector<8x96xf32> to vector<8x32xf32>
    %147 = vector.extract_strided_slice %143 {offsets = [0, 32], sizes = [8, 32], strides = [1, 1]} : vector<8x96xf32> to vector<8x32xf32>
    %148 = vector.extract_strided_slice %143 {offsets = [0, 64], sizes = [8, 32], strides = [1, 1]} : vector<8x96xf32> to vector<8x32xf32>
    %149 = arith.mulf %147, %137 : vector<8x32xf32>
    %150 = arith.mulf %146, %145 : vector<8x32xf32>
    %151 = arith.addf %149, %150 : vector<8x32xf32>
    %152 = math.tanh %151 : vector<8x32xf32>
    %153 = arith.mulf %148, %152 : vector<8x32xf32>
    %154 = vector.extract_strided_slice %120 {offsets = [0, 32], sizes = [8, 32], strides = [1, 1]} : vector<8x64xf32> to vector<8x32xf32>
    %155 = vector.extract_strided_slice %136 {offsets = [0, 0], sizes = [8, 96], strides = [1, 1]} : vector<8x128xf32> to vector<8x96xf32>
    %156 = arith.negf %155 : vector<8x96xf32>
    %157 = math.exp %156 : vector<8x96xf32>
    %cst_34 = arith.constant 1.000000e+00 : f32
    %158 = vector.broadcast %cst_34 : f32 to vector<8x96xf32>
    %159 = arith.addf %158, %157 : vector<8x96xf32>
    %160 = arith.divf %158, %159 : vector<8x96xf32>
    %161 = vector.extract_strided_slice %136 {offsets = [0, 96], sizes = [8, 32], strides = [1, 1]} : vector<8x128xf32> to vector<8x32xf32>
    %162 = math.tanh %161 : vector<8x32xf32>
    %163 = vector.extract_strided_slice %160 {offsets = [0, 0], sizes = [8, 32], strides = [1, 1]} : vector<8x96xf32> to vector<8x32xf32>
    %164 = vector.extract_strided_slice %160 {offsets = [0, 32], sizes = [8, 32], strides = [1, 1]} : vector<8x96xf32> to vector<8x32xf32>
    %165 = vector.extract_strided_slice %160 {offsets = [0, 64], sizes = [8, 32], strides = [1, 1]} : vector<8x96xf32> to vector<8x32xf32>
    %166 = arith.mulf %164, %154 : vector<8x32xf32>
    %167 = arith.mulf %163, %162 : vector<8x32xf32>
    %168 = arith.addf %166, %167 : vector<8x32xf32>
    %169 = math.tanh %168 : vector<8x32xf32>
    %170 = arith.mulf %165, %169 : vector<8x32xf32>
    %171 = arith.index_cast %122 : i32 to index
    %c0_35 = arith.constant 0 : index
    %172 = vector.load %arg4[%171, %c0_35] : memref<64x64xf32, #tpu.memory_space<vmem>>, vector<8x32xf32>
    tpu.vector_store %arg4[%171, %c0_35], %153 {strides = array<i32>} : memref<64x64xf32, #tpu.memory_space<vmem>>, vector<8x32xf32>,
    %173 = arith.index_cast %125 : i32 to index
    %c32_36 = arith.constant 32 : index
    %174 = vector.load %arg4[%173, %c32_36] : memref<64x64xf32, #tpu.memory_space<vmem>>, vector<8x32xf32>
    tpu.vector_store %arg4[%173, %c32_36], %170 {strides = array<i32>} : memref<64x64xf32, #tpu.memory_space<vmem>>, vector<8x32xf32>,
    %175 = tpu.concatenate %153, %170 in 1 : vector<8x32xf32>, vector<8x32xf32> -> vector<8x64xf32>
    %176 = tpu.concatenate %151, %168 in 1 : vector<8x32xf32>, vector<8x32xf32> -> vector<8x64xf32>
    %c3_i32 = arith.constant 3 : i32
    %c8_i32_37 = arith.constant 8 : i32
    %177 = arith.muli %c3_i32, %c8_i32_37 : i32
    %178 = tpu.assume_multiple %177, 8 : i32
    %c7_i32_38 = arith.constant 7 : i32
    %179 = arith.subi %c7_i32_38, %c3_i32 : i32
    %c8_i32_39 = arith.constant 8 : i32
    %180 = arith.muli %179, %c8_i32_39 : i32
    %181 = tpu.assume_multiple %180, 8 : i32
    %cst_40 = arith.constant dense<0.000000e+00> : vector<8x256xf32>
    %182 = tpu.matmul %175, %7, %cst_40 {dimension_numbers = #tpu.dot_dimension_numbers<[1], [0], [0], [1], [0, 0, 1, 1], [], []>} : vector<8x64xf32>, vector<64x256xf32>, vector<8x256xf32> -> vector<8x256xf32>
    %183 = arith.index_cast %178 : i32 to index
    %c0_41 = arith.constant 0 : index
    %184 = vector.load %arg5[%183, %c0_41] : memref<64x256xf32, #tpu.memory_space<vmem>>, vector<8x256xf32>
    %185 = arith.index_cast %181 : i32 to index
    %c0_42 = arith.constant 0 : index
    %186 = vector.load %arg5[%185, %c0_42] : memref<64x256xf32, #tpu.memory_space<vmem>>, vector<8x256xf32>
    %187 = vector.extract_strided_slice %184 {offsets = [0, 0], sizes = [8, 128], strides = [1, 1]} : vector<8x256xf32> to vector<8x128xf32>
    %188 = vector.extract_strided_slice %182 {offsets = [0, 0], sizes = [8, 128], strides = [1, 1]} : vector<8x256xf32> to vector<8x128xf32>
    %189 = arith.addf %187, %188 : vector<8x128xf32>
    %190 = vector.extract_strided_slice %186 {offsets = [0, 128], sizes = [8, 128], strides = [1, 1]} : vector<8x256xf32> to vector<8x128xf32>
    %191 = vector.extract_strided_slice %182 {offsets = [0, 128], sizes = [8, 128], strides = [1, 1]} : vector<8x256xf32> to vector<8x128xf32>
    %192 = arith.addf %190, %191 : vector<8x128xf32>
    %193 = vector.extract_strided_slice %176 {offsets = [0, 0], sizes = [8, 32], strides = [1, 1]} : vector<8x64xf32> to vector<8x32xf32>
    %194 = vector.extract_strided_slice %189 {offsets = [0, 0], sizes = [8, 96], strides = [1, 1]} : vector<8x128xf32> to vector<8x96xf32>
    %195 = arith.negf %194 : vector<8x96xf32>
    %196 = math.exp %195 : vector<8x96xf32>
    %cst_43 = arith.constant 1.000000e+00 : f32
    %197 = vector.broadcast %cst_43 : f32 to vector<8x96xf32>
    %198 = arith.addf %197, %196 : vector<8x96xf32>
    %199 = arith.divf %197, %198 : vector<8x96xf32>
    %200 = vector.extract_strided_slice %189 {offsets = [0, 96], sizes = [8, 32], strides = [1, 1]} : vector<8x128xf32> to vector<8x32xf32>
    %201 = math.tanh %200 : vector<8x32xf32>
    %202 = vector.extract_strided_slice %199 {offsets = [0, 0], sizes = [8, 32], strides = [1, 1]} : vector<8x96xf32> to vector<8x32xf32>
    %203 = vector.extract_strided_slice %199 {offsets = [0, 32], sizes = [8, 32], strides = [1, 1]} : vector<8x96xf32> to vector<8x32xf32>
    %204 = vector.extract_strided_slice %199 {offsets = [0, 64], sizes = [8, 32], strides = [1, 1]} : vector<8x96xf32> to vector<8x32xf32>
    %205 = arith.mulf %203, %193 : vector<8x32xf32>
    %206 = arith.mulf %202, %201 : vector<8x32xf32>
    %207 = arith.addf %205, %206 : vector<8x32xf32>
    %208 = math.tanh %207 : vector<8x32xf32>
    %209 = arith.mulf %204, %208 : vector<8x32xf32>
    %210 = vector.extract_strided_slice %176 {offsets = [0, 32], sizes = [8, 32], strides = [1, 1]} : vector<8x64xf32> to vector<8x32xf32>
    %211 = vector.extract_strided_slice %192 {offsets = [0, 0], sizes = [8, 96], strides = [1, 1]} : vector<8x128xf32> to vector<8x96xf32>
    %212 = arith.negf %211 : vector<8x96xf32>
    %213 = math.exp %212 : vector<8x96xf32>
    %cst_44 = arith.constant 1.000000e+00 : f32
    %214 = vector.broadcast %cst_44 : f32 to vector<8x96xf32>
    %215 = arith.addf %214, %213 : vector<8x96xf32>
    %216 = arith.divf %214, %215 : vector<8x96xf32>
    %217 = vector.extract_strided_slice %192 {offsets = [0, 96], sizes = [8, 32], strides = [1, 1]} : vector<8x128xf32> to vector<8x32xf32>
    %218 = math.tanh %217 : vector<8x32xf32>
    %219 = vector.extract_strided_slice %216 {offsets = [0, 0], sizes = [8, 32], strides = [1, 1]} : vector<8x96xf32> to vector<8x32xf32>
    %220 = vector.extract_strided_slice %216 {offsets = [0, 32], sizes = [8, 32], strides = [1, 1]} : vector<8x96xf32> to vector<8x32xf32>
    %221 = vector.extract_strided_slice %216 {offsets = [0, 64], sizes = [8, 32], strides = [1, 1]} : vector<8x96xf32> to vector<8x32xf32>
    %222 = arith.mulf %220, %210 : vector<8x32xf32>
    %223 = arith.mulf %219, %218 : vector<8x32xf32>
    %224 = arith.addf %222, %223 : vector<8x32xf32>
    %225 = math.tanh %224 : vector<8x32xf32>
    %226 = arith.mulf %221, %225 : vector<8x32xf32>
    %227 = arith.index_cast %178 : i32 to index
    %c0_45 = arith.constant 0 : index
    %228 = vector.load %arg4[%227, %c0_45] : memref<64x64xf32, #tpu.memory_space<vmem>>, vector<8x32xf32>
    tpu.vector_store %arg4[%227, %c0_45], %209 {strides = array<i32>} : memref<64x64xf32, #tpu.memory_space<vmem>>, vector<8x32xf32>,
    %229 = arith.index_cast %181 : i32 to index
    %c32_46 = arith.constant 32 : index
    %230 = vector.load %arg4[%229, %c32_46] : memref<64x64xf32, #tpu.memory_space<vmem>>, vector<8x32xf32>
    tpu.vector_store %arg4[%229, %c32_46], %226 {strides = array<i32>} : memref<64x64xf32, #tpu.memory_space<vmem>>, vector<8x32xf32>,
    %231 = tpu.concatenate %209, %226 in 1 : vector<8x32xf32>, vector<8x32xf32> -> vector<8x64xf32>
    %232 = tpu.concatenate %207, %224 in 1 : vector<8x32xf32>, vector<8x32xf32> -> vector<8x64xf32>
    %c4_i32 = arith.constant 4 : i32
    %c8_i32_47 = arith.constant 8 : i32
    %233 = arith.muli %c4_i32, %c8_i32_47 : i32
    %234 = tpu.assume_multiple %233, 8 : i32
    %c7_i32_48 = arith.constant 7 : i32
    %235 = arith.subi %c7_i32_48, %c4_i32 : i32
    %c8_i32_49 = arith.constant 8 : i32
    %236 = arith.muli %235, %c8_i32_49 : i32
    %237 = tpu.assume_multiple %236, 8 : i32
    %cst_50 = arith.constant dense<0.000000e+00> : vector<8x256xf32>
    %238 = tpu.matmul %231, %7, %cst_50 {dimension_numbers = #tpu.dot_dimension_numbers<[1], [0], [0], [1], [0, 0, 1, 1], [], []>} : vector<8x64xf32>, vector<64x256xf32>, vector<8x256xf32> -> vector<8x256xf32>
    %239 = arith.index_cast %234 : i32 to index
    %c0_51 = arith.constant 0 : index
    %240 = vector.load %arg5[%239, %c0_51] : memref<64x256xf32, #tpu.memory_space<vmem>>, vector<8x256xf32>
    %241 = arith.index_cast %237 : i32 to index
    %c0_52 = arith.constant 0 : index
    %242 = vector.load %arg5[%241, %c0_52] : memref<64x256xf32, #tpu.memory_space<vmem>>, vector<8x256xf32>
    %243 = vector.extract_strided_slice %240 {offsets = [0, 0], sizes = [8, 128], strides = [1, 1]} : vector<8x256xf32> to vector<8x128xf32>
    %244 = vector.extract_strided_slice %238 {offsets = [0, 0], sizes = [8, 128], strides = [1, 1]} : vector<8x256xf32> to vector<8x128xf32>
    %245 = arith.addf %243, %244 : vector<8x128xf32>
    %246 = vector.extract_strided_slice %242 {offsets = [0, 128], sizes = [8, 128], strides = [1, 1]} : vector<8x256xf32> to vector<8x128xf32>
    %247 = vector.extract_strided_slice %238 {offsets = [0, 128], sizes = [8, 128], strides = [1, 1]} : vector<8x256xf32> to vector<8x128xf32>
    %248 = arith.addf %246, %247 : vector<8x128xf32>
    %249 = vector.extract_strided_slice %232 {offsets = [0, 0], sizes = [8, 32], strides = [1, 1]} : vector<8x64xf32> to vector<8x32xf32>
    %250 = vector.extract_strided_slice %245 {offsets = [0, 0], sizes = [8, 96], strides = [1, 1]} : vector<8x128xf32> to vector<8x96xf32>
    %251 = arith.negf %250 : vector<8x96xf32>
    %252 = math.exp %251 : vector<8x96xf32>
    %cst_53 = arith.constant 1.000000e+00 : f32
    %253 = vector.broadcast %cst_53 : f32 to vector<8x96xf32>
    %254 = arith.addf %253, %252 : vector<8x96xf32>
    %255 = arith.divf %253, %254 : vector<8x96xf32>
    %256 = vector.extract_strided_slice %245 {offsets = [0, 96], sizes = [8, 32], strides = [1, 1]} : vector<8x128xf32> to vector<8x32xf32>
    %257 = math.tanh %256 : vector<8x32xf32>
    %258 = vector.extract_strided_slice %255 {offsets = [0, 0], sizes = [8, 32], strides = [1, 1]} : vector<8x96xf32> to vector<8x32xf32>
    %259 = vector.extract_strided_slice %255 {offsets = [0, 32], sizes = [8, 32], strides = [1, 1]} : vector<8x96xf32> to vector<8x32xf32>
    %260 = vector.extract_strided_slice %255 {offsets = [0, 64], sizes = [8, 32], strides = [1, 1]} : vector<8x96xf32> to vector<8x32xf32>
    %261 = arith.mulf %259, %249 : vector<8x32xf32>
    %262 = arith.mulf %258, %257 : vector<8x32xf32>
    %263 = arith.addf %261, %262 : vector<8x32xf32>
    %264 = math.tanh %263 : vector<8x32xf32>
    %265 = arith.mulf %260, %264 : vector<8x32xf32>
    %266 = vector.extract_strided_slice %232 {offsets = [0, 32], sizes = [8, 32], strides = [1, 1]} : vector<8x64xf32> to vector<8x32xf32>
    %267 = vector.extract_strided_slice %248 {offsets = [0, 0], sizes = [8, 96], strides = [1, 1]} : vector<8x128xf32> to vector<8x96xf32>
    %268 = arith.negf %267 : vector<8x96xf32>
    %269 = math.exp %268 : vector<8x96xf32>
    %cst_54 = arith.constant 1.000000e+00 : f32
    %270 = vector.broadcast %cst_54 : f32 to vector<8x96xf32>
    %271 = arith.addf %270, %269 : vector<8x96xf32>
    %272 = arith.divf %270, %271 : vector<8x96xf32>
    %273 = vector.extract_strided_slice %248 {offsets = [0, 96], sizes = [8, 32], strides = [1, 1]} : vector<8x128xf32> to vector<8x32xf32>
    %274 = math.tanh %273 : vector<8x32xf32>
    %275 = vector.extract_strided_slice %272 {offsets = [0, 0], sizes = [8, 32], strides = [1, 1]} : vector<8x96xf32> to vector<8x32xf32>
    %276 = vector.extract_strided_slice %272 {offsets = [0, 32], sizes = [8, 32], strides = [1, 1]} : vector<8x96xf32> to vector<8x32xf32>
    %277 = vector.extract_strided_slice %272 {offsets = [0, 64], sizes = [8, 32], strides = [1, 1]} : vector<8x96xf32> to vector<8x32xf32>
    %278 = arith.mulf %276, %266 : vector<8x32xf32>
    %279 = arith.mulf %275, %274 : vector<8x32xf32>
    %280 = arith.addf %278, %279 : vector<8x32xf32>
    %281 = math.tanh %280 : vector<8x32xf32>
    %282 = arith.mulf %277, %281 : vector<8x32xf32>
    %283 = arith.index_cast %234 : i32 to index
    %c0_55 = arith.constant 0 : index
    %284 = vector.load %arg4[%283, %c0_55] : memref<64x64xf32, #tpu.memory_space<vmem>>, vector<8x32xf32>
    tpu.vector_store %arg4[%283, %c0_55], %265 {strides = array<i32>} : memref<64x64xf32, #tpu.memory_space<vmem>>, vector<8x32xf32>,
    %285 = arith.index_cast %237 : i32 to index
    %c32_56 = arith.constant 32 : index
    %286 = vector.load %arg4[%285, %c32_56] : memref<64x64xf32, #tpu.memory_space<vmem>>, vector<8x32xf32>
    tpu.vector_store %arg4[%285, %c32_56], %282 {strides = array<i32>} : memref<64x64xf32, #tpu.memory_space<vmem>>, vector<8x32xf32>,
    %287 = tpu.concatenate %265, %282 in 1 : vector<8x32xf32>, vector<8x32xf32> -> vector<8x64xf32>
    %288 = tpu.concatenate %263, %280 in 1 : vector<8x32xf32>, vector<8x32xf32> -> vector<8x64xf32>
    %c5_i32 = arith.constant 5 : i32
    %c8_i32_57 = arith.constant 8 : i32
    %289 = arith.muli %c5_i32, %c8_i32_57 : i32
    %290 = tpu.assume_multiple %289, 8 : i32
    %c7_i32_58 = arith.constant 7 : i32
    %291 = arith.subi %c7_i32_58, %c5_i32 : i32
    %c8_i32_59 = arith.constant 8 : i32
    %292 = arith.muli %291, %c8_i32_59 : i32
    %293 = tpu.assume_multiple %292, 8 : i32
    %cst_60 = arith.constant dense<0.000000e+00> : vector<8x256xf32>
    %294 = tpu.matmul %287, %7, %cst_60 {dimension_numbers = #tpu.dot_dimension_numbers<[1], [0], [0], [1], [0, 0, 1, 1], [], []>} : vector<8x64xf32>, vector<64x256xf32>, vector<8x256xf32> -> vector<8x256xf32>
    %295 = arith.index_cast %290 : i32 to index
    %c0_61 = arith.constant 0 : index
    %296 = vector.load %arg5[%295, %c0_61] : memref<64x256xf32, #tpu.memory_space<vmem>>, vector<8x256xf32>
    %297 = arith.index_cast %293 : i32 to index
    %c0_62 = arith.constant 0 : index
    %298 = vector.load %arg5[%297, %c0_62] : memref<64x256xf32, #tpu.memory_space<vmem>>, vector<8x256xf32>
    %299 = vector.extract_strided_slice %296 {offsets = [0, 0], sizes = [8, 128], strides = [1, 1]} : vector<8x256xf32> to vector<8x128xf32>
    %300 = vector.extract_strided_slice %294 {offsets = [0, 0], sizes = [8, 128], strides = [1, 1]} : vector<8x256xf32> to vector<8x128xf32>
    %301 = arith.addf %299, %300 : vector<8x128xf32>
    %302 = vector.extract_strided_slice %298 {offsets = [0, 128], sizes = [8, 128], strides = [1, 1]} : vector<8x256xf32> to vector<8x128xf32>
    %303 = vector.extract_strided_slice %294 {offsets = [0, 128], sizes = [8, 128], strides = [1, 1]} : vector<8x256xf32> to vector<8x128xf32>
    %304 = arith.addf %302, %303 : vector<8x128xf32>
    %305 = vector.extract_strided_slice %288 {offsets = [0, 0], sizes = [8, 32], strides = [1, 1]} : vector<8x64xf32> to vector<8x32xf32>
    %306 = vector.extract_strided_slice %301 {offsets = [0, 0], sizes = [8, 96], strides = [1, 1]} : vector<8x128xf32> to vector<8x96xf32>
    %307 = arith.negf %306 : vector<8x96xf32>
    %308 = math.exp %307 : vector<8x96xf32>
    %cst_63 = arith.constant 1.000000e+00 : f32
    %309 = vector.broadcast %cst_63 : f32 to vector<8x96xf32>
    %310 = arith.addf %309, %308 : vector<8x96xf32>
    %311 = arith.divf %309, %310 : vector<8x96xf32>
    %312 = vector.extract_strided_slice %301 {offsets = [0, 96], sizes = [8, 32], strides = [1, 1]} : vector<8x128xf32> to vector<8x32xf32>
    %313 = math.tanh %312 : vector<8x32xf32>
    %314 = vector.extract_strided_slice %311 {offsets = [0, 0], sizes = [8, 32], strides = [1, 1]} : vector<8x96xf32> to vector<8x32xf32>
    %315 = vector.extract_strided_slice %311 {offsets = [0, 32], sizes = [8, 32], strides = [1, 1]} : vector<8x96xf32> to vector<8x32xf32>
    %316 = vector.extract_strided_slice %311 {offsets = [0, 64], sizes = [8, 32], strides = [1, 1]} : vector<8x96xf32> to vector<8x32xf32>
    %317 = arith.mulf %315, %305 : vector<8x32xf32>
    %318 = arith.mulf %314, %313 : vector<8x32xf32>
    %319 = arith.addf %317, %318 : vector<8x32xf32>
    %320 = math.tanh %319 : vector<8x32xf32>
    %321 = arith.mulf %316, %320 : vector<8x32xf32>
    %322 = vector.extract_strided_slice %288 {offsets = [0, 32], sizes = [8, 32], strides = [1, 1]} : vector<8x64xf32> to vector<8x32xf32>
    %323 = vector.extract_strided_slice %304 {offsets = [0, 0], sizes = [8, 96], strides = [1, 1]} : vector<8x128xf32> to vector<8x96xf32>
    %324 = arith.negf %323 : vector<8x96xf32>
    %325 = math.exp %324 : vector<8x96xf32>
    %cst_64 = arith.constant 1.000000e+00 : f32
    %326 = vector.broadcast %cst_64 : f32 to vector<8x96xf32>
    %327 = arith.addf %326, %325 : vector<8x96xf32>
    %328 = arith.divf %326, %327 : vector<8x96xf32>
    %329 = vector.extract_strided_slice %304 {offsets = [0, 96], sizes = [8, 32], strides = [1, 1]} : vector<8x128xf32> to vector<8x32xf32>
    %330 = math.tanh %329 : vector<8x32xf32>
    %331 = vector.extract_strided_slice %328 {offsets = [0, 0], sizes = [8, 32], strides = [1, 1]} : vector<8x96xf32> to vector<8x32xf32>
    %332 = vector.extract_strided_slice %328 {offsets = [0, 32], sizes = [8, 32], strides = [1, 1]} : vector<8x96xf32> to vector<8x32xf32>
    %333 = vector.extract_strided_slice %328 {offsets = [0, 64], sizes = [8, 32], strides = [1, 1]} : vector<8x96xf32> to vector<8x32xf32>
    %334 = arith.mulf %332, %322 : vector<8x32xf32>
    %335 = arith.mulf %331, %330 : vector<8x32xf32>
    %336 = arith.addf %334, %335 : vector<8x32xf32>
    %337 = math.tanh %336 : vector<8x32xf32>
    %338 = arith.mulf %333, %337 : vector<8x32xf32>
    %339 = arith.index_cast %290 : i32 to index
    %c0_65 = arith.constant 0 : index
    %340 = vector.load %arg4[%339, %c0_65] : memref<64x64xf32, #tpu.memory_space<vmem>>, vector<8x32xf32>
    tpu.vector_store %arg4[%339, %c0_65], %321 {strides = array<i32>} : memref<64x64xf32, #tpu.memory_space<vmem>>, vector<8x32xf32>,
    %341 = arith.index_cast %293 : i32 to index
    %c32_66 = arith.constant 32 : index
    %342 = vector.load %arg4[%341, %c32_66] : memref<64x64xf32, #tpu.memory_space<vmem>>, vector<8x32xf32>
    tpu.vector_store %arg4[%341, %c32_66], %338 {strides = array<i32>} : memref<64x64xf32, #tpu.memory_space<vmem>>, vector<8x32xf32>,
    %343 = tpu.concatenate %321, %338 in 1 : vector<8x32xf32>, vector<8x32xf32> -> vector<8x64xf32>
    %344 = tpu.concatenate %319, %336 in 1 : vector<8x32xf32>, vector<8x32xf32> -> vector<8x64xf32>
    %c6_i32 = arith.constant 6 : i32
    %c8_i32_67 = arith.constant 8 : i32
    %345 = arith.muli %c6_i32, %c8_i32_67 : i32
    %346 = tpu.assume_multiple %345, 8 : i32
    %c7_i32_68 = arith.constant 7 : i32
    %347 = arith.subi %c7_i32_68, %c6_i32 : i32
    %c8_i32_69 = arith.constant 8 : i32
    %348 = arith.muli %347, %c8_i32_69 : i32
    %349 = tpu.assume_multiple %348, 8 : i32
    %cst_70 = arith.constant dense<0.000000e+00> : vector<8x256xf32>
    %350 = tpu.matmul %343, %7, %cst_70 {dimension_numbers = #tpu.dot_dimension_numbers<[1], [0], [0], [1], [0, 0, 1, 1], [], []>} : vector<8x64xf32>, vector<64x256xf32>, vector<8x256xf32> -> vector<8x256xf32>
    %351 = arith.index_cast %346 : i32 to index
    %c0_71 = arith.constant 0 : index
    %352 = vector.load %arg5[%351, %c0_71] : memref<64x256xf32, #tpu.memory_space<vmem>>, vector<8x256xf32>
    %353 = arith.index_cast %349 : i32 to index
    %c0_72 = arith.constant 0 : index
    %354 = vector.load %arg5[%353, %c0_72] : memref<64x256xf32, #tpu.memory_space<vmem>>, vector<8x256xf32>
    %355 = vector.extract_strided_slice %352 {offsets = [0, 0], sizes = [8, 128], strides = [1, 1]} : vector<8x256xf32> to vector<8x128xf32>
    %356 = vector.extract_strided_slice %350 {offsets = [0, 0], sizes = [8, 128], strides = [1, 1]} : vector<8x256xf32> to vector<8x128xf32>
    %357 = arith.addf %355, %356 : vector<8x128xf32>
    %358 = vector.extract_strided_slice %354 {offsets = [0, 128], sizes = [8, 128], strides = [1, 1]} : vector<8x256xf32> to vector<8x128xf32>
    %359 = vector.extract_strided_slice %350 {offsets = [0, 128], sizes = [8, 128], strides = [1, 1]} : vector<8x256xf32> to vector<8x128xf32>
    %360 = arith.addf %358, %359 : vector<8x128xf32>
    %361 = vector.extract_strided_slice %344 {offsets = [0, 0], sizes = [8, 32], strides = [1, 1]} : vector<8x64xf32> to vector<8x32xf32>
    %362 = vector.extract_strided_slice %357 {offsets = [0, 0], sizes = [8, 96], strides = [1, 1]} : vector<8x128xf32> to vector<8x96xf32>
    %363 = arith.negf %362 : vector<8x96xf32>
    %364 = math.exp %363 : vector<8x96xf32>
    %cst_73 = arith.constant 1.000000e+00 : f32
    %365 = vector.broadcast %cst_73 : f32 to vector<8x96xf32>
    %366 = arith.addf %365, %364 : vector<8x96xf32>
    %367 = arith.divf %365, %366 : vector<8x96xf32>
    %368 = vector.extract_strided_slice %357 {offsets = [0, 96], sizes = [8, 32], strides = [1, 1]} : vector<8x128xf32> to vector<8x32xf32>
    %369 = math.tanh %368 : vector<8x32xf32>
    %370 = vector.extract_strided_slice %367 {offsets = [0, 0], sizes = [8, 32], strides = [1, 1]} : vector<8x96xf32> to vector<8x32xf32>
    %371 = vector.extract_strided_slice %367 {offsets = [0, 32], sizes = [8, 32], strides = [1, 1]} : vector<8x96xf32> to vector<8x32xf32>
    %372 = vector.extract_strided_slice %367 {offsets = [0, 64], sizes = [8, 32], strides = [1, 1]} : vector<8x96xf32> to vector<8x32xf32>
    %373 = arith.mulf %371, %361 : vector<8x32xf32>
    %374 = arith.mulf %370, %369 : vector<8x32xf32>
    %375 = arith.addf %373, %374 : vector<8x32xf32>
    %376 = math.tanh %375 : vector<8x32xf32>
    %377 = arith.mulf %372, %376 : vector<8x32xf32>
    %378 = vector.extract_strided_slice %344 {offsets = [0, 32], sizes = [8, 32], strides = [1, 1]} : vector<8x64xf32> to vector<8x32xf32>
    %379 = vector.extract_strided_slice %360 {offsets = [0, 0], sizes = [8, 96], strides = [1, 1]} : vector<8x128xf32> to vector<8x96xf32>
    %380 = arith.negf %379 : vector<8x96xf32>
    %381 = math.exp %380 : vector<8x96xf32>
    %cst_74 = arith.constant 1.000000e+00 : f32
    %382 = vector.broadcast %cst_74 : f32 to vector<8x96xf32>
    %383 = arith.addf %382, %381 : vector<8x96xf32>
    %384 = arith.divf %382, %383 : vector<8x96xf32>
    %385 = vector.extract_strided_slice %360 {offsets = [0, 96], sizes = [8, 32], strides = [1, 1]} : vector<8x128xf32> to vector<8x32xf32>
    %386 = math.tanh %385 : vector<8x32xf32>
    %387 = vector.extract_strided_slice %384 {offsets = [0, 0], sizes = [8, 32], strides = [1, 1]} : vector<8x96xf32> to vector<8x32xf32>
    %388 = vector.extract_strided_slice %384 {offsets = [0, 32], sizes = [8, 32], strides = [1, 1]} : vector<8x96xf32> to vector<8x32xf32>
    %389 = vector.extract_strided_slice %384 {offsets = [0, 64], sizes = [8, 32], strides = [1, 1]} : vector<8x96xf32> to vector<8x32xf32>
    %390 = arith.mulf %388, %378 : vector<8x32xf32>
    %391 = arith.mulf %387, %386 : vector<8x32xf32>
    %392 = arith.addf %390, %391 : vector<8x32xf32>
    %393 = math.tanh %392 : vector<8x32xf32>
    %394 = arith.mulf %389, %393 : vector<8x32xf32>
    %395 = arith.index_cast %346 : i32 to index
    %c0_75 = arith.constant 0 : index
    %396 = vector.load %arg4[%395, %c0_75] : memref<64x64xf32, #tpu.memory_space<vmem>>, vector<8x32xf32>
    tpu.vector_store %arg4[%395, %c0_75], %377 {strides = array<i32>} : memref<64x64xf32, #tpu.memory_space<vmem>>, vector<8x32xf32>,
    %397 = arith.index_cast %349 : i32 to index
    %c32_76 = arith.constant 32 : index
    %398 = vector.load %arg4[%397, %c32_76] : memref<64x64xf32, #tpu.memory_space<vmem>>, vector<8x32xf32>
    tpu.vector_store %arg4[%397, %c32_76], %394 {strides = array<i32>} : memref<64x64xf32, #tpu.memory_space<vmem>>, vector<8x32xf32>,
    %399 = tpu.concatenate %377, %394 in 1 : vector<8x32xf32>, vector<8x32xf32> -> vector<8x64xf32>
    %400 = tpu.concatenate %375, %392 in 1 : vector<8x32xf32>, vector<8x32xf32> -> vector<8x64xf32>
    %c7_i32_77 = arith.constant 7 : i32
    %c8_i32_78 = arith.constant 8 : i32
    %401 = arith.muli %c7_i32_77, %c8_i32_78 : i32
    %402 = tpu.assume_multiple %401, 8 : i32
    %c7_i32_79 = arith.constant 7 : i32
    %403 = arith.subi %c7_i32_79, %c7_i32_77 : i32
    %c8_i32_80 = arith.constant 8 : i32
    %404 = arith.muli %403, %c8_i32_80 : i32
    %405 = tpu.assume_multiple %404, 8 : i32
    %cst_81 = arith.constant dense<0.000000e+00> : vector<8x256xf32>
    %406 = tpu.matmul %399, %7, %cst_81 {dimension_numbers = #tpu.dot_dimension_numbers<[1], [0], [0], [1], [0, 0, 1, 1], [], []>} : vector<8x64xf32>, vector<64x256xf32>, vector<8x256xf32> -> vector<8x256xf32>
    %407 = arith.index_cast %402 : i32 to index
    %c0_82 = arith.constant 0 : index
    %408 = vector.load %arg5[%407, %c0_82] : memref<64x256xf32, #tpu.memory_space<vmem>>, vector<8x256xf32>
    %409 = arith.index_cast %405 : i32 to index
    %c0_83 = arith.constant 0 : index
    %410 = vector.load %arg5[%409, %c0_83] : memref<64x256xf32, #tpu.memory_space<vmem>>, vector<8x256xf32>
    %411 = vector.extract_strided_slice %408 {offsets = [0, 0], sizes = [8, 128], strides = [1, 1]} : vector<8x256xf32> to vector<8x128xf32>
    %412 = vector.extract_strided_slice %406 {offsets = [0, 0], sizes = [8, 128], strides = [1, 1]} : vector<8x256xf32> to vector<8x128xf32>
    %413 = arith.addf %411, %412 : vector<8x128xf32>
    %414 = vector.extract_strided_slice %410 {offsets = [0, 128], sizes = [8, 128], strides = [1, 1]} : vector<8x256xf32> to vector<8x128xf32>
    %415 = vector.extract_strided_slice %406 {offsets = [0, 128], sizes = [8, 128], strides = [1, 1]} : vector<8x256xf32> to vector<8x128xf32>
    %416 = arith.addf %414, %415 : vector<8x128xf32>
    %417 = vector.extract_strided_slice %400 {offsets = [0, 0], sizes = [8, 32], strides = [1, 1]} : vector<8x64xf32> to vector<8x32xf32>
    %418 = vector.extract_strided_slice %413 {offsets = [0, 0], sizes = [8, 96], strides = [1, 1]} : vector<8x128xf32> to vector<8x96xf32>
    %419 = arith.negf %418 : vector<8x96xf32>
    %420 = math.exp %419 : vector<8x96xf32>
    %cst_84 = arith.constant 1.000000e+00 : f32
    %421 = vector.broadcast %cst_84 : f32 to vector<8x96xf32>
    %422 = arith.addf %421, %420 : vector<8x96xf32>
    %423 = arith.divf %421, %422 : vector<8x96xf32>
    %424 = vector.extract_strided_slice %413 {offsets = [0, 96], sizes = [8, 32], strides = [1, 1]} : vector<8x128xf32> to vector<8x32xf32>
    %425 = math.tanh %424 : vector<8x32xf32>
    %426 = vector.extract_strided_slice %423 {offsets = [0, 0], sizes = [8, 32], strides = [1, 1]} : vector<8x96xf32> to vector<8x32xf32>
    %427 = vector.extract_strided_slice %423 {offsets = [0, 32], sizes = [8, 32], strides = [1, 1]} : vector<8x96xf32> to vector<8x32xf32>
    %428 = vector.extract_strided_slice %423 {offsets = [0, 64], sizes = [8, 32], strides = [1, 1]} : vector<8x96xf32> to vector<8x32xf32>
    %429 = arith.mulf %427, %417 : vector<8x32xf32>
    %430 = arith.mulf %426, %425 : vector<8x32xf32>
    %431 = arith.addf %429, %430 : vector<8x32xf32>
    %432 = math.tanh %431 : vector<8x32xf32>
    %433 = arith.mulf %428, %432 : vector<8x32xf32>
    %434 = vector.extract_strided_slice %400 {offsets = [0, 32], sizes = [8, 32], strides = [1, 1]} : vector<8x64xf32> to vector<8x32xf32>
    %435 = vector.extract_strided_slice %416 {offsets = [0, 0], sizes = [8, 96], strides = [1, 1]} : vector<8x128xf32> to vector<8x96xf32>
    %436 = arith.negf %435 : vector<8x96xf32>
    %437 = math.exp %436 : vector<8x96xf32>
    %cst_85 = arith.constant 1.000000e+00 : f32
    %438 = vector.broadcast %cst_85 : f32 to vector<8x96xf32>
    %439 = arith.addf %438, %437 : vector<8x96xf32>
    %440 = arith.divf %438, %439 : vector<8x96xf32>
    %441 = vector.extract_strided_slice %416 {offsets = [0, 96], sizes = [8, 32], strides = [1, 1]} : vector<8x128xf32> to vector<8x32xf32>
    %442 = math.tanh %441 : vector<8x32xf32>
    %443 = vector.extract_strided_slice %440 {offsets = [0, 0], sizes = [8, 32], strides = [1, 1]} : vector<8x96xf32> to vector<8x32xf32>
    %444 = vector.extract_strided_slice %440 {offsets = [0, 32], sizes = [8, 32], strides = [1, 1]} : vector<8x96xf32> to vector<8x32xf32>
    %445 = vector.extract_strided_slice %440 {offsets = [0, 64], sizes = [8, 32], strides = [1, 1]} : vector<8x96xf32> to vector<8x32xf32>
    %446 = arith.mulf %444, %434 : vector<8x32xf32>
    %447 = arith.mulf %443, %442 : vector<8x32xf32>
    %448 = arith.addf %446, %447 : vector<8x32xf32>
    %449 = math.tanh %448 : vector<8x32xf32>
    %450 = arith.mulf %445, %449 : vector<8x32xf32>
    %451 = arith.index_cast %402 : i32 to index
    %c0_86 = arith.constant 0 : index
    %452 = vector.load %arg4[%451, %c0_86] : memref<64x64xf32, #tpu.memory_space<vmem>>, vector<8x32xf32>
    tpu.vector_store %arg4[%451, %c0_86], %433 {strides = array<i32>} : memref<64x64xf32, #tpu.memory_space<vmem>>, vector<8x32xf32>,
    %453 = arith.index_cast %405 : i32 to index
    %c32_87 = arith.constant 32 : index
    %454 = vector.load %arg4[%453, %c32_87] : memref<64x64xf32, #tpu.memory_space<vmem>>, vector<8x32xf32>
    tpu.vector_store %arg4[%453, %c32_87], %450 {strides = array<i32>} : memref<64x64xf32, #tpu.memory_space<vmem>>, vector<8x32xf32>,
    %455 = tpu.concatenate %433, %450 in 1 : vector<8x32xf32>, vector<8x32xf32> -> vector<8x64xf32>
    %456 = tpu.concatenate %431, %448 in 1 : vector<8x32xf32>, vector<8x32xf32> -> vector<8x64xf32>
    %c8_i32_88 = arith.constant 8 : i32
    return
  }
}

module attributes {stable_mosaic.version = 11 : i64} {
  func.func @_lstm_layer1_pool_head_kernel(%arg0: memref<64x64xf32, #tpu.memory_space<vmem>>, %arg1: memref<64x256xbf16, #tpu.memory_space<vmem>>, %arg2: memref<64x256xf32, #tpu.memory_space<vmem>>, %arg3: memref<1x256xf32, #tpu.memory_space<vmem>>, %arg4: memref<64x32xf32, #tpu.memory_space<vmem>>, %arg5: memref<1x32xf32, #tpu.memory_space<vmem>>, %arg6: memref<1x32xf32, #tpu.memory_space<vmem>>, %arg7: memref<32x16xf32, #tpu.memory_space<vmem>>, %arg8: memref<1x16xf32, #tpu.memory_space<vmem>>, %arg9: memref<1x16xf32, #tpu.memory_space<vmem>>, %arg10: memref<16x3xf32, #tpu.memory_space<vmem>>, %arg11: memref<1x3xf32, #tpu.memory_space<vmem>>, %arg12: memref<8x3xf32, #tpu.memory_space<vmem>>, %arg13: memref<64x256xf32, #tpu.memory_space<vmem>>) attributes {dimension_semantics = [], scalar_prefetch = 0 : i64, scratch_operands = 1 : i64, tpu.core_type = #tpu.core_type<tc>} {
    %c0 = arith.constant 0 : index
    %c0_0 = arith.constant 0 : index
    %0 = vector.load %arg0[%c0, %c0_0] : memref<64x64xf32, #tpu.memory_space<vmem>>, vector<64x64xf32>
    %1 = arith.truncf %0 : vector<64x64xf32> to vector<64x64xbf16>
    %c0_1 = arith.constant 0 : index
    %c0_2 = arith.constant 0 : index
    %2 = vector.load %arg1[%c0_1, %c0_2] : memref<64x256xbf16, #tpu.memory_space<vmem>>, vector<64x256xbf16>
    %cst = arith.constant dense<0.000000e+00> : vector<64x256xf32>
    %3 = tpu.matmul %1, %2, %cst {dimension_numbers = #tpu.dot_dimension_numbers<[1], [0], [0], [1], [0, 0, 1, 1], [], []>} : vector<64x64xbf16>, vector<64x256xbf16>, vector<64x256xf32> -> vector<64x256xf32>
    %c0_3 = arith.constant 0 : index
    %c0_4 = arith.constant 0 : index
    %4 = vector.load %arg3[%c0_3, %c0_4] : memref<1x256xf32, #tpu.memory_space<vmem>>, vector<1x256xf32>
    %5 = vector.broadcast %4 : vector<1x256xf32> to vector<64x256xf32>
    %6 = arith.addf %3, %5 : vector<64x256xf32>
    %c0_5 = arith.constant 0 : index
    %c0_6 = arith.constant 0 : index
    %7 = vector.load %arg13[%c0_5, %c0_6] : memref<64x256xf32, #tpu.memory_space<vmem>>, vector<64x256xf32>
    tpu.vector_store %arg13[%c0_5, %c0_6], %6 {strides = array<i32>} : memref<64x256xf32, #tpu.memory_space<vmem>>, vector<64x256xf32>,
    %c0_7 = arith.constant 0 : index
    %c0_8 = arith.constant 0 : index
    %8 = vector.load %arg2[%c0_7, %c0_8] : memref<64x256xf32, #tpu.memory_space<vmem>>, vector<64x256xf32>
    %cst_9 = arith.constant 0.000000e+00 : f32
    %9 = vector.broadcast %cst_9 : f32 to vector<8x64xf32>
    %c0_i32 = arith.constant 0 : i32
    %c8_i32 = arith.constant 8 : i32
    %10 = arith.muli %c0_i32, %c8_i32 : i32
    %11 = tpu.assume_multiple %10, 8 : i32
    %c7_i32 = arith.constant 7 : i32
    %12 = arith.subi %c7_i32, %c0_i32 : i32
    %c8_i32_10 = arith.constant 8 : i32
    %13 = arith.muli %12, %c8_i32_10 : i32
    %14 = tpu.assume_multiple %13, 8 : i32
    %cst_11 = arith.constant dense<0.000000e+00> : vector<8x256xf32>
    %15 = tpu.matmul %9, %8, %cst_11 {dimension_numbers = #tpu.dot_dimension_numbers<[1], [0], [0], [1], [0, 0, 1, 1], [], []>} : vector<8x64xf32>, vector<64x256xf32>, vector<8x256xf32> -> vector<8x256xf32>
    %16 = arith.index_cast %11 : i32 to index
    %c0_12 = arith.constant 0 : index
    %17 = vector.load %arg13[%16, %c0_12] : memref<64x256xf32, #tpu.memory_space<vmem>>, vector<8x256xf32>
    %18 = arith.index_cast %14 : i32 to index
    %c0_13 = arith.constant 0 : index
    %19 = vector.load %arg13[%18, %c0_13] : memref<64x256xf32, #tpu.memory_space<vmem>>, vector<8x256xf32>
    %20 = vector.extract_strided_slice %17 {offsets = [0, 0], sizes = [8, 128], strides = [1, 1]} : vector<8x256xf32> to vector<8x128xf32>
    %21 = vector.extract_strided_slice %15 {offsets = [0, 0], sizes = [8, 128], strides = [1, 1]} : vector<8x256xf32> to vector<8x128xf32>
    %22 = arith.addf %20, %21 : vector<8x128xf32>
    %23 = vector.extract_strided_slice %19 {offsets = [0, 128], sizes = [8, 128], strides = [1, 1]} : vector<8x256xf32> to vector<8x128xf32>
    %24 = vector.extract_strided_slice %15 {offsets = [0, 128], sizes = [8, 128], strides = [1, 1]} : vector<8x256xf32> to vector<8x128xf32>
    %25 = arith.addf %23, %24 : vector<8x128xf32>
    %26 = vector.extract_strided_slice %9 {offsets = [0, 0], sizes = [8, 32], strides = [1, 1]} : vector<8x64xf32> to vector<8x32xf32>
    %27 = vector.extract_strided_slice %22 {offsets = [0, 0], sizes = [8, 96], strides = [1, 1]} : vector<8x128xf32> to vector<8x96xf32>
    %28 = arith.negf %27 : vector<8x96xf32>
    %29 = math.exp %28 : vector<8x96xf32>
    %cst_14 = arith.constant 1.000000e+00 : f32
    %30 = vector.broadcast %cst_14 : f32 to vector<8x96xf32>
    %31 = arith.addf %30, %29 : vector<8x96xf32>
    %32 = arith.divf %30, %31 : vector<8x96xf32>
    %33 = vector.extract_strided_slice %22 {offsets = [0, 96], sizes = [8, 32], strides = [1, 1]} : vector<8x128xf32> to vector<8x32xf32>
    %34 = math.tanh %33 : vector<8x32xf32>
    %35 = vector.extract_strided_slice %32 {offsets = [0, 0], sizes = [8, 32], strides = [1, 1]} : vector<8x96xf32> to vector<8x32xf32>
    %36 = vector.extract_strided_slice %32 {offsets = [0, 32], sizes = [8, 32], strides = [1, 1]} : vector<8x96xf32> to vector<8x32xf32>
    %37 = vector.extract_strided_slice %32 {offsets = [0, 64], sizes = [8, 32], strides = [1, 1]} : vector<8x96xf32> to vector<8x32xf32>
    %38 = arith.mulf %36, %26 : vector<8x32xf32>
    %39 = arith.mulf %35, %34 : vector<8x32xf32>
    %40 = arith.addf %38, %39 : vector<8x32xf32>
    %41 = math.tanh %40 : vector<8x32xf32>
    %42 = arith.mulf %37, %41 : vector<8x32xf32>
    %43 = vector.extract_strided_slice %9 {offsets = [0, 32], sizes = [8, 32], strides = [1, 1]} : vector<8x64xf32> to vector<8x32xf32>
    %44 = vector.extract_strided_slice %25 {offsets = [0, 0], sizes = [8, 96], strides = [1, 1]} : vector<8x128xf32> to vector<8x96xf32>
    %45 = arith.negf %44 : vector<8x96xf32>
    %46 = math.exp %45 : vector<8x96xf32>
    %cst_15 = arith.constant 1.000000e+00 : f32
    %47 = vector.broadcast %cst_15 : f32 to vector<8x96xf32>
    %48 = arith.addf %47, %46 : vector<8x96xf32>
    %49 = arith.divf %47, %48 : vector<8x96xf32>
    %50 = vector.extract_strided_slice %25 {offsets = [0, 96], sizes = [8, 32], strides = [1, 1]} : vector<8x128xf32> to vector<8x32xf32>
    %51 = math.tanh %50 : vector<8x32xf32>
    %52 = vector.extract_strided_slice %49 {offsets = [0, 0], sizes = [8, 32], strides = [1, 1]} : vector<8x96xf32> to vector<8x32xf32>
    %53 = vector.extract_strided_slice %49 {offsets = [0, 32], sizes = [8, 32], strides = [1, 1]} : vector<8x96xf32> to vector<8x32xf32>
    %54 = vector.extract_strided_slice %49 {offsets = [0, 64], sizes = [8, 32], strides = [1, 1]} : vector<8x96xf32> to vector<8x32xf32>
    %55 = arith.mulf %53, %43 : vector<8x32xf32>
    %56 = arith.mulf %52, %51 : vector<8x32xf32>
    %57 = arith.addf %55, %56 : vector<8x32xf32>
    %58 = math.tanh %57 : vector<8x32xf32>
    %59 = arith.mulf %54, %58 : vector<8x32xf32>
    %60 = tpu.concatenate %42, %59 in 1 : vector<8x32xf32>, vector<8x32xf32> -> vector<8x64xf32>
    %61 = tpu.concatenate %40, %57 in 1 : vector<8x32xf32>, vector<8x32xf32> -> vector<8x64xf32>
    %62 = arith.addf %9, %60 : vector<8x64xf32>
    %c1_i32 = arith.constant 1 : i32
    %c8_i32_16 = arith.constant 8 : i32
    %63 = arith.muli %c1_i32, %c8_i32_16 : i32
    %64 = tpu.assume_multiple %63, 8 : i32
    %c7_i32_17 = arith.constant 7 : i32
    %65 = arith.subi %c7_i32_17, %c1_i32 : i32
    %c8_i32_18 = arith.constant 8 : i32
    %66 = arith.muli %65, %c8_i32_18 : i32
    %67 = tpu.assume_multiple %66, 8 : i32
    %cst_19 = arith.constant dense<0.000000e+00> : vector<8x256xf32>
    %68 = tpu.matmul %60, %8, %cst_19 {dimension_numbers = #tpu.dot_dimension_numbers<[1], [0], [0], [1], [0, 0, 1, 1], [], []>} : vector<8x64xf32>, vector<64x256xf32>, vector<8x256xf32> -> vector<8x256xf32>
    %69 = arith.index_cast %64 : i32 to index
    %c0_20 = arith.constant 0 : index
    %70 = vector.load %arg13[%69, %c0_20] : memref<64x256xf32, #tpu.memory_space<vmem>>, vector<8x256xf32>
    %71 = arith.index_cast %67 : i32 to index
    %c0_21 = arith.constant 0 : index
    %72 = vector.load %arg13[%71, %c0_21] : memref<64x256xf32, #tpu.memory_space<vmem>>, vector<8x256xf32>
    %73 = vector.extract_strided_slice %70 {offsets = [0, 0], sizes = [8, 128], strides = [1, 1]} : vector<8x256xf32> to vector<8x128xf32>
    %74 = vector.extract_strided_slice %68 {offsets = [0, 0], sizes = [8, 128], strides = [1, 1]} : vector<8x256xf32> to vector<8x128xf32>
    %75 = arith.addf %73, %74 : vector<8x128xf32>
    %76 = vector.extract_strided_slice %72 {offsets = [0, 128], sizes = [8, 128], strides = [1, 1]} : vector<8x256xf32> to vector<8x128xf32>
    %77 = vector.extract_strided_slice %68 {offsets = [0, 128], sizes = [8, 128], strides = [1, 1]} : vector<8x256xf32> to vector<8x128xf32>
    %78 = arith.addf %76, %77 : vector<8x128xf32>
    %79 = vector.extract_strided_slice %61 {offsets = [0, 0], sizes = [8, 32], strides = [1, 1]} : vector<8x64xf32> to vector<8x32xf32>
    %80 = vector.extract_strided_slice %75 {offsets = [0, 0], sizes = [8, 96], strides = [1, 1]} : vector<8x128xf32> to vector<8x96xf32>
    %81 = arith.negf %80 : vector<8x96xf32>
    %82 = math.exp %81 : vector<8x96xf32>
    %cst_22 = arith.constant 1.000000e+00 : f32
    %83 = vector.broadcast %cst_22 : f32 to vector<8x96xf32>
    %84 = arith.addf %83, %82 : vector<8x96xf32>
    %85 = arith.divf %83, %84 : vector<8x96xf32>
    %86 = vector.extract_strided_slice %75 {offsets = [0, 96], sizes = [8, 32], strides = [1, 1]} : vector<8x128xf32> to vector<8x32xf32>
    %87 = math.tanh %86 : vector<8x32xf32>
    %88 = vector.extract_strided_slice %85 {offsets = [0, 0], sizes = [8, 32], strides = [1, 1]} : vector<8x96xf32> to vector<8x32xf32>
    %89 = vector.extract_strided_slice %85 {offsets = [0, 32], sizes = [8, 32], strides = [1, 1]} : vector<8x96xf32> to vector<8x32xf32>
    %90 = vector.extract_strided_slice %85 {offsets = [0, 64], sizes = [8, 32], strides = [1, 1]} : vector<8x96xf32> to vector<8x32xf32>
    %91 = arith.mulf %89, %79 : vector<8x32xf32>
    %92 = arith.mulf %88, %87 : vector<8x32xf32>
    %93 = arith.addf %91, %92 : vector<8x32xf32>
    %94 = math.tanh %93 : vector<8x32xf32>
    %95 = arith.mulf %90, %94 : vector<8x32xf32>
    %96 = vector.extract_strided_slice %61 {offsets = [0, 32], sizes = [8, 32], strides = [1, 1]} : vector<8x64xf32> to vector<8x32xf32>
    %97 = vector.extract_strided_slice %78 {offsets = [0, 0], sizes = [8, 96], strides = [1, 1]} : vector<8x128xf32> to vector<8x96xf32>
    %98 = arith.negf %97 : vector<8x96xf32>
    %99 = math.exp %98 : vector<8x96xf32>
    %cst_23 = arith.constant 1.000000e+00 : f32
    %100 = vector.broadcast %cst_23 : f32 to vector<8x96xf32>
    %101 = arith.addf %100, %99 : vector<8x96xf32>
    %102 = arith.divf %100, %101 : vector<8x96xf32>
    %103 = vector.extract_strided_slice %78 {offsets = [0, 96], sizes = [8, 32], strides = [1, 1]} : vector<8x128xf32> to vector<8x32xf32>
    %104 = math.tanh %103 : vector<8x32xf32>
    %105 = vector.extract_strided_slice %102 {offsets = [0, 0], sizes = [8, 32], strides = [1, 1]} : vector<8x96xf32> to vector<8x32xf32>
    %106 = vector.extract_strided_slice %102 {offsets = [0, 32], sizes = [8, 32], strides = [1, 1]} : vector<8x96xf32> to vector<8x32xf32>
    %107 = vector.extract_strided_slice %102 {offsets = [0, 64], sizes = [8, 32], strides = [1, 1]} : vector<8x96xf32> to vector<8x32xf32>
    %108 = arith.mulf %106, %96 : vector<8x32xf32>
    %109 = arith.mulf %105, %104 : vector<8x32xf32>
    %110 = arith.addf %108, %109 : vector<8x32xf32>
    %111 = math.tanh %110 : vector<8x32xf32>
    %112 = arith.mulf %107, %111 : vector<8x32xf32>
    %113 = tpu.concatenate %95, %112 in 1 : vector<8x32xf32>, vector<8x32xf32> -> vector<8x64xf32>
    %114 = tpu.concatenate %93, %110 in 1 : vector<8x32xf32>, vector<8x32xf32> -> vector<8x64xf32>
    %115 = arith.addf %62, %113 : vector<8x64xf32>
    %c2_i32 = arith.constant 2 : i32
    %c8_i32_24 = arith.constant 8 : i32
    %116 = arith.muli %c2_i32, %c8_i32_24 : i32
    %117 = tpu.assume_multiple %116, 8 : i32
    %c7_i32_25 = arith.constant 7 : i32
    %118 = arith.subi %c7_i32_25, %c2_i32 : i32
    %c8_i32_26 = arith.constant 8 : i32
    %119 = arith.muli %118, %c8_i32_26 : i32
    %120 = tpu.assume_multiple %119, 8 : i32
    %cst_27 = arith.constant dense<0.000000e+00> : vector<8x256xf32>
    %121 = tpu.matmul %113, %8, %cst_27 {dimension_numbers = #tpu.dot_dimension_numbers<[1], [0], [0], [1], [0, 0, 1, 1], [], []>} : vector<8x64xf32>, vector<64x256xf32>, vector<8x256xf32> -> vector<8x256xf32>
    %122 = arith.index_cast %117 : i32 to index
    %c0_28 = arith.constant 0 : index
    %123 = vector.load %arg13[%122, %c0_28] : memref<64x256xf32, #tpu.memory_space<vmem>>, vector<8x256xf32>
    %124 = arith.index_cast %120 : i32 to index
    %c0_29 = arith.constant 0 : index
    %125 = vector.load %arg13[%124, %c0_29] : memref<64x256xf32, #tpu.memory_space<vmem>>, vector<8x256xf32>
    %126 = vector.extract_strided_slice %123 {offsets = [0, 0], sizes = [8, 128], strides = [1, 1]} : vector<8x256xf32> to vector<8x128xf32>
    %127 = vector.extract_strided_slice %121 {offsets = [0, 0], sizes = [8, 128], strides = [1, 1]} : vector<8x256xf32> to vector<8x128xf32>
    %128 = arith.addf %126, %127 : vector<8x128xf32>
    %129 = vector.extract_strided_slice %125 {offsets = [0, 128], sizes = [8, 128], strides = [1, 1]} : vector<8x256xf32> to vector<8x128xf32>
    %130 = vector.extract_strided_slice %121 {offsets = [0, 128], sizes = [8, 128], strides = [1, 1]} : vector<8x256xf32> to vector<8x128xf32>
    %131 = arith.addf %129, %130 : vector<8x128xf32>
    %132 = vector.extract_strided_slice %114 {offsets = [0, 0], sizes = [8, 32], strides = [1, 1]} : vector<8x64xf32> to vector<8x32xf32>
    %133 = vector.extract_strided_slice %128 {offsets = [0, 0], sizes = [8, 96], strides = [1, 1]} : vector<8x128xf32> to vector<8x96xf32>
    %134 = arith.negf %133 : vector<8x96xf32>
    %135 = math.exp %134 : vector<8x96xf32>
    %cst_30 = arith.constant 1.000000e+00 : f32
    %136 = vector.broadcast %cst_30 : f32 to vector<8x96xf32>
    %137 = arith.addf %136, %135 : vector<8x96xf32>
    %138 = arith.divf %136, %137 : vector<8x96xf32>
    %139 = vector.extract_strided_slice %128 {offsets = [0, 96], sizes = [8, 32], strides = [1, 1]} : vector<8x128xf32> to vector<8x32xf32>
    %140 = math.tanh %139 : vector<8x32xf32>
    %141 = vector.extract_strided_slice %138 {offsets = [0, 0], sizes = [8, 32], strides = [1, 1]} : vector<8x96xf32> to vector<8x32xf32>
    %142 = vector.extract_strided_slice %138 {offsets = [0, 32], sizes = [8, 32], strides = [1, 1]} : vector<8x96xf32> to vector<8x32xf32>
    %143 = vector.extract_strided_slice %138 {offsets = [0, 64], sizes = [8, 32], strides = [1, 1]} : vector<8x96xf32> to vector<8x32xf32>
    %144 = arith.mulf %142, %132 : vector<8x32xf32>
    %145 = arith.mulf %141, %140 : vector<8x32xf32>
    %146 = arith.addf %144, %145 : vector<8x32xf32>
    %147 = math.tanh %146 : vector<8x32xf32>
    %148 = arith.mulf %143, %147 : vector<8x32xf32>
    %149 = vector.extract_strided_slice %114 {offsets = [0, 32], sizes = [8, 32], strides = [1, 1]} : vector<8x64xf32> to vector<8x32xf32>
    %150 = vector.extract_strided_slice %131 {offsets = [0, 0], sizes = [8, 96], strides = [1, 1]} : vector<8x128xf32> to vector<8x96xf32>
    %151 = arith.negf %150 : vector<8x96xf32>
    %152 = math.exp %151 : vector<8x96xf32>
    %cst_31 = arith.constant 1.000000e+00 : f32
    %153 = vector.broadcast %cst_31 : f32 to vector<8x96xf32>
    %154 = arith.addf %153, %152 : vector<8x96xf32>
    %155 = arith.divf %153, %154 : vector<8x96xf32>
    %156 = vector.extract_strided_slice %131 {offsets = [0, 96], sizes = [8, 32], strides = [1, 1]} : vector<8x128xf32> to vector<8x32xf32>
    %157 = math.tanh %156 : vector<8x32xf32>
    %158 = vector.extract_strided_slice %155 {offsets = [0, 0], sizes = [8, 32], strides = [1, 1]} : vector<8x96xf32> to vector<8x32xf32>
    %159 = vector.extract_strided_slice %155 {offsets = [0, 32], sizes = [8, 32], strides = [1, 1]} : vector<8x96xf32> to vector<8x32xf32>
    %160 = vector.extract_strided_slice %155 {offsets = [0, 64], sizes = [8, 32], strides = [1, 1]} : vector<8x96xf32> to vector<8x32xf32>
    %161 = arith.mulf %159, %149 : vector<8x32xf32>
    %162 = arith.mulf %158, %157 : vector<8x32xf32>
    %163 = arith.addf %161, %162 : vector<8x32xf32>
    %164 = math.tanh %163 : vector<8x32xf32>
    %165 = arith.mulf %160, %164 : vector<8x32xf32>
    %166 = tpu.concatenate %148, %165 in 1 : vector<8x32xf32>, vector<8x32xf32> -> vector<8x64xf32>
    %167 = tpu.concatenate %146, %163 in 1 : vector<8x32xf32>, vector<8x32xf32> -> vector<8x64xf32>
    %168 = arith.addf %115, %166 : vector<8x64xf32>
    %c3_i32 = arith.constant 3 : i32
    %c8_i32_32 = arith.constant 8 : i32
    %169 = arith.muli %c3_i32, %c8_i32_32 : i32
    %170 = tpu.assume_multiple %169, 8 : i32
    %c7_i32_33 = arith.constant 7 : i32
    %171 = arith.subi %c7_i32_33, %c3_i32 : i32
    %c8_i32_34 = arith.constant 8 : i32
    %172 = arith.muli %171, %c8_i32_34 : i32
    %173 = tpu.assume_multiple %172, 8 : i32
    %cst_35 = arith.constant dense<0.000000e+00> : vector<8x256xf32>
    %174 = tpu.matmul %166, %8, %cst_35 {dimension_numbers = #tpu.dot_dimension_numbers<[1], [0], [0], [1], [0, 0, 1, 1], [], []>} : vector<8x64xf32>, vector<64x256xf32>, vector<8x256xf32> -> vector<8x256xf32>
    %175 = arith.index_cast %170 : i32 to index
    %c0_36 = arith.constant 0 : index
    %176 = vector.load %arg13[%175, %c0_36] : memref<64x256xf32, #tpu.memory_space<vmem>>, vector<8x256xf32>
    %177 = arith.index_cast %173 : i32 to index
    %c0_37 = arith.constant 0 : index
    %178 = vector.load %arg13[%177, %c0_37] : memref<64x256xf32, #tpu.memory_space<vmem>>, vector<8x256xf32>
    %179 = vector.extract_strided_slice %176 {offsets = [0, 0], sizes = [8, 128], strides = [1, 1]} : vector<8x256xf32> to vector<8x128xf32>
    %180 = vector.extract_strided_slice %174 {offsets = [0, 0], sizes = [8, 128], strides = [1, 1]} : vector<8x256xf32> to vector<8x128xf32>
    %181 = arith.addf %179, %180 : vector<8x128xf32>
    %182 = vector.extract_strided_slice %178 {offsets = [0, 128], sizes = [8, 128], strides = [1, 1]} : vector<8x256xf32> to vector<8x128xf32>
    %183 = vector.extract_strided_slice %174 {offsets = [0, 128], sizes = [8, 128], strides = [1, 1]} : vector<8x256xf32> to vector<8x128xf32>
    %184 = arith.addf %182, %183 : vector<8x128xf32>
    %185 = vector.extract_strided_slice %167 {offsets = [0, 0], sizes = [8, 32], strides = [1, 1]} : vector<8x64xf32> to vector<8x32xf32>
    %186 = vector.extract_strided_slice %181 {offsets = [0, 0], sizes = [8, 96], strides = [1, 1]} : vector<8x128xf32> to vector<8x96xf32>
    %187 = arith.negf %186 : vector<8x96xf32>
    %188 = math.exp %187 : vector<8x96xf32>
    %cst_38 = arith.constant 1.000000e+00 : f32
    %189 = vector.broadcast %cst_38 : f32 to vector<8x96xf32>
    %190 = arith.addf %189, %188 : vector<8x96xf32>
    %191 = arith.divf %189, %190 : vector<8x96xf32>
    %192 = vector.extract_strided_slice %181 {offsets = [0, 96], sizes = [8, 32], strides = [1, 1]} : vector<8x128xf32> to vector<8x32xf32>
    %193 = math.tanh %192 : vector<8x32xf32>
    %194 = vector.extract_strided_slice %191 {offsets = [0, 0], sizes = [8, 32], strides = [1, 1]} : vector<8x96xf32> to vector<8x32xf32>
    %195 = vector.extract_strided_slice %191 {offsets = [0, 32], sizes = [8, 32], strides = [1, 1]} : vector<8x96xf32> to vector<8x32xf32>
    %196 = vector.extract_strided_slice %191 {offsets = [0, 64], sizes = [8, 32], strides = [1, 1]} : vector<8x96xf32> to vector<8x32xf32>
    %197 = arith.mulf %195, %185 : vector<8x32xf32>
    %198 = arith.mulf %194, %193 : vector<8x32xf32>
    %199 = arith.addf %197, %198 : vector<8x32xf32>
    %200 = math.tanh %199 : vector<8x32xf32>
    %201 = arith.mulf %196, %200 : vector<8x32xf32>
    %202 = vector.extract_strided_slice %167 {offsets = [0, 32], sizes = [8, 32], strides = [1, 1]} : vector<8x64xf32> to vector<8x32xf32>
    %203 = vector.extract_strided_slice %184 {offsets = [0, 0], sizes = [8, 96], strides = [1, 1]} : vector<8x128xf32> to vector<8x96xf32>
    %204 = arith.negf %203 : vector<8x96xf32>
    %205 = math.exp %204 : vector<8x96xf32>
    %cst_39 = arith.constant 1.000000e+00 : f32
    %206 = vector.broadcast %cst_39 : f32 to vector<8x96xf32>
    %207 = arith.addf %206, %205 : vector<8x96xf32>
    %208 = arith.divf %206, %207 : vector<8x96xf32>
    %209 = vector.extract_strided_slice %184 {offsets = [0, 96], sizes = [8, 32], strides = [1, 1]} : vector<8x128xf32> to vector<8x32xf32>
    %210 = math.tanh %209 : vector<8x32xf32>
    %211 = vector.extract_strided_slice %208 {offsets = [0, 0], sizes = [8, 32], strides = [1, 1]} : vector<8x96xf32> to vector<8x32xf32>
    %212 = vector.extract_strided_slice %208 {offsets = [0, 32], sizes = [8, 32], strides = [1, 1]} : vector<8x96xf32> to vector<8x32xf32>
    %213 = vector.extract_strided_slice %208 {offsets = [0, 64], sizes = [8, 32], strides = [1, 1]} : vector<8x96xf32> to vector<8x32xf32>
    %214 = arith.mulf %212, %202 : vector<8x32xf32>
    %215 = arith.mulf %211, %210 : vector<8x32xf32>
    %216 = arith.addf %214, %215 : vector<8x32xf32>
    %217 = math.tanh %216 : vector<8x32xf32>
    %218 = arith.mulf %213, %217 : vector<8x32xf32>
    %219 = tpu.concatenate %201, %218 in 1 : vector<8x32xf32>, vector<8x32xf32> -> vector<8x64xf32>
    %220 = tpu.concatenate %199, %216 in 1 : vector<8x32xf32>, vector<8x32xf32> -> vector<8x64xf32>
    %221 = arith.addf %168, %219 : vector<8x64xf32>
    %c4_i32 = arith.constant 4 : i32
    %c8_i32_40 = arith.constant 8 : i32
    %222 = arith.muli %c4_i32, %c8_i32_40 : i32
    %223 = tpu.assume_multiple %222, 8 : i32
    %c7_i32_41 = arith.constant 7 : i32
    %224 = arith.subi %c7_i32_41, %c4_i32 : i32
    %c8_i32_42 = arith.constant 8 : i32
    %225 = arith.muli %224, %c8_i32_42 : i32
    %226 = tpu.assume_multiple %225, 8 : i32
    %cst_43 = arith.constant dense<0.000000e+00> : vector<8x256xf32>
    %227 = tpu.matmul %219, %8, %cst_43 {dimension_numbers = #tpu.dot_dimension_numbers<[1], [0], [0], [1], [0, 0, 1, 1], [], []>} : vector<8x64xf32>, vector<64x256xf32>, vector<8x256xf32> -> vector<8x256xf32>
    %228 = arith.index_cast %223 : i32 to index
    %c0_44 = arith.constant 0 : index
    %229 = vector.load %arg13[%228, %c0_44] : memref<64x256xf32, #tpu.memory_space<vmem>>, vector<8x256xf32>
    %230 = arith.index_cast %226 : i32 to index
    %c0_45 = arith.constant 0 : index
    %231 = vector.load %arg13[%230, %c0_45] : memref<64x256xf32, #tpu.memory_space<vmem>>, vector<8x256xf32>
    %232 = vector.extract_strided_slice %229 {offsets = [0, 0], sizes = [8, 128], strides = [1, 1]} : vector<8x256xf32> to vector<8x128xf32>
    %233 = vector.extract_strided_slice %227 {offsets = [0, 0], sizes = [8, 128], strides = [1, 1]} : vector<8x256xf32> to vector<8x128xf32>
    %234 = arith.addf %232, %233 : vector<8x128xf32>
    %235 = vector.extract_strided_slice %231 {offsets = [0, 128], sizes = [8, 128], strides = [1, 1]} : vector<8x256xf32> to vector<8x128xf32>
    %236 = vector.extract_strided_slice %227 {offsets = [0, 128], sizes = [8, 128], strides = [1, 1]} : vector<8x256xf32> to vector<8x128xf32>
    %237 = arith.addf %235, %236 : vector<8x128xf32>
    %238 = vector.extract_strided_slice %220 {offsets = [0, 0], sizes = [8, 32], strides = [1, 1]} : vector<8x64xf32> to vector<8x32xf32>
    %239 = vector.extract_strided_slice %234 {offsets = [0, 0], sizes = [8, 96], strides = [1, 1]} : vector<8x128xf32> to vector<8x96xf32>
    %240 = arith.negf %239 : vector<8x96xf32>
    %241 = math.exp %240 : vector<8x96xf32>
    %cst_46 = arith.constant 1.000000e+00 : f32
    %242 = vector.broadcast %cst_46 : f32 to vector<8x96xf32>
    %243 = arith.addf %242, %241 : vector<8x96xf32>
    %244 = arith.divf %242, %243 : vector<8x96xf32>
    %245 = vector.extract_strided_slice %234 {offsets = [0, 96], sizes = [8, 32], strides = [1, 1]} : vector<8x128xf32> to vector<8x32xf32>
    %246 = math.tanh %245 : vector<8x32xf32>
    %247 = vector.extract_strided_slice %244 {offsets = [0, 0], sizes = [8, 32], strides = [1, 1]} : vector<8x96xf32> to vector<8x32xf32>
    %248 = vector.extract_strided_slice %244 {offsets = [0, 32], sizes = [8, 32], strides = [1, 1]} : vector<8x96xf32> to vector<8x32xf32>
    %249 = vector.extract_strided_slice %244 {offsets = [0, 64], sizes = [8, 32], strides = [1, 1]} : vector<8x96xf32> to vector<8x32xf32>
    %250 = arith.mulf %248, %238 : vector<8x32xf32>
    %251 = arith.mulf %247, %246 : vector<8x32xf32>
    %252 = arith.addf %250, %251 : vector<8x32xf32>
    %253 = math.tanh %252 : vector<8x32xf32>
    %254 = arith.mulf %249, %253 : vector<8x32xf32>
    %255 = vector.extract_strided_slice %220 {offsets = [0, 32], sizes = [8, 32], strides = [1, 1]} : vector<8x64xf32> to vector<8x32xf32>
    %256 = vector.extract_strided_slice %237 {offsets = [0, 0], sizes = [8, 96], strides = [1, 1]} : vector<8x128xf32> to vector<8x96xf32>
    %257 = arith.negf %256 : vector<8x96xf32>
    %258 = math.exp %257 : vector<8x96xf32>
    %cst_47 = arith.constant 1.000000e+00 : f32
    %259 = vector.broadcast %cst_47 : f32 to vector<8x96xf32>
    %260 = arith.addf %259, %258 : vector<8x96xf32>
    %261 = arith.divf %259, %260 : vector<8x96xf32>
    %262 = vector.extract_strided_slice %237 {offsets = [0, 96], sizes = [8, 32], strides = [1, 1]} : vector<8x128xf32> to vector<8x32xf32>
    %263 = math.tanh %262 : vector<8x32xf32>
    %264 = vector.extract_strided_slice %261 {offsets = [0, 0], sizes = [8, 32], strides = [1, 1]} : vector<8x96xf32> to vector<8x32xf32>
    %265 = vector.extract_strided_slice %261 {offsets = [0, 32], sizes = [8, 32], strides = [1, 1]} : vector<8x96xf32> to vector<8x32xf32>
    %266 = vector.extract_strided_slice %261 {offsets = [0, 64], sizes = [8, 32], strides = [1, 1]} : vector<8x96xf32> to vector<8x32xf32>
    %267 = arith.mulf %265, %255 : vector<8x32xf32>
    %268 = arith.mulf %264, %263 : vector<8x32xf32>
    %269 = arith.addf %267, %268 : vector<8x32xf32>
    %270 = math.tanh %269 : vector<8x32xf32>
    %271 = arith.mulf %266, %270 : vector<8x32xf32>
    %272 = tpu.concatenate %254, %271 in 1 : vector<8x32xf32>, vector<8x32xf32> -> vector<8x64xf32>
    %273 = tpu.concatenate %252, %269 in 1 : vector<8x32xf32>, vector<8x32xf32> -> vector<8x64xf32>
    %274 = arith.addf %221, %272 : vector<8x64xf32>
    %c5_i32 = arith.constant 5 : i32
    %c8_i32_48 = arith.constant 8 : i32
    %275 = arith.muli %c5_i32, %c8_i32_48 : i32
    %276 = tpu.assume_multiple %275, 8 : i32
    %c7_i32_49 = arith.constant 7 : i32
    %277 = arith.subi %c7_i32_49, %c5_i32 : i32
    %c8_i32_50 = arith.constant 8 : i32
    %278 = arith.muli %277, %c8_i32_50 : i32
    %279 = tpu.assume_multiple %278, 8 : i32
    %cst_51 = arith.constant dense<0.000000e+00> : vector<8x256xf32>
    %280 = tpu.matmul %272, %8, %cst_51 {dimension_numbers = #tpu.dot_dimension_numbers<[1], [0], [0], [1], [0, 0, 1, 1], [], []>} : vector<8x64xf32>, vector<64x256xf32>, vector<8x256xf32> -> vector<8x256xf32>
    %281 = arith.index_cast %276 : i32 to index
    %c0_52 = arith.constant 0 : index
    %282 = vector.load %arg13[%281, %c0_52] : memref<64x256xf32, #tpu.memory_space<vmem>>, vector<8x256xf32>
    %283 = arith.index_cast %279 : i32 to index
    %c0_53 = arith.constant 0 : index
    %284 = vector.load %arg13[%283, %c0_53] : memref<64x256xf32, #tpu.memory_space<vmem>>, vector<8x256xf32>
    %285 = vector.extract_strided_slice %282 {offsets = [0, 0], sizes = [8, 128], strides = [1, 1]} : vector<8x256xf32> to vector<8x128xf32>
    %286 = vector.extract_strided_slice %280 {offsets = [0, 0], sizes = [8, 128], strides = [1, 1]} : vector<8x256xf32> to vector<8x128xf32>
    %287 = arith.addf %285, %286 : vector<8x128xf32>
    %288 = vector.extract_strided_slice %284 {offsets = [0, 128], sizes = [8, 128], strides = [1, 1]} : vector<8x256xf32> to vector<8x128xf32>
    %289 = vector.extract_strided_slice %280 {offsets = [0, 128], sizes = [8, 128], strides = [1, 1]} : vector<8x256xf32> to vector<8x128xf32>
    %290 = arith.addf %288, %289 : vector<8x128xf32>
    %291 = vector.extract_strided_slice %273 {offsets = [0, 0], sizes = [8, 32], strides = [1, 1]} : vector<8x64xf32> to vector<8x32xf32>
    %292 = vector.extract_strided_slice %287 {offsets = [0, 0], sizes = [8, 96], strides = [1, 1]} : vector<8x128xf32> to vector<8x96xf32>
    %293 = arith.negf %292 : vector<8x96xf32>
    %294 = math.exp %293 : vector<8x96xf32>
    %cst_54 = arith.constant 1.000000e+00 : f32
    %295 = vector.broadcast %cst_54 : f32 to vector<8x96xf32>
    %296 = arith.addf %295, %294 : vector<8x96xf32>
    %297 = arith.divf %295, %296 : vector<8x96xf32>
    %298 = vector.extract_strided_slice %287 {offsets = [0, 96], sizes = [8, 32], strides = [1, 1]} : vector<8x128xf32> to vector<8x32xf32>
    %299 = math.tanh %298 : vector<8x32xf32>
    %300 = vector.extract_strided_slice %297 {offsets = [0, 0], sizes = [8, 32], strides = [1, 1]} : vector<8x96xf32> to vector<8x32xf32>
    %301 = vector.extract_strided_slice %297 {offsets = [0, 32], sizes = [8, 32], strides = [1, 1]} : vector<8x96xf32> to vector<8x32xf32>
    %302 = vector.extract_strided_slice %297 {offsets = [0, 64], sizes = [8, 32], strides = [1, 1]} : vector<8x96xf32> to vector<8x32xf32>
    %303 = arith.mulf %301, %291 : vector<8x32xf32>
    %304 = arith.mulf %300, %299 : vector<8x32xf32>
    %305 = arith.addf %303, %304 : vector<8x32xf32>
    %306 = math.tanh %305 : vector<8x32xf32>
    %307 = arith.mulf %302, %306 : vector<8x32xf32>
    %308 = vector.extract_strided_slice %273 {offsets = [0, 32], sizes = [8, 32], strides = [1, 1]} : vector<8x64xf32> to vector<8x32xf32>
    %309 = vector.extract_strided_slice %290 {offsets = [0, 0], sizes = [8, 96], strides = [1, 1]} : vector<8x128xf32> to vector<8x96xf32>
    %310 = arith.negf %309 : vector<8x96xf32>
    %311 = math.exp %310 : vector<8x96xf32>
    %cst_55 = arith.constant 1.000000e+00 : f32
    %312 = vector.broadcast %cst_55 : f32 to vector<8x96xf32>
    %313 = arith.addf %312, %311 : vector<8x96xf32>
    %314 = arith.divf %312, %313 : vector<8x96xf32>
    %315 = vector.extract_strided_slice %290 {offsets = [0, 96], sizes = [8, 32], strides = [1, 1]} : vector<8x128xf32> to vector<8x32xf32>
    %316 = math.tanh %315 : vector<8x32xf32>
    %317 = vector.extract_strided_slice %314 {offsets = [0, 0], sizes = [8, 32], strides = [1, 1]} : vector<8x96xf32> to vector<8x32xf32>
    %318 = vector.extract_strided_slice %314 {offsets = [0, 32], sizes = [8, 32], strides = [1, 1]} : vector<8x96xf32> to vector<8x32xf32>
    %319 = vector.extract_strided_slice %314 {offsets = [0, 64], sizes = [8, 32], strides = [1, 1]} : vector<8x96xf32> to vector<8x32xf32>
    %320 = arith.mulf %318, %308 : vector<8x32xf32>
    %321 = arith.mulf %317, %316 : vector<8x32xf32>
    %322 = arith.addf %320, %321 : vector<8x32xf32>
    %323 = math.tanh %322 : vector<8x32xf32>
    %324 = arith.mulf %319, %323 : vector<8x32xf32>
    %325 = tpu.concatenate %307, %324 in 1 : vector<8x32xf32>, vector<8x32xf32> -> vector<8x64xf32>
    %326 = tpu.concatenate %305, %322 in 1 : vector<8x32xf32>, vector<8x32xf32> -> vector<8x64xf32>
    %327 = arith.addf %274, %325 : vector<8x64xf32>
    %c6_i32 = arith.constant 6 : i32
    %c8_i32_56 = arith.constant 8 : i32
    %328 = arith.muli %c6_i32, %c8_i32_56 : i32
    %329 = tpu.assume_multiple %328, 8 : i32
    %c7_i32_57 = arith.constant 7 : i32
    %330 = arith.subi %c7_i32_57, %c6_i32 : i32
    %c8_i32_58 = arith.constant 8 : i32
    %331 = arith.muli %330, %c8_i32_58 : i32
    %332 = tpu.assume_multiple %331, 8 : i32
    %cst_59 = arith.constant dense<0.000000e+00> : vector<8x256xf32>
    %333 = tpu.matmul %325, %8, %cst_59 {dimension_numbers = #tpu.dot_dimension_numbers<[1], [0], [0], [1], [0, 0, 1, 1], [], []>} : vector<8x64xf32>, vector<64x256xf32>, vector<8x256xf32> -> vector<8x256xf32>
    %334 = arith.index_cast %329 : i32 to index
    %c0_60 = arith.constant 0 : index
    %335 = vector.load %arg13[%334, %c0_60] : memref<64x256xf32, #tpu.memory_space<vmem>>, vector<8x256xf32>
    %336 = arith.index_cast %332 : i32 to index
    %c0_61 = arith.constant 0 : index
    %337 = vector.load %arg13[%336, %c0_61] : memref<64x256xf32, #tpu.memory_space<vmem>>, vector<8x256xf32>
    %338 = vector.extract_strided_slice %335 {offsets = [0, 0], sizes = [8, 128], strides = [1, 1]} : vector<8x256xf32> to vector<8x128xf32>
    %339 = vector.extract_strided_slice %333 {offsets = [0, 0], sizes = [8, 128], strides = [1, 1]} : vector<8x256xf32> to vector<8x128xf32>
    %340 = arith.addf %338, %339 : vector<8x128xf32>
    %341 = vector.extract_strided_slice %337 {offsets = [0, 128], sizes = [8, 128], strides = [1, 1]} : vector<8x256xf32> to vector<8x128xf32>
    %342 = vector.extract_strided_slice %333 {offsets = [0, 128], sizes = [8, 128], strides = [1, 1]} : vector<8x256xf32> to vector<8x128xf32>
    %343 = arith.addf %341, %342 : vector<8x128xf32>
    %344 = vector.extract_strided_slice %326 {offsets = [0, 0], sizes = [8, 32], strides = [1, 1]} : vector<8x64xf32> to vector<8x32xf32>
    %345 = vector.extract_strided_slice %340 {offsets = [0, 0], sizes = [8, 96], strides = [1, 1]} : vector<8x128xf32> to vector<8x96xf32>
    %346 = arith.negf %345 : vector<8x96xf32>
    %347 = math.exp %346 : vector<8x96xf32>
    %cst_62 = arith.constant 1.000000e+00 : f32
    %348 = vector.broadcast %cst_62 : f32 to vector<8x96xf32>
    %349 = arith.addf %348, %347 : vector<8x96xf32>
    %350 = arith.divf %348, %349 : vector<8x96xf32>
    %351 = vector.extract_strided_slice %340 {offsets = [0, 96], sizes = [8, 32], strides = [1, 1]} : vector<8x128xf32> to vector<8x32xf32>
    %352 = math.tanh %351 : vector<8x32xf32>
    %353 = vector.extract_strided_slice %350 {offsets = [0, 0], sizes = [8, 32], strides = [1, 1]} : vector<8x96xf32> to vector<8x32xf32>
    %354 = vector.extract_strided_slice %350 {offsets = [0, 32], sizes = [8, 32], strides = [1, 1]} : vector<8x96xf32> to vector<8x32xf32>
    %355 = vector.extract_strided_slice %350 {offsets = [0, 64], sizes = [8, 32], strides = [1, 1]} : vector<8x96xf32> to vector<8x32xf32>
    %356 = arith.mulf %354, %344 : vector<8x32xf32>
    %357 = arith.mulf %353, %352 : vector<8x32xf32>
    %358 = arith.addf %356, %357 : vector<8x32xf32>
    %359 = math.tanh %358 : vector<8x32xf32>
    %360 = arith.mulf %355, %359 : vector<8x32xf32>
    %361 = vector.extract_strided_slice %326 {offsets = [0, 32], sizes = [8, 32], strides = [1, 1]} : vector<8x64xf32> to vector<8x32xf32>
    %362 = vector.extract_strided_slice %343 {offsets = [0, 0], sizes = [8, 96], strides = [1, 1]} : vector<8x128xf32> to vector<8x96xf32>
    %363 = arith.negf %362 : vector<8x96xf32>
    %364 = math.exp %363 : vector<8x96xf32>
    %cst_63 = arith.constant 1.000000e+00 : f32
    %365 = vector.broadcast %cst_63 : f32 to vector<8x96xf32>
    %366 = arith.addf %365, %364 : vector<8x96xf32>
    %367 = arith.divf %365, %366 : vector<8x96xf32>
    %368 = vector.extract_strided_slice %343 {offsets = [0, 96], sizes = [8, 32], strides = [1, 1]} : vector<8x128xf32> to vector<8x32xf32>
    %369 = math.tanh %368 : vector<8x32xf32>
    %370 = vector.extract_strided_slice %367 {offsets = [0, 0], sizes = [8, 32], strides = [1, 1]} : vector<8x96xf32> to vector<8x32xf32>
    %371 = vector.extract_strided_slice %367 {offsets = [0, 32], sizes = [8, 32], strides = [1, 1]} : vector<8x96xf32> to vector<8x32xf32>
    %372 = vector.extract_strided_slice %367 {offsets = [0, 64], sizes = [8, 32], strides = [1, 1]} : vector<8x96xf32> to vector<8x32xf32>
    %373 = arith.mulf %371, %361 : vector<8x32xf32>
    %374 = arith.mulf %370, %369 : vector<8x32xf32>
    %375 = arith.addf %373, %374 : vector<8x32xf32>
    %376 = math.tanh %375 : vector<8x32xf32>
    %377 = arith.mulf %372, %376 : vector<8x32xf32>
    %378 = tpu.concatenate %360, %377 in 1 : vector<8x32xf32>, vector<8x32xf32> -> vector<8x64xf32>
    %379 = tpu.concatenate %358, %375 in 1 : vector<8x32xf32>, vector<8x32xf32> -> vector<8x64xf32>
    %380 = arith.addf %327, %378 : vector<8x64xf32>
    %c7_i32_64 = arith.constant 7 : i32
    %c8_i32_65 = arith.constant 8 : i32
    %381 = arith.muli %c7_i32_64, %c8_i32_65 : i32
    %382 = tpu.assume_multiple %381, 8 : i32
    %c7_i32_66 = arith.constant 7 : i32
    %383 = arith.subi %c7_i32_66, %c7_i32_64 : i32
    %c8_i32_67 = arith.constant 8 : i32
    %384 = arith.muli %383, %c8_i32_67 : i32
    %385 = tpu.assume_multiple %384, 8 : i32
    %cst_68 = arith.constant dense<0.000000e+00> : vector<8x256xf32>
    %386 = tpu.matmul %378, %8, %cst_68 {dimension_numbers = #tpu.dot_dimension_numbers<[1], [0], [0], [1], [0, 0, 1, 1], [], []>} : vector<8x64xf32>, vector<64x256xf32>, vector<8x256xf32> -> vector<8x256xf32>
    %387 = arith.index_cast %382 : i32 to index
    %c0_69 = arith.constant 0 : index
    %388 = vector.load %arg13[%387, %c0_69] : memref<64x256xf32, #tpu.memory_space<vmem>>, vector<8x256xf32>
    %389 = arith.index_cast %385 : i32 to index
    %c0_70 = arith.constant 0 : index
    %390 = vector.load %arg13[%389, %c0_70] : memref<64x256xf32, #tpu.memory_space<vmem>>, vector<8x256xf32>
    %391 = vector.extract_strided_slice %388 {offsets = [0, 0], sizes = [8, 128], strides = [1, 1]} : vector<8x256xf32> to vector<8x128xf32>
    %392 = vector.extract_strided_slice %386 {offsets = [0, 0], sizes = [8, 128], strides = [1, 1]} : vector<8x256xf32> to vector<8x128xf32>
    %393 = arith.addf %391, %392 : vector<8x128xf32>
    %394 = vector.extract_strided_slice %390 {offsets = [0, 128], sizes = [8, 128], strides = [1, 1]} : vector<8x256xf32> to vector<8x128xf32>
    %395 = vector.extract_strided_slice %386 {offsets = [0, 128], sizes = [8, 128], strides = [1, 1]} : vector<8x256xf32> to vector<8x128xf32>
    %396 = arith.addf %394, %395 : vector<8x128xf32>
    %397 = vector.extract_strided_slice %379 {offsets = [0, 0], sizes = [8, 32], strides = [1, 1]} : vector<8x64xf32> to vector<8x32xf32>
    %398 = vector.extract_strided_slice %393 {offsets = [0, 0], sizes = [8, 96], strides = [1, 1]} : vector<8x128xf32> to vector<8x96xf32>
    %399 = arith.negf %398 : vector<8x96xf32>
    %400 = math.exp %399 : vector<8x96xf32>
    %cst_71 = arith.constant 1.000000e+00 : f32
    %401 = vector.broadcast %cst_71 : f32 to vector<8x96xf32>
    %402 = arith.addf %401, %400 : vector<8x96xf32>
    %403 = arith.divf %401, %402 : vector<8x96xf32>
    %404 = vector.extract_strided_slice %393 {offsets = [0, 96], sizes = [8, 32], strides = [1, 1]} : vector<8x128xf32> to vector<8x32xf32>
    %405 = math.tanh %404 : vector<8x32xf32>
    %406 = vector.extract_strided_slice %403 {offsets = [0, 0], sizes = [8, 32], strides = [1, 1]} : vector<8x96xf32> to vector<8x32xf32>
    %407 = vector.extract_strided_slice %403 {offsets = [0, 32], sizes = [8, 32], strides = [1, 1]} : vector<8x96xf32> to vector<8x32xf32>
    %408 = vector.extract_strided_slice %403 {offsets = [0, 64], sizes = [8, 32], strides = [1, 1]} : vector<8x96xf32> to vector<8x32xf32>
    %409 = arith.mulf %407, %397 : vector<8x32xf32>
    %410 = arith.mulf %406, %405 : vector<8x32xf32>
    %411 = arith.addf %409, %410 : vector<8x32xf32>
    %412 = math.tanh %411 : vector<8x32xf32>
    %413 = arith.mulf %408, %412 : vector<8x32xf32>
    %414 = vector.extract_strided_slice %379 {offsets = [0, 32], sizes = [8, 32], strides = [1, 1]} : vector<8x64xf32> to vector<8x32xf32>
    %415 = vector.extract_strided_slice %396 {offsets = [0, 0], sizes = [8, 96], strides = [1, 1]} : vector<8x128xf32> to vector<8x96xf32>
    %416 = arith.negf %415 : vector<8x96xf32>
    %417 = math.exp %416 : vector<8x96xf32>
    %cst_72 = arith.constant 1.000000e+00 : f32
    %418 = vector.broadcast %cst_72 : f32 to vector<8x96xf32>
    %419 = arith.addf %418, %417 : vector<8x96xf32>
    %420 = arith.divf %418, %419 : vector<8x96xf32>
    %421 = vector.extract_strided_slice %396 {offsets = [0, 96], sizes = [8, 32], strides = [1, 1]} : vector<8x128xf32> to vector<8x32xf32>
    %422 = math.tanh %421 : vector<8x32xf32>
    %423 = vector.extract_strided_slice %420 {offsets = [0, 0], sizes = [8, 32], strides = [1, 1]} : vector<8x96xf32> to vector<8x32xf32>
    %424 = vector.extract_strided_slice %420 {offsets = [0, 32], sizes = [8, 32], strides = [1, 1]} : vector<8x96xf32> to vector<8x32xf32>
    %425 = vector.extract_strided_slice %420 {offsets = [0, 64], sizes = [8, 32], strides = [1, 1]} : vector<8x96xf32> to vector<8x32xf32>
    %426 = arith.mulf %424, %414 : vector<8x32xf32>
    %427 = arith.mulf %423, %422 : vector<8x32xf32>
    %428 = arith.addf %426, %427 : vector<8x32xf32>
    %429 = math.tanh %428 : vector<8x32xf32>
    %430 = arith.mulf %425, %429 : vector<8x32xf32>
    %431 = tpu.concatenate %413, %430 in 1 : vector<8x32xf32>, vector<8x32xf32> -> vector<8x64xf32>
    %432 = tpu.concatenate %411, %428 in 1 : vector<8x32xf32>, vector<8x32xf32> -> vector<8x64xf32>
    %433 = arith.addf %380, %431 : vector<8x64xf32>
    %c8_i32_73 = arith.constant 8 : i32
    %cst_74 = arith.constant 1.250000e-01 : f32
    %434 = vector.broadcast %cst_74 : f32 to vector<8x64xf32>
    %435 = arith.mulf %433, %434 : vector<8x64xf32>
    %c0_75 = arith.constant 0 : index
    %c0_76 = arith.constant 0 : index
    %436 = vector.load %arg4[%c0_75, %c0_76] : memref<64x32xf32, #tpu.memory_space<vmem>>, vector<64x32xf32>
    %cst_77 = arith.constant dense<0.000000e+00> : vector<8x32xf32>
    %437 = tpu.matmul %435, %436, %cst_77 {dimension_numbers = #tpu.dot_dimension_numbers<[1], [0], [0], [1], [0, 0, 1, 1], [], []>} : vector<8x64xf32>, vector<64x32xf32>, vector<8x32xf32> -> vector<8x32xf32>
    %c0_78 = arith.constant 0 : index
    %c0_79 = arith.constant 0 : index
    %438 = vector.load %arg5[%c0_78, %c0_79] : memref<1x32xf32, #tpu.memory_space<vmem>>, vector<1x32xf32>
    %439 = vector.broadcast %438 : vector<1x32xf32> to vector<8x32xf32>
    %440 = arith.mulf %437, %439 : vector<8x32xf32>
    %c0_80 = arith.constant 0 : index
    %c0_81 = arith.constant 0 : index
    %441 = vector.load %arg6[%c0_80, %c0_81] : memref<1x32xf32, #tpu.memory_space<vmem>>, vector<1x32xf32>
    %442 = vector.broadcast %441 : vector<1x32xf32> to vector<8x32xf32>
    %443 = arith.addf %440, %442 : vector<8x32xf32>
    %cst_82 = arith.constant 0.000000e+00 : f32
    %444 = vector.broadcast %cst_82 : f32 to vector<8x32xf32>
    %445 = arith.maximumf %443, %444 : vector<8x32xf32>
    %c0_83 = arith.constant 0 : index
    %c0_84 = arith.constant 0 : index
    %446 = vector.load %arg7[%c0_83, %c0_84] : memref<32x16xf32, #tpu.memory_space<vmem>>, vector<32x16xf32>
    %cst_85 = arith.constant dense<0.000000e+00> : vector<8x16xf32>
    %447 = tpu.matmul %445, %446, %cst_85 {dimension_numbers = #tpu.dot_dimension_numbers<[1], [0], [0], [1], [0, 0, 1, 1], [], []>} : vector<8x32xf32>, vector<32x16xf32>, vector<8x16xf32> -> vector<8x16xf32>
    %c0_86 = arith.constant 0 : index
    %c0_87 = arith.constant 0 : index
    %448 = vector.load %arg8[%c0_86, %c0_87] : memref<1x16xf32, #tpu.memory_space<vmem>>, vector<1x16xf32>
    %449 = vector.broadcast %448 : vector<1x16xf32> to vector<8x16xf32>
    %450 = arith.mulf %447, %449 : vector<8x16xf32>
    %c0_88 = arith.constant 0 : index
    %c0_89 = arith.constant 0 : index
    %451 = vector.load %arg9[%c0_88, %c0_89] : memref<1x16xf32, #tpu.memory_space<vmem>>, vector<1x16xf32>
    %452 = vector.broadcast %451 : vector<1x16xf32> to vector<8x16xf32>
    %453 = arith.addf %450, %452 : vector<8x16xf32>
    %cst_90 = arith.constant 0.000000e+00 : f32
    %454 = vector.broadcast %cst_90 : f32 to vector<8x16xf32>
    %455 = arith.maximumf %453, %454 : vector<8x16xf32>
    %c0_91 = arith.constant 0 : index
    %c0_92 = arith.constant 0 : index
    %456 = vector.load %arg10[%c0_91, %c0_92] : memref<16x3xf32, #tpu.memory_space<vmem>>, vector<16x3xf32>
    %cst_93 = arith.constant dense<0.000000e+00> : vector<8x3xf32>
    %457 = tpu.matmul %455, %456, %cst_93 {dimension_numbers = #tpu.dot_dimension_numbers<[1], [0], [0], [1], [0, 0, 1, 1], [], []>} : vector<8x16xf32>, vector<16x3xf32>, vector<8x3xf32> -> vector<8x3xf32>
    %c0_94 = arith.constant 0 : index
    %c0_95 = arith.constant 0 : index
    %458 = vector.load %arg11[%c0_94, %c0_95] : memref<1x3xf32, #tpu.memory_space<vmem>>, vector<1x3xf32>
    %459 = vector.broadcast %458 : vector<1x3xf32> to vector<8x3xf32>
    %460 = arith.addf %457, %459 : vector<8x3xf32>
    %c0_96 = arith.constant 0 : index
    %c0_97 = arith.constant 0 : index
    %461 = vector.load %arg12[%c0_96, %c0_97] : memref<8x3xf32, #tpu.memory_space<vmem>>, vector<8x3xf32>
    tpu.vector_store %arg12[%c0_96, %c0_97], %460 {strides = array<i32>} : memref<8x3xf32, #tpu.memory_space<vmem>>, vector<8x3xf32>,
    return
  }
}

</mosaic_0001>

<llo_original>
// kernel: basic_rnn_forward.3
$region0: #{basic_rnn_forward.3}
  #allocation0 [shape = 'u32[]', space=smem, size = 0x4, offset = 0x4, fixed_abs, tag = 'smem constant byte address 0x4 - core index']
  #allocation1 [shape = 'u32[144,128]{1,0:T(1,128)}', space=vmem, size = 0x12000, scoped, tag = 'internal scratch']
  #allocation2 [shape = 'f32[64,256]{1,0:T(8,128)}', space=vmem, size = 0x10000, scoped, tag = 'scratch operand']
  %s0 = inlined_call_operand.vmem [shape: f32[64,64], index: 0, kind: input, shape index: {}]
  %s1 = inlined_call_operand.vmem [shape: bf16[64,256], index: 1, kind: input, shape index: {}]
  %s2 = inlined_call_operand.vmem [shape: f32[64,256], index: 2, kind: input, shape index: {}]
  %s3 = inlined_call_operand.vmem [shape: f32[1,256], index: 3, kind: input, shape index: {}]
  %s4 = inlined_call_operand.vmem [shape: f32[64,32], index: 4, kind: input, shape index: {}]
  %s5 = inlined_call_operand.vmem [shape: f32[1,32], index: 5, kind: input, shape index: {}]
  %s6 = inlined_call_operand.vmem [shape: f32[1,32], index: 6, kind: input, shape index: {}]
  %s7 = inlined_call_operand.vmem [shape: f32[32,16], index: 7, kind: input, shape index: {}]
  %s8 = inlined_call_operand.vmem [shape: f32[1,16], index: 8, kind: input, shape index: {}]
  %s9 = inlined_call_operand.vmem [shape: f32[1,16], index: 9, kind: input, shape index: {}]
  %s10 = inlined_call_operand.vmem [shape: f32[16,3], index: 10, kind: input, shape index: {}]
  %s11 = inlined_call_operand.vmem [shape: f32[1,3], index: 11, kind: input, shape index: {}]
  %s12 = inlined_call_operand.vmem [shape: f32[8,3], index: 12, kind: output, shape index: {}]
  %s13 = sld [smem:[#allocation0]]
  $region58: #{basic_rnn_forward.3} parent=0
    _
  %s15 = ssub.s32 1, %s13
  %s16 = scalar_select 0, %s15, %s13
  // Predicated region
  $region2: #{basic_rnn_forward.3} parent=0 // pred_check
    _
  $region3: #{basic_rnn_forward.3} parent=0 // pred_check_branch
    %18 = sbr.rel (0) target = $region5
  $region4: #{basic_rnn_forward.3} parent=0 // pred_region
    _
  $region5: #{basic_rnn_forward.3} parent=0 // pred_fallthru
    _
  // Predicated region
  $region6: #{basic_rnn_forward.3} parent=0 // pred_check
    _
  $region7: #{basic_rnn_forward.3} parent=0 // pred_check_branch
    %20 = sbr.rel (0) target = $region9
  $region8: #{basic_rnn_forward.3} parent=0 // pred_region
    _
  $region9: #{basic_rnn_forward.3} parent=0 // pred_fallthru
    _
  // Predicated region
  $region10: #{basic_rnn_forward.3} parent=0 // pred_check
    _
  $region11: #{basic_rnn_forward.3} parent=0 // pred_check_branch
    %22 = sbr.rel (0) target = $region13
  $region12: #{basic_rnn_forward.3} parent=0 // pred_region
    _
  $region13: #{basic_rnn_forward.3} parent=0 // pred_fallthru
    _
  // Predicated region
  $region14: #{basic_rnn_forward.3} parent=0 // pred_check
    _
  $region15: #{basic_rnn_forward.3} parent=0 // pred_check_branch
    %24 = sbr.rel (0) target = $region17
  $region16: #{basic_rnn_forward.3} parent=0 // pred_region
    _
  $region17: #{basic_rnn_forward.3} parent=0 // pred_fallthru
    _
  // Predicated region
  $region18: #{basic_rnn_forward.3} parent=0 // pred_check
    _
  $region19: #{basic_rnn_forward.3} parent=0 // pred_check_branch
    %26 = sbr.rel (0) target = $region21
  $region20: #{basic_rnn_forward.3} parent=0 // pred_region
    _
  $region21: #{basic_rnn_forward.3} parent=0 // pred_fallthru
    _
  // Predicated region
  $region22: #{basic_rnn_forward.3} parent=0 // pred_check
    _
  $region23: #{basic_rnn_forward.3} parent=0 // pred_check_branch
    %28 = sbr.rel (0) target = $region25
  $region24: #{basic_rnn_forward.3} parent=0 // pred_region
    _
  $region25: #{basic_rnn_forward.3} parent=0 // pred_fallthru
    _
  // Predicated region
  $region26: #{basic_rnn_forward.3} parent=0 // pred_check
    _
  $region27: #{basic_rnn_forward.3} parent=0 // pred_check_branch
    %30 = sbr.rel (0) target = $region29
  $region28: #{basic_rnn_forward.3} parent=0 // pred_region
    _
  $region29: #{basic_rnn_forward.3} parent=0 // pred_fallthru
    _
  // Predicated region
  $region30: #{basic_rnn_forward.3} parent=0 // pred_check
    _
  $region31: #{basic_rnn_forward.3} parent=0 // pred_check_branch
    %32 = sbr.rel (0) target = $region33
  $region32: #{basic_rnn_forward.3} parent=0 // pred_region
    _
  $region33: #{basic_rnn_forward.3} parent=0 // pred_fallthru
    _
  // Predicated region
  $region34: #{basic_rnn_forward.3} parent=0 // pred_check
    _
  $region35: #{basic_rnn_forward.3} parent=0 // pred_check_branch
    %34 = sbr.rel (0) target = $region37
  $region36: #{basic_rnn_forward.3} parent=0 // pred_region
    _
  $region37: #{basic_rnn_forward.3} parent=0 // pred_fallthru
    _
  // Predicated region
  $region38: #{basic_rnn_forward.3} parent=0 // pred_check
    _
  $region39: #{basic_rnn_forward.3} parent=0 // pred_check_branch
    %36 = sbr.rel (0) target = $region41
  $region40: #{basic_rnn_forward.3} parent=0 // pred_region
    _
  $region41: #{basic_rnn_forward.3} parent=0 // pred_fallthru
    _
  // Predicated region
  $region42: #{basic_rnn_forward.3} parent=0 // pred_check
    _
  $region43: #{basic_rnn_forward.3} parent=0 // pred_check_branch
    %38 = sbr.rel (0) target = $region45
  $region44: #{basic_rnn_forward.3} parent=0 // pred_region
    _
  $region45: #{basic_rnn_forward.3} parent=0 // pred_fallthru
    _
  // Predicated region
  $region46: #{basic_rnn_forward.3} parent=0 // pred_check
    _
  $region47: #{basic_rnn_forward.3} parent=0 // pred_check_branch
    %40 = sbr.rel (0) target = $region49
  $region48: #{basic_rnn_forward.3} parent=0 // pred_region
    _
  $region49: #{basic_rnn_forward.3} parent=0 // pred_fallthru
    _
  %v42 = vld [vmem:[%s0] sm:$0xff]
  %v43 = vld [vmem:[%s0 + $0x8] sm:$0xff]
  %v44 = vld [vmem:[%s0 + $0x10] sm:$0xff]
  %v45 = vld [vmem:[%s0 + $0x18] sm:$0xff]
  %v46 = vld [vmem:[%s0 + $0x20] sm:$0xff]
  %v47 = vld [vmem:[%s0 + $0x28] sm:$0xff]
  %v48 = vld [vmem:[%s0 + $0x30] sm:$0xff]
  %v49 = vld [vmem:[%s0 + $0x38] sm:$0xff]
  %v50 = vpack.c.bf16 %v43, %v42
  %v51 = vpack.c.bf16 %v45, %v44
  %v52 = vpack.c.bf16 %v47, %v46
  %v53 = vpack.c.bf16 %v49, %v48
  %v54 = vld [vmem:[%s1] sm:$0xff]
  %v55 = vld [vmem:[%s1 + $0x8] sm:$0xff]
  %v56 = vld [vmem:[%s1 + $0x10] sm:$0xff]
  %v57 = vld [vmem:[%s1 + $0x18] sm:$0xff]
  %v58 = vld [vmem:[%s1 + $0x20] sm:$0xff]
  %v59 = vld [vmem:[%s1 + $0x28] sm:$0xff]
  %v60 = vld [vmem:[%s1 + $0x30] sm:$0xff]
  %v61 = vld [vmem:[%s1 + $0x38] sm:$0xff]
  %v62 = vld [vmem:[%s3] sm:$0x3]
  %v64 = vlaneseq
  %v65 = vshrl.u32 %v64, 7
  %v66 = vsub.s32 0, %v65
  %v67 = vrot.slane %v62, %v66
  %v68 = vlaneseq
  %v69 = vshrl.u32 %v68, 7
  %v70 = vsub.s32 1, %v69
  %v71 = vrot.slane %v62, %v70
  %v82 = vunpack.c.l.b16 %v54
  %v83 = vunpack.c.h.b16 %v54
  %v84 = vunpack.c.l.b16 %v55
  %v85 = vunpack.c.h.b16 %v55
  %v86 = vunpack.c.l.b16 %v56
  %v87 = vunpack.c.h.b16 %v56
  %v88 = vunpack.c.l.b16 %v57
  %v89 = vunpack.c.h.b16 %v57
  %v90 = vunpack.c.l.b16 %v58
  %v91 = vunpack.c.h.b16 %v58
  %v92 = vunpack.c.l.b16 %v59
  %v93 = vunpack.c.h.b16 %v59
  %v94 = vunpack.c.l.b16 %v60
  %v95 = vunpack.c.h.b16 %v60
  %v96 = vunpack.c.l.b16 %v61
  %v97 = vunpack.c.h.b16 %v61
  %v98 = vpack.c.b16 %v84, %v82
  %v99 = vpack.c.b16 %v85, %v83
  %v100 = vpack.c.b16 %v88, %v86
  %v101 = vpack.c.b16 %v89, %v87
  %v102 = vpack.c.b16 %v92, %v90
  %v103 = vpack.c.b16 %v93, %v91
  %v104 = vpack.c.b16 %v96, %v94
  %v105 = vpack.c.b16 %v97, %v95
  %vm114 = vcmask 523264
  %v116 = vsel %vm114, %v50, 0
  %v119 = vsel %vm114, %v51, 0
  %v122 = vsel %vm114, %v52, 0
  %v125 = vsel %vm114, %v53, 0
  %127 = vmatprep.subr.bf16.mxu0 0
  %128 = vmatpush1.bf16.msra.mxu0 0
  %129 = vmatprep.subr.bf16.mxu0 0
  %130 = vmatpush1.bf16.msra.mxu0 0
  %131 = vmatprep.subr.bf16.mxu0 0
  %132 = vmatpush1.bf16.msra.mxu0 0
  %133 = vmatprep.subr.bf16.mxu0 0
  %134 = vmatpush1.bf16.msra.mxu0 0
  %135 = vmatprep.subr.bf16.mxu0 %v105
  %136 = vmatpush1.bf16.msra.mxu0 %v104
  %137 = vmatprep.subr.bf16.mxu0 %v103
  %138 = vmatpush1.bf16.msra.mxu0 %v102
  %139 = vmatprep.subr.bf16.mxu0 %v101
  %140 = vmatpush1.bf16.msra.mxu0 %v100
  %141 = vmatprep.subr.bf16.mxu0 %v99
  %142 = vmatpush1.bf16.msra.mxu0 %v98
  %143 = vmatprep.subr.bf16.mxu0 0
  %144 = vmatpush2.bf16.msra.mxu0 0
  %145 = vmatprep.subr.bf16.mxu0 0
  %146 = vmatpush2.bf16.msra.mxu0 0
  %147 = vmatprep.subr.bf16.mxu0 0
  %148 = vmatpush2.bf16.msra.mxu0 0
  %149 = vmatprep.subr.bf16.mxu0 0
  %150 = vmatpush2.bf16.msra.mxu0 0
  %151 = vmatprep.subr.bf16.mxu0 0
  %152 = vmatpush2.bf16.msra.mxu0 0
  %153 = vmatprep.subr.bf16.mxu0 0
  %154 = vmatpush2.bf16.msra.mxu0 0
  %155 = vmatprep.subr.bf16.mxu0 0
  %156 = vmatpush2.bf16.msra.mxu0 0
  %157 = vmatprep.subr.bf16.mxu0 0
  %158 = vmatpush2.bf16.msra.mxu0 0
  %159 = vmatprep.mubr.bf16.mxu0 0
  %160 = vmatmul.mubr.bf16.gmra.mxu0 %v116
  %v161 = vpop.f32.mrf.mxu0
  %v162 = vadd.f32 %v67, %v161
  %v163 = vpop.f32.mrf.mxu0
  %v164 = vadd.f32 %v71, %v163
  %v165 = vpop.f32.mrf.mxu0
  %v166 = vadd.f32 %v67, %v165
  %v167 = vpop.f32.mrf.mxu0
  %v168 = vadd.f32 %v71, %v167
  %169 = vmatprep.mubr.bf16.mxu0 0
  %170 = vmatmul.mubr.bf16.gmra.mxu0 %v119
  %v171 = vpop.f32.mrf.mxu0
  %v172 = vadd.f32 %v67, %v171
  %v173 = vpop.f32.mrf.mxu0
  %v174 = vadd.f32 %v71, %v173
  %v175 = vpop.f32.mrf.mxu0
  %v176 = vadd.f32 %v67, %v175
  %v177 = vpop.f32.mrf.mxu0
  %v178 = vadd.f32 %v71, %v177
  %179 = vmatprep.mubr.bf16.mxu0 0
  %180 = vmatmul.mubr.bf16.gmra.mxu0 %v122
  %v181 = vpop.f32.mrf.mxu0
  %v182 = vadd.f32 %v67, %v181
  %v183 = vpop.f32.mrf.mxu0
  %v184 = vadd.f32 %v71, %v183
  %v185 = vpop.f32.mrf.mxu0
  %v186 = vadd.f32 %v67, %v185
  %v187 = vpop.f32.mrf.mxu0
  %v188 = vadd.f32 %v71, %v187
  %189 = vmatprep.mubr.bf16.mxu0 0
  %190 = vmatmul.mubr.bf16.gmra.mxu0 %v125
  %v191 = vpop.f32.mrf.mxu0
  %v192 = vadd.f32 %v67, %v191
  %v193 = vpop.f32.mrf.mxu0
  %v194 = vadd.f32 %v71, %v193
  %v195 = vpop.f32.mrf.mxu0
  %v196 = vadd.f32 %v67, %v195
  %v197 = vpop.f32.mrf.mxu0
  %v198 = vadd.f32 %v71, %v197
  %199 = vdwg.mxu0
  %200 = vst [vmem:[#allocation2] sm:$0xff] %v162
  %201 = vst [vmem:[#allocation2 + $0x8] sm:$0xff] %v164
  %202 = vst [vmem:[#allocation2 + $0x10] sm:$0xff] %v166
  %203 = vst [vmem:[#allocation2 + $0x18] sm:$0xff] %v168
  %204 = vst [vmem:[#allocation2 + $0x20] sm:$0xff] %v172
  %205 = vst [vmem:[#allocation2 + $0x28] sm:$0xff] %v174
  %206 = vst [vmem:[#allocation2 + $0x30] sm:$0xff] %v176
  %207 = vst [vmem:[#allocation2 + $0x38] sm:$0xff] %v178
  %208 = vst [vmem:[#allocation2 + $0x40] sm:$0xff] %v182
  %209 = vst [vmem:[#allocation2 + $0x48] sm:$0xff] %v184
  %210 = vst [vmem:[#allocation2 + $0x50] sm:$0xff] %v186
  %211 = vst [vmem:[#allocation2 + $0x58] sm:$0xff] %v188
  %212 = vst [vmem:[#allocation2 + $0x60] sm:$0xff] %v192
  %213 = vst [vmem:[#allocation2 + $0x68] sm:$0xff] %v194
  %214 = vst [vmem:[#allocation2 + $0x70] sm:$0xff] %v196
  %215 = vst [vmem:[#allocation2 + $0x78] sm:$0xff] %v198
  %v216 = vld [vmem:[%s2] sm:$0xff]
  %v217 = vld [vmem:[%s2 + $0x8] sm:$0xff]
  %v218 = vld [vmem:[%s2 + $0x10] sm:$0xff]
  %v219 = vld [vmem:[%s2 + $0x18] sm:$0xff]
  %v220 = vld [vmem:[%s2 + $0x20] sm:$0xff]
  %v221 = vld [vmem:[%s2 + $0x28] sm:$0xff]
  %v222 = vld [vmem:[%s2 + $0x30] sm:$0xff]
  %v223 = vld [vmem:[%s2 + $0x38] sm:$0xff]
  %v224 = vld [vmem:[%s2 + $0x40] sm:$0xff]
  %v225 = vld [vmem:[%s2 + $0x48] sm:$0xff]
  %v226 = vld [vmem:[%s2 + $0x50] sm:$0xff]
  %v227 = vld [vmem:[%s2 + $0x58] sm:$0xff]
  %v228 = vld [vmem:[%s2 + $0x60] sm:$0xff]
  %v229 = vld [vmem:[%s2 + $0x68] sm:$0xff]
  %v230 = vld [vmem:[%s2 + $0x70] sm:$0xff]
  %v231 = vld [vmem:[%s2 + $0x78] sm:$0xff]
  %v233 = vsel %vm114, 0.0, 0
  %235 = vmatprep.subr.mxu0 0.0
  %236 = vmatpush1.msra.mxu0 0.0
  %237 = vmatprep.subr.mxu0 0.0
  %238 = vmatpush1.msra.mxu0 0.0
  %239 = vmatprep.subr.mxu0 0.0
  %240 = vmatpush1.msra.mxu0 0.0
  %241 = vmatprep.subr.mxu0 0.0
  %242 = vmatpush1.msra.mxu0 0.0
  %243 = vmatprep.subr.mxu0 0.0
  %244 = vmatpush1.msra.mxu0 0.0
  %245 = vmatprep.subr.mxu0 0.0
  %246 = vmatpush1.msra.mxu0 0.0
  %247 = vmatprep.subr.mxu0 0.0
  %248 = vmatpush1.msra.mxu0 0.0
  %249 = vmatprep.subr.mxu0 0.0
  %250 = vmatpush1.msra.mxu0 0.0
  %251 = vmatprep.subr.mxu0 %v231
  %252 = vmatpush1.msra.mxu0 %v230
  %253 = vmatprep.subr.mxu0 %v229
  %254 = vmatpush1.msra.mxu0 %v228
  %255 = vmatprep.subr.mxu0 %v227
  %256 = vmatpush1.msra.mxu0 %v226
  %257 = vmatprep.subr.mxu0 %v225
  %258 = vmatpush1.msra.mxu0 %v224
  %259 = vmatprep.subr.mxu0 %v223
  %260 = vmatpush1.msra.mxu0 %v222
  %261 = vmatprep.subr.mxu0 %v221
  %262 = vmatpush1.msra.mxu0 %v220
  %263 = vmatprep.subr.mxu0 %v219
  %264 = vmatpush1.msra.mxu0 %v218
  %265 = vmatprep.subr.mxu0 %v217
  %266 = vmatpush1.msra.mxu0 %v216
  %267 = vmatprep.subr.mxu0 0.0
  %268 = vmatpush2.msra.mxu0 0.0
  %269 = vmatprep.subr.mxu0 0.0
  %270 = vmatpush2.msra.mxu0 0.0
  %271 = vmatprep.subr.mxu0 0.0
  %272 = vmatpush2.msra.mxu0 0.0
  %273 = vmatprep.subr.mxu0 0.0
  %274 = vmatpush2.msra.mxu0 0.0
  %275 = vmatprep.subr.mxu0 0.0
  %276 = vmatpush2.msra.mxu0 0.0
  %277 = vmatprep.subr.mxu0 0.0
  %278 = vmatpush2.msra.mxu0 0.0
  %279 = vmatprep.subr.mxu0 0.0
  %280 = vmatpush2.msra.mxu0 0.0
  %281 = vmatprep.subr.mxu0 0.0
  %282 = vmatpush2.msra.mxu0 0.0
  %283 = vmatprep.subr.mxu0 0.0
  %284 = vmatpush2.msra.mxu0 0.0
  %285 = vmatprep.subr.mxu0 0.0
  %286 = vmatpush2.msra.mxu0 0.0
  %287 = vmatprep.subr.mxu0 0.0
  %288 = vmatpush2.msra.mxu0 0.0
  %289 = vmatprep.subr.mxu0 0.0
  %290 = vmatpush2.msra.mxu0 0.0
  %291 = vmatprep.subr.mxu0 0.0
  %292 = vmatpush2.msra.mxu0 0.0
  %293 = vmatprep.subr.mxu0 0.0
  %294 = vmatpush2.msra.mxu0 0.0
  %295 = vmatprep.subr.mxu0 0.0
  %296 = vmatpush2.msra.mxu0 0.0
  %297 = vmatprep.subr.mxu0 0.0
  %298 = vmatpush2.msra.mxu0 0.0
  %299 = vmatprep.mubr.f32.mxu0 0.0
  %300 = vmatmul.mubr.f32.gmra.mxu0 %v233
  %v301 = vpop.f32.mrf.mxu0
  %v302 = vadd.f32 0.0, %v301
  %v303 = vpop.f32.mrf.mxu0
  %v304 = vadd.f32 0.0, %v303
  %305 = vdwg.mxu0
  %s306 = smul.u32 0, 2
  %s307 = smul.addr %s306, 8
  %s308 = scalar_lea.vmem [#allocation2], %s307
  %v309 = vld [vmem:[%s308] sm:$0xff]
  %v310 = vld [vmem:[%s308 + $0x8] sm:$0xff]
  %s311 = smul.u32 7, 2
  %s312 = smul.addr %s311, 8
  %s313 = scalar_lea.vmem [#allocation2], %s312
  %v314 = vld [vmem:[%s313] sm:$0xff]
  %v315 = vld [vmem:[%s313 + $0x8] sm:$0xff]
  %v316 = vadd.f32 %v309, %v302
  %v317 = vadd.f32 %v315, %v304
  %v318 = vxor.u32 %v316, 2147483648
  %v319 = vmul.f32 %v318, 1.442695
  %v320 = vpow.pop %v319
  %v321 = vadd.f32 %v320, 1.0
  %v322 = vrcp.pop %v321
  %v323 = vmul.f32 1.0, %v322
  %v324 = vtanh.pop %v316
  %v325 = vmul.f32 %v323, 0.0
  %327 = vrot.lane.b32.xlu0 %v324, 32
  %v328 = vpop.permute.xlu0 %327
  %v330 = vmul.f32 %v323, %v328
  %332 = vrot.lane.b32.xlu0 %v330, 32
  %v333 = vpop.permute.xlu0 %332
  %v335 = vadd.f32 %v325, %v333
  %v336 = vtanh.pop %v335
  %338 = vrot.lane.b32.xlu0 %v336, 32
  %v339 = vpop.permute.xlu0 %338
  %v341 = vmul.f32 %v323, %v339
  %v342 = vxor.u32 %v317, 2147483648
  %v343 = vmul.f32 %v342, 1.442695
  %v344 = vpow.pop %v343
  %v345 = vadd.f32 %v344, 1.0
  %v346 = vrcp.pop %v345
  %v347 = vmul.f32 1.0, %v346
  %v348 = vtanh.pop %v317
  %v349 = vmul.f32 %v347, 0.0
  %351 = vrot.lane.b32.xlu0 %v348, 32
  %v352 = vpop.permute.xlu0 %351
  %v354 = vmul.f32 %v347, %v352
  %356 = vrot.lane.b32.xlu0 %v354, 32
  %v357 = vpop.permute.xlu0 %356
  %v359 = vadd.f32 %v349, %v357
  %v360 = vtanh.pop %v359
  %362 = vrot.lane.b32.xlu0 %v360, 32
  %v363 = vpop.permute.xlu0 %362
  %v365 = vmul.f32 %v347, %v363
  %367 = vrot.lane.b32.xlu0 %v341, 64
  %v368 = vpop.permute.xlu0 %367
  %371 = vrot.lane.b32.xlu0 %v365, 96
  %v372 = vpop.permute.xlu0 %371
  %vm374 = vcmask 261120
  %v375 = vsel %vm374, %v368, %v372
  %377 = vrot.lane.b32.xlu0 %v335, 96
  %v378 = vpop.permute.xlu0 %377
  %v380 = vsel %vm374, %v378, %v359
  %v381 = vadd.f32 %v375, 0.0
  %v383 = vsel %vm114, %v375, 0
  %385 = vmatprep.subr.mxu0 0.0
  %386 = vmatpush1.msra.mxu0 0.0
  %387 = vmatprep.subr.mxu0 0.0
  %388 = vmatpush1.msra.mxu0 0.0
  %389 = vmatprep.subr.mxu0 0.0
  %390 = vmatpush1.msra.mxu0 0.0
  %391 = vmatprep.subr.mxu0 0.0
  %392 = vmatpush1.msra.mxu0 0.0
  %393 = vmatprep.subr.mxu0 0.0
  %394 = vmatpush1.msra.mxu0 0.0
  %395 = vmatprep.subr.mxu0 0.0
  %396 = vmatpush1.msra.mxu0 0.0
  %397 = vmatprep.subr.mxu0 0.0
  %398 = vmatpush1.msra.mxu0 0.0
  %399 = vmatprep.subr.mxu0 0.0
  %400 = vmatpush1.msra.mxu0 0.0
  %401 = vmatprep.subr.mxu0 %v231
  %402 = vmatpush1.msra.mxu0 %v230
  %403 = vmatprep.subr.mxu0 %v229
  %404 = vmatpush1.msra.mxu0 %v228
  %405 = vmatprep.subr.mxu0 %v227
  %406 = vmatpush1.msra.mxu0 %v226
  %407 = vmatprep.subr.mxu0 %v225
  %408 = vmatpush1.msra.mxu0 %v224
  %409 = vmatprep.subr.mxu0 %v223
  %410 = vmatpush1.msra.mxu0 %v222
  %411 = vmatprep.subr.mxu0 %v221
  %412 = vmatpush1.msra.mxu0 %v220
  %413 = vmatprep.subr.mxu0 %v219
  %414 = vmatpush1.msra.mxu0 %v218
  %415 = vmatprep.subr.mxu0 %v217
  %416 = vmatpush1.msra.mxu0 %v216
  %417 = vmatprep.subr.mxu0 0.0
  %418 = vmatpush2.msra.mxu0 0.0
  %419 = vmatprep.subr.mxu0 0.0
  %420 = vmatpush2.msra.mxu0 0.0
  %421 = vmatprep.subr.mxu0 0.0
  %422 = vmatpush2.msra.mxu0 0.0
  %423 = vmatprep.subr.mxu0 0.0
  %424 = vmatpush2.msra.mxu0 0.0
  %425 = vmatprep.subr.mxu0 0.0
  %426 = vmatpush2.msra.mxu0 0.0
  %427 = vmatprep.subr.mxu0 0.0
  %428 = vmatpush2.msra.mxu0 0.0
  %429 = vmatprep.subr.mxu0 0.0
  %430 = vmatpush2.msra.mxu0 0.0
  %431 = vmatprep.subr.mxu0 0.0
  %432 = vmatpush2.msra.mxu0 0.0
  %433 = vmatprep.subr.mxu0 0.0
  %434 = vmatpush2.msra.mxu0 0.0
  %435 = vmatprep.subr.mxu0 0.0
  %436 = vmatpush2.msra.mxu0 0.0
  %437 = vmatprep.subr.mxu0 0.0
  %438 = vmatpush2.msra.mxu0 0.0
  %439 = vmatprep.subr.mxu0 0.0
  %440 = vmatpush2.msra.mxu0 0.0
  %441 = vmatprep.subr.mxu0 0.0
  %442 = vmatpush2.msra.mxu0 0.0
  %443 = vmatprep.subr.mxu0 0.0
  %444 = vmatpush2.msra.mxu0 0.0
  %445 = vmatprep.subr.mxu0 0.0
  %446 = vmatpush2.msra.mxu0 0.0
  %447 = vmatprep.subr.mxu0 0.0
  %448 = vmatpush2.msra.mxu0 0.0
  %449 = vmatprep.mubr.f32.mxu0 0.0
  %450 = vmatmul.mubr.f32.gmra.mxu0 %v383
  %v451 = vpop.f32.mrf.mxu0
  %v452 = vadd.f32 0.0, %v451
  %v453 = vpop.f32.mrf.mxu0
  %v454 = vadd.f32 0.0, %v453
  %455 = vdwg.mxu0
  %s456 = smul.u32 1, 2
  %s457 = smul.addr %s456, 8
  %s458 = scalar_lea.vmem [#allocation2], %s457
  %v459 = vld [vmem:[%s458] sm:$0xff]
  %v460 = vld [vmem:[%s458 + $0x8] sm:$0xff]
  %s461 = smul.u32 6, 2
  %s462 = smul.addr %s461, 8
  %s463 = scalar_lea.vmem [#allocation2], %s462
  %v464 = vld [vmem:[%s463] sm:$0xff]
  %v465 = vld [vmem:[%s463 + $0x8] sm:$0xff]
  %v466 = vadd.f32 %v459, %v452
  %v467 = vadd.f32 %v465, %v454
  %v468 = vxor.u32 %v466, 2147483648
  %v469 = vmul.f32 %v468, 1.442695
  %v470 = vpow.pop %v469
  %v471 = vadd.f32 %v470, 1.0
  %v472 = vrcp.pop %v471
  %v473 = vmul.f32 1.0, %v472
  %v474 = vtanh.pop %v466
  %476 = vrot.lane.b32.xlu0 %v380, 32
  %v477 = vpop.permute.xlu0 %476
  %v479 = vmul.f32 %v473, %v477
  %481 = vrot.lane.b32.xlu0 %v474, 32
  %v482 = vpop.permute.xlu0 %481
  %v484 = vmul.f32 %v473, %v482
  %486 = vrot.lane.b32.xlu0 %v484, 32
  %v487 = vpop.permute.xlu0 %486
  %v489 = vadd.f32 %v479, %v487
  %v490 = vtanh.pop %v489
  %492 = vrot.lane.b32.xlu0 %v490, 32
  %v493 = vpop.permute.xlu0 %492
  %v495 = vmul.f32 %v473, %v493
  %v496 = vxor.u32 %v467, 2147483648
  %v497 = vmul.f32 %v496, 1.442695
  %v498 = vpow.pop %v497
  %v499 = vadd.f32 %v498, 1.0
  %v500 = vrcp.pop %v499
  %v501 = vmul.f32 1.0, %v500
  %v502 = vtanh.pop %v467
  %v503 = vmul.f32 %v501, %v380
  %505 = vrot.lane.b32.xlu0 %v502, 32
  %v506 = vpop.permute.xlu0 %505
  %v508 = vmul.f32 %v501, %v506
  %510 = vrot.lane.b32.xlu0 %v508, 32
  %v511 = vpop.permute.xlu0 %510
  %v513 = vadd.f32 %v503, %v511
  %v514 = vtanh.pop %v513
  %516 = vrot.lane.b32.xlu0 %v514, 32
  %v517 = vpop.permute.xlu0 %516
  %v519 = vmul.f32 %v501, %v517
  %521 = vrot.lane.b32.xlu0 %v495, 64
  %v522 = vpop.permute.xlu0 %521
  %525 = vrot.lane.b32.xlu0 %v519, 96
  %v526 = vpop.permute.xlu0 %525
  %v528 = vsel %vm374, %v522, %v526
  %530 = vrot.lane.b32.xlu0 %v489, 96
  %v531 = vpop.permute.xlu0 %530
  %v533 = vsel %vm374, %v531, %v513
  %v534 = vadd.f32 %v381, %v528
  %v536 = vsel %vm114, %v528, 0
  %538 = vmatprep.subr.mxu0 0.0
  %539 = vmatpush1.msra.mxu0 0.0
  %540 = vmatprep.subr.mxu0 0.0
  %541 = vmatpush1.msra.mxu0 0.0
  %542 = vmatprep.subr.mxu0 0.0
  %543 = vmatpush1.msra.mxu0 0.0
  %544 = vmatprep.subr.mxu0 0.0
  %545 = vmatpush1.msra.mxu0 0.0
  %546 = vmatprep.subr.mxu0 0.0
  %547 = vmatpush1.msra.mxu0 0.0
  %548 = vmatprep.subr.mxu0 0.0
  %549 = vmatpush1.msra.mxu0 0.0
  %550 = vmatprep.subr.mxu0 0.0
  %551 = vmatpush1.msra.mxu0 0.0
  %552 = vmatprep.subr.mxu0 0.0
  %553 = vmatpush1.msra.mxu0 0.0
  %554 = vmatprep.subr.mxu0 %v231
  %555 = vmatpush1.msra.mxu0 %v230
  %556 = vmatprep.subr.mxu0 %v229
  %557 = vmatpush1.msra.mxu0 %v228
  %558 = vmatprep.subr.mxu0 %v227
  %559 = vmatpush1.msra.mxu0 %v226
  %560 = vmatprep.subr.mxu0 %v225
  %561 = vmatpush1.msra.mxu0 %v224
  %562 = vmatprep.subr.mxu0 %v223
  %563 = vmatpush1.msra.mxu0 %v222
  %564 = vmatprep.subr.mxu0 %v221
  %565 = vmatpush1.msra.mxu0 %v220
  %566 = vmatprep.subr.mxu0 %v219
  %567 = vmatpush1.msra.mxu0 %v218
  %568 = vmatprep.subr.mxu0 %v217
  %569 = vmatpush1.msra.mxu0 %v216
  %570 = vmatprep.subr.mxu0 0.0
  %571 = vmatpush2.msra.mxu0 0.0
  %572 = vmatprep.subr.mxu0 0.0
  %573 = vmatpush2.msra.mxu0 0.0
  %574 = vmatprep.subr.mxu0 0.0
  %575 = vmatpush2.msra.mxu0 0.0
  %576 = vmatprep.subr.mxu0 0.0
  %577 = vmatpush2.msra.mxu0 0.0
  %578 = vmatprep.subr.mxu0 0.0
  %579 = vmatpush2.msra.mxu0 0.0
  %580 = vmatprep.subr.mxu0 0.0
  %581 = vmatpush2.msra.mxu0 0.0
  %582 = vmatprep.subr.mxu0 0.0
  %583 = vmatpush2.msra.mxu0 0.0
  %584 = vmatprep.subr.mxu0 0.0
  %585 = vmatpush2.msra.mxu0 0.0
  %586 = vmatprep.subr.mxu0 0.0
  %587 = vmatpush2.msra.mxu0 0.0
  %588 = vmatprep.subr.mxu0 0.0
  %589 = vmatpush2.msra.mxu0 0.0
  %590 = vmatprep.subr.mxu0 0.0
  %591 = vmatpush2.msra.mxu0 0.0
  %592 = vmatprep.subr.mxu0 0.0
  %593 = vmatpush2.msra.mxu0 0.0
  %594 = vmatprep.subr.mxu0 0.0
  %595 = vmatpush2.msra.mxu0 0.0
  %596 = vmatprep.subr.mxu0 0.0
  %597 = vmatpush2.msra.mxu0 0.0
  %598 = vmatprep.subr.mxu0 0.0
  %599 = vmatpush2.msra.mxu0 0.0
  %600 = vmatprep.subr.mxu0 0.0
  %601 = vmatpush2.msra.mxu0 0.0
  %602 = vmatprep.mubr.f32.mxu0 0.0
  %603 = vmatmul.mubr.f32.gmra.mxu0 %v536
  %v604 = vpop.f32.mrf.mxu0
  %v605 = vadd.f32 0.0, %v604
  %v606 = vpop.f32.mrf.mxu0
  %v607 = vadd.f32 0.0, %v606
  %608 = vdwg.mxu0
  %s609 = smul.u32 2, 2
  %s610 = smul.addr %s609, 8
  %s611 = scalar_lea.vmem [#allocation2], %s610
  %v612 = vld [vmem:[%s611] sm:$0xff]
  %v613 = vld [vmem:[%s611 + $0x8] sm:$0xff]
  %s614 = smul.u32 5, 2
  %s615 = smul.addr %s614, 8
  %s616 = scalar_lea.vmem [#allocation2], %s615
  %v617 = vld [vmem:[%s616] sm:$0xff]
  %v618 = vld [vmem:[%s616 + $0x8] sm:$0xff]
  %v619 = vadd.f32 %v612, %v605
  %v620 = vadd.f32 %v618, %v607
  %v621 = vxor.u32 %v619, 2147483648
  %v622 = vmul.f32 %v621, 1.442695
  %v623 = vpow.pop %v622
  %v624 = vadd.f32 %v623, 1.0
  %v625 = vrcp.pop %v624
  %v626 = vmul.f32 1.0, %v625
  %v627 = vtanh.pop %v619
  %629 = vrot.lane.b32.xlu0 %v533, 32
  %v630 = vpop.permute.xlu0 %629
  %v632 = vmul.f32 %v626, %v630
  %634 = vrot.lane.b32.xlu0 %v627, 32
  %v635 = vpop.permute.xlu0 %634
  %v637 = vmul.f32 %v626, %v635
  %639 = vrot.lane.b32.xlu0 %v637, 32
  %v640 = vpop.permute.xlu0 %639
  %v642 = vadd.f32 %v632, %v640
  %v643 = vtanh.pop %v642
  %645 = vrot.lane.b32.xlu0 %v643, 32
  %v646 = vpop.permute.xlu0 %645
  %v648 = vmul.f32 %v626, %v646
  %v649 = vxor.u32 %v620, 2147483648
  %v650 = vmul.f32 %v649, 1.442695
  %v651 = vpow.pop %v650
  %v652 = vadd.f32 %v651, 1.0
  %v653 = vrcp.pop %v652
  %v654 = vmul.f32 1.0, %v653
  %v655 = vtanh.pop %v620
  %v656 = vmul.f32 %v654, %v533
  %658 = vrot.lane.b32.xlu0 %v655, 32
  %v659 = vpop.permute.xlu0 %658
  %v661 = vmul.f32 %v654, %v659
  %663 = vrot.lane.b32.xlu0 %v661, 32
  %v664 = vpop.permute.xlu0 %663
  %v666 = vadd.f32 %v656, %v664
  %v667 = vtanh.pop %v666
  %669 = vrot.lane.b32.xlu0 %v667, 32
  %v670 = vpop.permute.xlu0 %669
  %v672 = vmul.f32 %v654, %v670
  %674 = vrot.lane.b32.xlu0 %v648, 64
  %v675 = vpop.permute.xlu0 %674
  %678 = vrot.lane.b32.xlu0 %v672, 96
  %v679 = vpop.permute.xlu0 %678
  %v681 = vsel %vm374, %v675, %v679
  %683 = vrot.lane.b32.xlu0 %v642, 96
  %v684 = vpop.permute.xlu0 %683
  %v686 = vsel %vm374, %v684, %v666
  %v687 = vadd.f32 %v534, %v681
  %v689 = vsel %vm114, %v681, 0
  %691 = vmatprep.subr.mxu0 0.0
  %692 = vmatpush1.msra.mxu0 0.0
  %693 = vmatprep.subr.mxu0 0.0
  %694 = vmatpush1.msra.mxu0 0.0
  %695 = vmatprep.subr.mxu0 0.0
  %696 = vmatpush1.msra.mxu0 0.0
  %697 = vmatprep.subr.mxu0 0.0
  %698 = vmatpush1.msra.mxu0 0.0
  %699 = vmatprep.subr.mxu0 0.0
  %700 = vmatpush1.msra.mxu0 0.0
  %701 = vmatprep.subr.mxu0 0.0
  %702 = vmatpush1.msra.mxu0 0.0
  %703 = vmatprep.subr.mxu0 0.0
  %704 = vmatpush1.msra.mxu0 0.0
  %705 = vmatprep.subr.mxu0 0.0
  %706 = vmatpush1.msra.mxu0 0.0
  %707 = vmatprep.subr.mxu0 %v231
  %708 = vmatpush1.msra.mxu0 %v230
  %709 = vmatprep.subr.mxu0 %v229
  %710 = vmatpush1.msra.mxu0 %v228
  %711 = vmatprep.subr.mxu0 %v227
  %712 = vmatpush1.msra.mxu0 %v226
  %713 = vmatprep.subr.mxu0 %v225
  %714 = vmatpush1.msra.mxu0 %v224
  %715 = vmatprep.subr.mxu0 %v223
  %716 = vmatpush1.msra.mxu0 %v222
  %717 = vmatprep.subr.mxu0 %v221
  %718 = vmatpush1.msra.mxu0 %v220
  %719 = vmatprep.subr.mxu0 %v219
  %720 = vmatpush1.msra.mxu0 %v218
  %721 = vmatprep.subr.mxu0 %v217
  %722 = vmatpush1.msra.mxu0 %v216
  %723 = vmatprep.subr.mxu0 0.0
  %724 = vmatpush2.msra.mxu0 0.0
  %725 = vmatprep.subr.mxu0 0.0
  %726 = vmatpush2.msra.mxu0 0.0
  %727 = vmatprep.subr.mxu0 0.0
  %728 = vmatpush2.msra.mxu0 0.0
  %729 = vmatprep.subr.mxu0 0.0
  %730 = vmatpush2.msra.mxu0 0.0
  %731 = vmatprep.subr.mxu0 0.0
  %732 = vmatpush2.msra.mxu0 0.0
  %733 = vmatprep.subr.mxu0 0.0
  %734 = vmatpush2.msra.mxu0 0.0
  %735 = vmatprep.subr.mxu0 0.0
  %736 = vmatpush2.msra.mxu0 0.0
  %737 = vmatprep.subr.mxu0 0.0
  %738 = vmatpush2.msra.mxu0 0.0
  %739 = vmatprep.subr.mxu0 0.0
  %740 = vmatpush2.msra.mxu0 0.0
  %741 = vmatprep.subr.mxu0 0.0
  %742 = vmatpush2.msra.mxu0 0.0
  %743 = vmatprep.subr.mxu0 0.0
  %744 = vmatpush2.msra.mxu0 0.0
  %745 = vmatprep.subr.mxu0 0.0
  %746 = vmatpush2.msra.mxu0 0.0
  %747 = vmatprep.subr.mxu0 0.0
  %748 = vmatpush2.msra.mxu0 0.0
  %749 = vmatprep.subr.mxu0 0.0
  %750 = vmatpush2.msra.mxu0 0.0
  %751 = vmatprep.subr.mxu0 0.0
  %752 = vmatpush2.msra.mxu0 0.0
  %753 = vmatprep.subr.mxu0 0.0
  %754 = vmatpush2.msra.mxu0 0.0
  %755 = vmatprep.mubr.f32.mxu0 0.0
  %756 = vmatmul.mubr.f32.gmra.mxu0 %v689
  %v757 = vpop.f32.mrf.mxu0
  %v758 = vadd.f32 0.0, %v757
  %v759 = vpop.f32.mrf.mxu0
  %v760 = vadd.f32 0.0, %v759
  %761 = vdwg.mxu0
  %s762 = smul.u32 3, 2
  %s763 = smul.addr %s762, 8
  %s764 = scalar_lea.vmem [#allocation2], %s763
  %v765 = vld [vmem:[%s764] sm:$0xff]
  %v766 = vld [vmem:[%s764 + $0x8] sm:$0xff]
  %s767 = smul.u32 4, 2
  %s768 = smul.addr %s767, 8
  %s769 = scalar_lea.vmem [#allocation2], %s768
  %v770 = vld [vmem:[%s769] sm:$0xff]
  %v771 = vld [vmem:[%s769 + $0x8] sm:$0xff]
  %v772 = vadd.f32 %v765, %v758
  %v773 = vadd.f32 %v771, %v760
  %v774 = vxor.u32 %v772, 2147483648
  %v775 = vmul.f32 %v774, 1.442695
  %v776 = vpow.pop %v775
  %v777 = vadd.f32 %v776, 1.0
  %v778 = vrcp.pop %v777
  %v779 = vmul.f32 1.0, %v778
  %v780 = vtanh.pop %v772
  %782 = vrot.lane.b32.xlu0 %v686, 32
  %v783 = vpop.permute.xlu0 %782
  %v785 = vmul.f32 %v779, %v783
  %787 = vrot.lane.b32.xlu0 %v780, 32
  %v788 = vpop.permute.xlu0 %787
  %v790 = vmul.f32 %v779, %v788
  %792 = vrot.lane.b32.xlu0 %v790, 32
  %v793 = vpop.permute.xlu0 %792
  %v795 = vadd.f32 %v785, %v793
  %v796 = vtanh.pop %v795
  %798 = vrot.lane.b32.xlu0 %v796, 32
  %v799 = vpop.permute.xlu0 %798
  %v801 = vmul.f32 %v779, %v799
  %v802 = vxor.u32 %v773, 2147483648
  %v803 = vmul.f32 %v802, 1.442695
  %v804 = vpow.pop %v803
  %v805 = vadd.f32 %v804, 1.0
  %v806 = vrcp.pop %v805
  %v807 = vmul.f32 1.0, %v806
  %v808 = vtanh.pop %v773
  %v809 = vmul.f32 %v807, %v686
  %811 = vrot.lane.b32.xlu0 %v808, 32
  %v812 = vpop.permute.xlu0 %811
  %v814 = vmul.f32 %v807, %v812
  %816 = vrot.lane.b32.xlu0 %v814, 32
  %v817 = vpop.permute.xlu0 %816
  %v819 = vadd.f32 %v809, %v817
  %v820 = vtanh.pop %v819
  %822 = vrot.lane.b32.xlu0 %v820, 32
  %v823 = vpop.permute.xlu0 %822
  %v825 = vmul.f32 %v807, %v823
  %827 = vrot.lane.b32.xlu0 %v801, 64
  %v828 = vpop.permute.xlu0 %827
  %831 = vrot.lane.b32.xlu0 %v825, 96
  %v832 = vpop.permute.xlu0 %831
  %v834 = vsel %vm374, %v828, %v832
  %836 = vrot.lane.b32.xlu0 %v795, 96
  %v837 = vpop.permute.xlu0 %836
  %v839 = vsel %vm374, %v837, %v819
  %v840 = vadd.f32 %v687, %v834
  %v842 = vsel %vm114, %v834, 0
  %844 = vmatprep.subr.mxu0 0.0
  %845 = vmatpush1.msra.mxu0 0.0
  %846 = vmatprep.subr.mxu0 0.0
  %847 = vmatpush1.msra.mxu0 0.0
  %848 = vmatprep.subr.mxu0 0.0
  %849 = vmatpush1.msra.mxu0 0.0
  %850 = vmatprep.subr.mxu0 0.0
  %851 = vmatpush1.msra.mxu0 0.0
  %852 = vmatprep.subr.mxu0 0.0
  %853 = vmatpush1.msra.mxu0 0.0
  %854 = vmatprep.subr.mxu0 0.0
  %855 = vmatpush1.msra.mxu0 0.0
  %856 = vmatprep.subr.mxu0 0.0
  %857 = vmatpush1.msra.mxu0 0.0
  %858 = vmatprep.subr.mxu0 0.0
  %859 = vmatpush1.msra.mxu0 0.0
  %860 = vmatprep.subr.mxu0 %v231
  %861 = vmatpush1.msra.mxu0 %v230
  %862 = vmatprep.subr.mxu0 %v229
  %863 = vmatpush1.msra.mxu0 %v228
  %864 = vmatprep.subr.mxu0 %v227
  %865 = vmatpush1.msra.mxu0 %v226
  %866 = vmatprep.subr.mxu0 %v225
  %867 = vmatpush1.msra.mxu0 %v224
  %868 = vmatprep.subr.mxu0 %v223
  %869 = vmatpush1.msra.mxu0 %v222
  %870 = vmatprep.subr.mxu0 %v221
  %871 = vmatpush1.msra.mxu0 %v220
  %872 = vmatprep.subr.mxu0 %v219
  %873 = vmatpush1.msra.mxu0 %v218
  %874 = vmatprep.subr.mxu0 %v217
  %875 = vmatpush1.msra.mxu0 %v216
  %876 = vmatprep.subr.mxu0 0.0
  %877 = vmatpush2.msra.mxu0 0.0
  %878 = vmatprep.subr.mxu0 0.0
  %879 = vmatpush2.msra.mxu0 0.0
  %880 = vmatprep.subr.mxu0 0.0
  %881 = vmatpush2.msra.mxu0 0.0
  %882 = vmatprep.subr.mxu0 0.0
  %883 = vmatpush2.msra.mxu0 0.0
  %884 = vmatprep.subr.mxu0 0.0
  %885 = vmatpush2.msra.mxu0 0.0
  %886 = vmatprep.subr.mxu0 0.0
  %887 = vmatpush2.msra.mxu0 0.0
  %888 = vmatprep.subr.mxu0 0.0
  %889 = vmatpush2.msra.mxu0 0.0
  %890 = vmatprep.subr.mxu0 0.0
  %891 = vmatpush2.msra.mxu0 0.0
  %892 = vmatprep.subr.mxu0 0.0
  %893 = vmatpush2.msra.mxu0 0.0
  %894 = vmatprep.subr.mxu0 0.0
  %895 = vmatpush2.msra.mxu0 0.0
  %896 = vmatprep.subr.mxu0 0.0
  %897 = vmatpush2.msra.mxu0 0.0
  %898 = vmatprep.subr.mxu0 0.0
  %899 = vmatpush2.msra.mxu0 0.0
  %900 = vmatprep.subr.mxu0 0.0
  %901 = vmatpush2.msra.mxu0 0.0
  %902 = vmatprep.subr.mxu0 0.0
  %903 = vmatpush2.msra.mxu0 0.0
  %904 = vmatprep.subr.mxu0 0.0
  %905 = vmatpush2.msra.mxu0 0.0
  %906 = vmatprep.subr.mxu0 0.0
  %907 = vmatpush2.msra.mxu0 0.0
  %908 = vmatprep.mubr.f32.mxu0 0.0
  %909 = vmatmul.mubr.f32.gmra.mxu0 %v842
  %v910 = vpop.f32.mrf.mxu0
  %v911 = vadd.f32 0.0, %v910
  %v912 = vpop.f32.mrf.mxu0
  %v913 = vadd.f32 0.0, %v912
  %914 = vdwg.mxu0
  %v915 = vadd.f32 %v770, %v911
  %v916 = vadd.f32 %v766, %v913
  %v917 = vxor.u32 %v915, 2147483648
  %v918 = vmul.f32 %v917, 1.442695
  %v919 = vpow.pop %v918
  %v920 = vadd.f32 %v919, 1.0
  %v921 = vrcp.pop %v920
  %v922 = vmul.f32 1.0, %v921
  %v923 = vtanh.pop %v915
  %925 = vrot.lane.b32.xlu0 %v839, 32
  %v926 = vpop.permute.xlu0 %925
  %v928 = vmul.f32 %v922, %v926
  %930 = vrot.lane.b32.xlu0 %v923, 32
  %v931 = vpop.permute.xlu0 %930
  %v933 = vmul.f32 %v922, %v931
  %935 = vrot.lane.b32.xlu0 %v933, 32
  %v936 = vpop.permute.xlu0 %935
  %v938 = vadd.f32 %v928, %v936
  %v939 = vtanh.pop %v938
  %941 = vrot.lane.b32.xlu0 %v939, 32
  %v942 = vpop.permute.xlu0 %941
  %v944 = vmul.f32 %v922, %v942
  %v945 = vxor.u32 %v916, 2147483648
  %v946 = vmul.f32 %v945, 1.442695
  %v947 = vpow.pop %v946
  %v948 = vadd.f32 %v947, 1.0
  %v949 = vrcp.pop %v948
  %v950 = vmul.f32 1.0, %v949
  %v951 = vtanh.pop %v916
  %v952 = vmul.f32 %v950, %v839
  %954 = vrot.lane.b32.xlu0 %v951, 32
  %v955 = vpop.permute.xlu0 %954
  %v957 = vmul.f32 %v950, %v955
  %959 = vrot.lane.b32.xlu0 %v957, 32
  %v960 = vpop.permute.xlu0 %959
  %v962 = vadd.f32 %v952, %v960
  %v963 = vtanh.pop %v962
  %965 = vrot.lane.b32.xlu0 %v963, 32
  %v966 = vpop.permute.xlu0 %965
  %v968 = vmul.f32 %v950, %v966
  %970 = vrot.lane.b32.xlu0 %v944, 64
  %v971 = vpop.permute.xlu0 %970
  %974 = vrot.lane.b32.xlu0 %v968, 96
  %v975 = vpop.permute.xlu0 %974
  %v977 = vsel %vm374, %v971, %v975
  %979 = vrot.lane.b32.xlu0 %v938, 96
  %v980 = vpop.permute.xlu0 %979
  %v982 = vsel %vm374, %v980, %v962
  %v983 = vadd.f32 %v840, %v977
  %v985 = vsel %vm114, %v977, 0
  %987 = vmatprep.subr.mxu0 0.0
  %988 = vmatpush1.msra.mxu0 0.0
  %989 = vmatprep.subr.mxu0 0.0
  %990 = vmatpush1.msra.mxu0 0.0
  %991 = vmatprep.subr.mxu0 0.0
  %992 = vmatpush1.msra.mxu0 0.0
  %993 = vmatprep.subr.mxu0 0.0
  %994 = vmatpush1.msra.mxu0 0.0
  %995 = vmatprep.subr.mxu0 0.0
  %996 = vmatpush1.msra.mxu0 0.0
  %997 = vmatprep.subr.mxu0 0.0
  %998 = vmatpush1.msra.mxu0 0.0
  %999 = vmatprep.subr.mxu0 0.0
  %1000 = vmatpush1.msra.mxu0 0.0
  %1001 = vmatprep.subr.mxu0 0.0
  %1002 = vmatpush1.msra.mxu0 0.0
  %1003 = vmatprep.subr.mxu0 %v231
  %1004 = vmatpush1.msra.mxu0 %v230
  %1005 = vmatprep.subr.mxu0 %v229
  %1006 = vmatpush1.msra.mxu0 %v228
  %1007 = vmatprep.subr.mxu0 %v227
  %1008 = vmatpush1.msra.mxu0 %v226
  %1009 = vmatprep.subr.mxu0 %v225
  %1010 = vmatpush1.msra.mxu0 %v224
  %1011 = vmatprep.subr.mxu0 %v223
  %1012 = vmatpush1.msra.mxu0 %v222
  %1013 = vmatprep.subr.mxu0 %v221
  %1014 = vmatpush1.msra.mxu0 %v220
  %1015 = vmatprep.subr.mxu0 %v219
  %1016 = vmatpush1.msra.mxu0 %v218
  %1017 = vmatprep.subr.mxu0 %v217
  %1018 = vmatpush1.msra.mxu0 %v216
  %1019 = vmatprep.subr.mxu0 0.0
  %1020 = vmatpush2.msra.mxu0 0.0
  %1021 = vmatprep.subr.mxu0 0.0
  %1022 = vmatpush2.msra.mxu0 0.0
  %1023 = vmatprep.subr.mxu0 0.0
  %1024 = vmatpush2.msra.mxu0 0.0
  %1025 = vmatprep.subr.mxu0 0.0
  %1026 = vmatpush2.msra.mxu0 0.0
  %1027 = vmatprep.subr.mxu0 0.0
  %1028 = vmatpush2.msra.mxu0 0.0
  %1029 = vmatprep.subr.mxu0 0.0
  %1030 = vmatpush2.msra.mxu0 0.0
  %1031 = vmatprep.subr.mxu0 0.0
  %1032 = vmatpush2.msra.mxu0 0.0
  %1033 = vmatprep.subr.mxu0 0.0
  %1034 = vmatpush2.msra.mxu0 0.0
  %1035 = vmatprep.subr.mxu0 0.0
  %1036 = vmatpush2.msra.mxu0 0.0
  %1037 = vmatprep.subr.mxu0 0.0
  %1038 = vmatpush2.msra.mxu0 0.0
  %1039 = vmatprep.subr.mxu0 0.0
  %1040 = vmatpush2.msra.mxu0 0.0
  %1041 = vmatprep.subr.mxu0 0.0
  %1042 = vmatpush2.msra.mxu0 0.0
  %1043 = vmatprep.subr.mxu0 0.0
  %1044 = vmatpush2.msra.mxu0 0.0
  %1045 = vmatprep.subr.mxu0 0.0
  %1046 = vmatpush2.msra.mxu0 0.0
  %1047 = vmatprep.subr.mxu0 0.0
  %1048 = vmatpush2.msra.mxu0 0.0
  %1049 = vmatprep.subr.mxu0 0.0
  %1050 = vmatpush2.msra.mxu0 0.0
  %1051 = vmatprep.mubr.f32.mxu0 0.0
  %1052 = vmatmul.mubr.f32.gmra.mxu0 %v985
  %v1053 = vpop.f32.mrf.mxu0
  %v1054 = vadd.f32 0.0, %v1053
  %v1055 = vpop.f32.mrf.mxu0
  %v1056 = vadd.f32 0.0, %v1055
  %1057 = vdwg.mxu0
  %v1058 = vadd.f32 %v617, %v1054
  %v1059 = vadd.f32 %v613, %v1056
  %v1060 = vxor.u32 %v1058, 2147483648
  %v1061 = vmul.f32 %v1060, 1.442695
  %v1062 = vpow.pop %v1061
  %v1063 = vadd.f32 %v1062, 1.0
  %v1064 = vrcp.pop %v1063
  %v1065 = vmul.f32 1.0, %v1064
  %v1066 = vtanh.pop %v1058
  %1068 = vrot.lane.b32.xlu0 %v982, 32
  %v1069 = vpop.permute.xlu0 %1068
  %v1071 = vmul.f32 %v1065, %v1069
  %1073 = vrot.lane.b32.xlu0 %v1066, 32
  %v1074 = vpop.permute.xlu0 %1073
  %v1076 = vmul.f32 %v1065, %v1074
  %1078 = vrot.lane.b32.xlu0 %v1076, 32
  %v1079 = vpop.permute.xlu0 %1078
  %v1081 = vadd.f32 %v1071, %v1079
  %v1082 = vtanh.pop %v1081
  %1084 = vrot.lane.b32.xlu0 %v1082, 32
  %v1085 = vpop.permute.xlu0 %1084
  %v1087 = vmul.f32 %v1065, %v1085
  %v1088 = vxor.u32 %v1059, 2147483648
  %v1089 = vmul.f32 %v1088, 1.442695
  %v1090 = vpow.pop %v1089
  %v1091 = vadd.f32 %v1090, 1.0
  %v1092 = vrcp.pop %v1091
  %v1093 = vmul.f32 1.0, %v1092
  %v1094 = vtanh.pop %v1059
  %v1095 = vmul.f32 %v1093, %v982
  %1097 = vrot.lane.b32.xlu0 %v1094, 32
  %v1098 = vpop.permute.xlu0 %1097
  %v1100 = vmul.f32 %v1093, %v1098
  %1102 = vrot.lane.b32.xlu0 %v1100, 32
  %v1103 = vpop.permute.xlu0 %1102
  %v1105 = vadd.f32 %v1095, %v1103
  %v1106 = vtanh.pop %v1105
  %1108 = vrot.lane.b32.xlu0 %v1106, 32
  %v1109 = vpop.permute.xlu0 %1108
  %v1111 = vmul.f32 %v1093, %v1109
  %1113 = vrot.lane.b32.xlu0 %v1087, 64
  %v1114 = vpop.permute.xlu0 %1113
  %1117 = vrot.lane.b32.xlu0 %v1111, 96
  %v1118 = vpop.permute.xlu0 %1117
  %v1120 = vsel %vm374, %v1114, %v1118
  %1122 = vrot.lane.b32.xlu0 %v1081, 96
  %v1123 = vpop.permute.xlu0 %1122
  %v1125 = vsel %vm374, %v1123, %v1105
  %v1126 = vadd.f32 %v983, %v1120
  %v1128 = vsel %vm114, %v1120, 0
  %1130 = vmatprep.subr.mxu0 0.0
  %1131 = vmatpush1.msra.mxu0 0.0
  %1132 = vmatprep.subr.mxu0 0.0
  %1133 = vmatpush1.msra.mxu0 0.0
  %1134 = vmatprep.subr.mxu0 0.0
  %1135 = vmatpush1.msra.mxu0 0.0
  %1136 = vmatprep.subr.mxu0 0.0
  %1137 = vmatpush1.msra.mxu0 0.0
  %1138 = vmatprep.subr.mxu0 0.0
  %1139 = vmatpush1.msra.mxu0 0.0
  %1140 = vmatprep.subr.mxu0 0.0
  %1141 = vmatpush1.msra.mxu0 0.0
  %1142 = vmatprep.subr.mxu0 0.0
  %1143 = vmatpush1.msra.mxu0 0.0
  %1144 = vmatprep.subr.mxu0 0.0
  %1145 = vmatpush1.msra.mxu0 0.0
  %1146 = vmatprep.subr.mxu0 %v231
  %1147 = vmatpush1.msra.mxu0 %v230
  %1148 = vmatprep.subr.mxu0 %v229
  %1149 = vmatpush1.msra.mxu0 %v228
  %1150 = vmatprep.subr.mxu0 %v227
  %1151 = vmatpush1.msra.mxu0 %v226
  %1152 = vmatprep.subr.mxu0 %v225
  %1153 = vmatpush1.msra.mxu0 %v224
  %1154 = vmatprep.subr.mxu0 %v223
  %1155 = vmatpush1.msra.mxu0 %v222
  %1156 = vmatprep.subr.mxu0 %v221
  %1157 = vmatpush1.msra.mxu0 %v220
  %1158 = vmatprep.subr.mxu0 %v219
  %1159 = vmatpush1.msra.mxu0 %v218
  %1160 = vmatprep.subr.mxu0 %v217
  %1161 = vmatpush1.msra.mxu0 %v216
  %1162 = vmatprep.subr.mxu0 0.0
  %1163 = vmatpush2.msra.mxu0 0.0
  %1164 = vmatprep.subr.mxu0 0.0
  %1165 = vmatpush2.msra.mxu0 0.0
  %1166 = vmatprep.subr.mxu0 0.0
  %1167 = vmatpush2.msra.mxu0 0.0
  %1168 = vmatprep.subr.mxu0 0.0
  %1169 = vmatpush2.msra.mxu0 0.0
  %1170 = vmatprep.subr.mxu0 0.0
  %1171 = vmatpush2.msra.mxu0 0.0
  %1172 = vmatprep.subr.mxu0 0.0
  %1173 = vmatpush2.msra.mxu0 0.0
  %1174 = vmatprep.subr.mxu0 0.0
  %1175 = vmatpush2.msra.mxu0 0.0
  %1176 = vmatprep.subr.mxu0 0.0
  %1177 = vmatpush2.msra.mxu0 0.0
  %1178 = vmatprep.subr.mxu0 0.0
  %1179 = vmatpush2.msra.mxu0 0.0
  %1180 = vmatprep.subr.mxu0 0.0
  %1181 = vmatpush2.msra.mxu0 0.0
  %1182 = vmatprep.subr.mxu0 0.0
  %1183 = vmatpush2.msra.mxu0 0.0
  %1184 = vmatprep.subr.mxu0 0.0
  %1185 = vmatpush2.msra.mxu0 0.0
  %1186 = vmatprep.subr.mxu0 0.0
  %1187 = vmatpush2.msra.mxu0 0.0
  %1188 = vmatprep.subr.mxu0 0.0
  %1189 = vmatpush2.msra.mxu0 0.0
  %1190 = vmatprep.subr.mxu0 0.0
  %1191 = vmatpush2.msra.mxu0 0.0
  %1192 = vmatprep.subr.mxu0 0.0
  %1193 = vmatpush2.msra.mxu0 0.0
  %1194 = vmatprep.mubr.f32.mxu0 0.0
  %1195 = vmatmul.mubr.f32.gmra.mxu0 %v1128
  %v1196 = vpop.f32.mrf.mxu0
  %v1197 = vadd.f32 0.0, %v1196
  %v1198 = vpop.f32.mrf.mxu0
  %v1199 = vadd.f32 0.0, %v1198
  %1200 = vdwg.mxu0
  %v1201 = vadd.f32 %v464, %v1197
  %v1202 = vadd.f32 %v460, %v1199
  %v1203 = vxor.u32 %v1201, 2147483648
  %v1204 = vmul.f32 %v1203, 1.442695
  %v1205 = vpow.pop %v1204
  %v1206 = vadd.f32 %v1205, 1.0
  %v1207 = vrcp.pop %v1206
  %v1208 = vmul.f32 1.0, %v1207
  %v1209 = vtanh.pop %v1201
  %1211 = vrot.lane.b32.xlu0 %v1125, 32
  %v1212 = vpop.permute.xlu0 %1211
  %v1214 = vmul.f32 %v1208, %v1212
  %1216 = vrot.lane.b32.xlu0 %v1209, 32
  %v1217 = vpop.permute.xlu0 %1216
  %v1219 = vmul.f32 %v1208, %v1217
  %1221 = vrot.lane.b32.xlu0 %v1219, 32
  %v1222 = vpop.permute.xlu0 %1221
  %v1224 = vadd.f32 %v1214, %v1222
  %v1225 = vtanh.pop %v1224
  %1227 = vrot.lane.b32.xlu0 %v1225, 32
  %v1228 = vpop.permute.xlu0 %1227
  %v1230 = vmul.f32 %v1208, %v1228
  %v1231 = vxor.u32 %v1202, 2147483648
  %v1232 = vmul.f32 %v1231, 1.442695
  %v1233 = vpow.pop %v1232
  %v1234 = vadd.f32 %v1233, 1.0
  %v1235 = vrcp.pop %v1234
  %v1236 = vmul.f32 1.0, %v1235
  %v1237 = vtanh.pop %v1202
  %v1238 = vmul.f32 %v1236, %v1125
  %1240 = vrot.lane.b32.xlu0 %v1237, 32
  %v1241 = vpop.permute.xlu0 %1240
  %v1243 = vmul.f32 %v1236, %v1241
  %1245 = vrot.lane.b32.xlu0 %v1243, 32
  %v1246 = vpop.permute.xlu0 %1245
  %v1248 = vadd.f32 %v1238, %v1246
  %v1249 = vtanh.pop %v1248
  %1251 = vrot.lane.b32.xlu0 %v1249, 32
  %v1252 = vpop.permute.xlu0 %1251
  %v1254 = vmul.f32 %v1236, %v1252
  %1256 = vrot.lane.b32.xlu0 %v1230, 64
  %v1257 = vpop.permute.xlu0 %1256
  %1260 = vrot.lane.b32.xlu0 %v1254, 96
  %v1261 = vpop.permute.xlu0 %1260
  %v1263 = vsel %vm374, %v1257, %v1261
  %1265 = vrot.lane.b32.xlu0 %v1224, 96
  %v1266 = vpop.permute.xlu0 %1265
  %v1268 = vsel %vm374, %v1266, %v1248
  %v1269 = vadd.f32 %v1126, %v1263
  %v1271 = vsel %vm114, %v1263, 0
  %1273 = vmatprep.subr.mxu0 0.0
  %1274 = vmatpush1.msra.mxu0 0.0
  %1275 = vmatprep.subr.mxu0 0.0
  %1276 = vmatpush1.msra.mxu0 0.0
  %1277 = vmatprep.subr.mxu0 0.0
  %1278 = vmatpush1.msra.mxu0 0.0
  %1279 = vmatprep.subr.mxu0 0.0
  %1280 = vmatpush1.msra.mxu0 0.0
  %1281 = vmatprep.subr.mxu0 0.0
  %1282 = vmatpush1.msra.mxu0 0.0
  %1283 = vmatprep.subr.mxu0 0.0
  %1284 = vmatpush1.msra.mxu0 0.0
  %1285 = vmatprep.subr.mxu0 0.0
  %1286 = vmatpush1.msra.mxu0 0.0
  %1287 = vmatprep.subr.mxu0 0.0
  %1288 = vmatpush1.msra.mxu0 0.0
  %1289 = vmatprep.subr.mxu0 %v231
  %1290 = vmatpush1.msra.mxu0 %v230
  %1291 = vmatprep.subr.mxu0 %v229
  %1292 = vmatpush1.msra.mxu0 %v228
  %1293 = vmatprep.subr.mxu0 %v227
  %1294 = vmatpush1.msra.mxu0 %v226
  %1295 = vmatprep.subr.mxu0 %v225
  %1296 = vmatpush1.msra.mxu0 %v224
  %1297 = vmatprep.subr.mxu0 %v223
  %1298 = vmatpush1.msra.mxu0 %v222
  %1299 = vmatprep.subr.mxu0 %v221
  %1300 = vmatpush1.msra.mxu0 %v220
  %1301 = vmatprep.subr.mxu0 %v219
  %1302 = vmatpush1.msra.mxu0 %v218
  %1303 = vmatprep.subr.mxu0 %v217
  %1304 = vmatpush1.msra.mxu0 %v216
  %1305 = vmatprep.subr.mxu0 0.0
  %1306 = vmatpush2.msra.mxu0 0.0
  %1307 = vmatprep.subr.mxu0 0.0
  %1308 = vmatpush2.msra.mxu0 0.0
  %1309 = vmatprep.subr.mxu0 0.0
  %1310 = vmatpush2.msra.mxu0 0.0
  %1311 = vmatprep.subr.mxu0 0.0
  %1312 = vmatpush2.msra.mxu0 0.0
  %1313 = vmatprep.subr.mxu0 0.0
  %1314 = vmatpush2.msra.mxu0 0.0
  %1315 = vmatprep.subr.mxu0 0.0
  %1316 = vmatpush2.msra.mxu0 0.0
  %1317 = vmatprep.subr.mxu0 0.0
  %1318 = vmatpush2.msra.mxu0 0.0
  %1319 = vmatprep.subr.mxu0 0.0
  %1320 = vmatpush2.msra.mxu0 0.0
  %1321 = vmatprep.subr.mxu0 0.0
  %1322 = vmatpush2.msra.mxu0 0.0
  %1323 = vmatprep.subr.mxu0 0.0
  %1324 = vmatpush2.msra.mxu0 0.0
  %1325 = vmatprep.subr.mxu0 0.0
  %1326 = vmatpush2.msra.mxu0 0.0
  %1327 = vmatprep.subr.mxu0 0.0
  %1328 = vmatpush2.msra.mxu0 0.0
  %1329 = vmatprep.subr.mxu0 0.0
  %1330 = vmatpush2.msra.mxu0 0.0
  %1331 = vmatprep.subr.mxu0 0.0
  %1332 = vmatpush2.msra.mxu0 0.0
  %1333 = vmatprep.subr.mxu0 0.0
  %1334 = vmatpush2.msra.mxu0 0.0
  %1335 = vmatprep.subr.mxu0 0.0
  %1336 = vmatpush2.msra.mxu0 0.0
  %1337 = vmatprep.mubr.f32.mxu0 0.0
  %1338 = vmatmul.mubr.f32.gmra.mxu0 %v1271
  %v1339 = vpop.f32.mrf.mxu0
  %v1340 = vadd.f32 0.0, %v1339
  %v1341 = vpop.f32.mrf.mxu0
  %v1342 = vadd.f32 0.0, %v1341
  %1343 = vdwg.mxu0
  %v1344 = vadd.f32 %v314, %v1340
  %v1345 = vadd.f32 %v310, %v1342
  %v1346 = vxor.u32 %v1344, 2147483648
  %v1347 = vmul.f32 %v1346, 1.442695
  %v1348 = vpow.pop %v1347
  %v1349 = vadd.f32 %v1348, 1.0
  %v1350 = vrcp.pop %v1349
  %v1351 = vmul.f32 1.0, %v1350
  %v1352 = vtanh.pop %v1344
  %1354 = vrot.lane.b32.xlu0 %v1268, 32
  %v1355 = vpop.permute.xlu0 %1354
  %v1357 = vmul.f32 %v1351, %v1355
  %1359 = vrot.lane.b32.xlu0 %v1352, 32
  %v1360 = vpop.permute.xlu0 %1359
  %v1362 = vmul.f32 %v1351, %v1360
  %1364 = vrot.lane.b32.xlu0 %v1362, 32
  %v1365 = vpop.permute.xlu0 %1364
  %v1367 = vadd.f32 %v1357, %v1365
  %v1368 = vtanh.pop %v1367
  %1370 = vrot.lane.b32.xlu0 %v1368, 32
  %v1371 = vpop.permute.xlu0 %1370
  %v1373 = vmul.f32 %v1351, %v1371
  %v1374 = vxor.u32 %v1345, 2147483648
  %v1375 = vmul.f32 %v1374, 1.442695
  %v1376 = vpow.pop %v1375
  %v1377 = vadd.f32 %v1376, 1.0
  %v1378 = vrcp.pop %v1377
  %v1379 = vmul.f32 1.0, %v1378
  %v1380 = vtanh.pop %v1345
  %v1381 = vmul.f32 %v1379, %v1268
  %1383 = vrot.lane.b32.xlu0 %v1380, 32
  %v1384 = vpop.permute.xlu0 %1383
  %v1386 = vmul.f32 %v1379, %v1384
  %1388 = vrot.lane.b32.xlu0 %v1386, 32
  %v1389 = vpop.permute.xlu0 %1388
  %v1391 = vadd.f32 %v1381, %v1389
  %v1392 = vtanh.pop %v1391
  %1394 = vrot.lane.b32.xlu0 %v1392, 32
  %v1395 = vpop.permute.xlu0 %1394
  %v1397 = vmul.f32 %v1379, %v1395
  %1399 = vrot.lane.b32.xlu0 %v1373, 64
  %v1400 = vpop.permute.xlu0 %1399
  %1403 = vrot.lane.b32.xlu0 %v1397, 96
  %v1404 = vpop.permute.xlu0 %1403
  %v1406 = vsel %vm374, %v1400, %v1404
  %v1407 = vadd.f32 %v1269, %v1406
  %v1408 = vmul.f32 %v1407, 0.125
  %v1409 = vld [vmem:[%s4] sm:$0xff]
  %v1410 = vld [vmem:[%s4 + $0x8] sm:$0xff]
  %v1411 = vld [vmem:[%s4 + $0x10] sm:$0xff]
  %v1412 = vld [vmem:[%s4 + $0x18] sm:$0xff]
  %v1413 = vld [vmem:[%s4 + $0x20] sm:$0xff]
  %v1414 = vld [vmem:[%s4 + $0x28] sm:$0xff]
  %v1415 = vld [vmem:[%s4 + $0x30] sm:$0xff]
  %v1416 = vld [vmem:[%s4 + $0x38] sm:$0xff]
  %v1418 = vsel %vm114, %v1408, 0
  %1420 = vmatprep.subr.mxu0 0.0
  %1421 = vmatpush1.msra.mxu0 0.0
  %1422 = vmatprep.subr.mxu0 0.0
  %1423 = vmatpush1.msra.mxu0 0.0
  %1424 = vmatprep.subr.mxu0 0.0
  %1425 = vmatpush1.msra.mxu0 0.0
  %1426 = vmatprep.subr.mxu0 0.0
  %1427 = vmatpush1.msra.mxu0 0.0
  %1428 = vmatprep.subr.mxu0 0.0
  %1429 = vmatpush1.msra.mxu0 0.0
  %1430 = vmatprep.subr.mxu0 0.0
  %1431 = vmatpush1.msra.mxu0 0.0
  %1432 = vmatprep.subr.mxu0 0.0
  %1433 = vmatpush1.msra.mxu0 0.0
  %1434 = vmatprep.subr.mxu0 0.0
  %1435 = vmatpush1.msra.mxu0 0.0
  %1436 = vmatprep.subr.mxu0 0.0
  %1437 = vmatpush1.msra.mxu0 %v1416
  %1438 = vmatprep.subr.mxu0 0.0
  %1439 = vmatpush1.msra.mxu0 %v1415
  %1440 = vmatprep.subr.mxu0 0.0
  %1441 = vmatpush1.msra.mxu0 %v1414
  %1442 = vmatprep.subr.mxu0 0.0
  %1443 = vmatpush1.msra.mxu0 %v1413
  %1444 = vmatprep.subr.mxu0 0.0
  %1445 = vmatpush1.msra.mxu0 %v1412
  %1446 = vmatprep.subr.mxu0 0.0
  %1447 = vmatpush1.msra.mxu0 %v1411
  %1448 = vmatprep.subr.mxu0 0.0
  %1449 = vmatpush1.msra.mxu0 %v1410
  %1450 = vmatprep.subr.mxu0 0.0
  %1451 = vmatpush1.msra.mxu0 %v1409
  %1452 = vmatprep.subr.mxu0 0.0
  %1453 = vmatpush2.msra.mxu0 0.0
  %1454 = vmatprep.subr.mxu0 0.0
  %1455 = vmatpush2.msra.mxu0 0.0
  %1456 = vmatprep.subr.mxu0 0.0
  %1457 = vmatpush2.msra.mxu0 0.0
  %1458 = vmatprep.subr.mxu0 0.0
  %1459 = vmatpush2.msra.mxu0 0.0
  %1460 = vmatprep.subr.mxu0 0.0
  %1461 = vmatpush2.msra.mxu0 0.0
  %1462 = vmatprep.subr.mxu0 0.0
  %1463 = vmatpush2.msra.mxu0 0.0
  %1464 = vmatprep.subr.mxu0 0.0
  %1465 = vmatpush2.msra.mxu0 0.0
  %1466 = vmatprep.subr.mxu0 0.0
  %1467 = vmatpush2.msra.mxu0 0.0
  %1468 = vmatprep.subr.mxu0 0.0
  %1469 = vmatpush2.msra.mxu0 0.0
  %1470 = vmatprep.subr.mxu0 0.0
  %1471 = vmatpush2.msra.mxu0 0.0
  %1472 = vmatprep.subr.mxu0 0.0
  %1473 = vmatpush2.msra.mxu0 0.0
  %1474 = vmatprep.subr.mxu0 0.0
  %1475 = vmatpush2.msra.mxu0 0.0
  %1476 = vmatprep.subr.mxu0 0.0
  %1477 = vmatpush2.msra.mxu0 0.0
  %1478 = vmatprep.subr.mxu0 0.0
  %1479 = vmatpush2.msra.mxu0 0.0
  %1480 = vmatprep.subr.mxu0 0.0
  %1481 = vmatpush2.msra.mxu0 0.0
  %1482 = vmatprep.subr.mxu0 0.0
  %1483 = vmatpush2.msra.mxu0 0.0
  %1484 = vmatprep.mubr.f32.mxu0 0.0
  %1485 = vmatmul.mubr.f32.gmra.mxu0 %v1418
  %v1486 = vpop.f32.mrf.mxu0
  %v1487 = vadd.f32 0.0, %v1486
  %v1488 = vpop.f32.mrf.mxu0
  %1489 = vdwg.mxu0
  %v1490 = vld [vmem:[%s5] sm:$0x1]
  %v1492 = vlaneseq
  %v1493 = vshrl.u32 %v1492, 7
  %v1494 = vsub.s32 0, %v1493
  %v1495 = vrot.slane %v1490, %v1494
  %v1497 = vmul.f32 %v1487, %v1495
  %v1498 = vld [vmem:[%s6] sm:$0x1]
  %v1500 = vlaneseq
  %v1501 = vshrl.u32 %v1500, 7
  %v1502 = vsub.s32 0, %v1501
  %v1503 = vrot.slane %v1498, %v1502
  %v1505 = vadd.f32 %v1497, %v1503
  %v1506 = vmax.f32 %v1505, 0.0
  %v1507 = vld [vmem:[%s7] sm:$0xff]
  %v1508 = vld [vmem:[%s7 + $0x8] sm:$0xff]
  %v1509 = vld [vmem:[%s7 + $0x10] sm:$0xff]
  %v1510 = vld [vmem:[%s7 + $0x18] sm:$0xff]
  %v1512 = vsel %vm374, %v1506, 0
  %1514 = vmatprep.subr.mxu0 0.0
  %1515 = vmatpush1.msra.mxu0 0.0
  %1516 = vmatprep.subr.mxu0 0.0
  %1517 = vmatpush1.msra.mxu0 0.0
  %1518 = vmatprep.subr.mxu0 0.0
  %1519 = vmatpush1.msra.mxu0 0.0
  %1520 = vmatprep.subr.mxu0 0.0
  %1521 = vmatpush1.msra.mxu0 0.0
  %1522 = vmatprep.subr.mxu0 0.0
  %1523 = vmatpush1.msra.mxu0 0.0
  %1524 = vmatprep.subr.mxu0 0.0
  %1525 = vmatpush1.msra.mxu0 0.0
  %1526 = vmatprep.subr.mxu0 0.0
  %1527 = vmatpush1.msra.mxu0 0.0
  %1528 = vmatprep.subr.mxu0 0.0
  %1529 = vmatpush1.msra.mxu0 0.0
  %1530 = vmatprep.subr.mxu0 0.0
  %1531 = vmatpush1.msra.mxu0 0.0
  %1532 = vmatprep.subr.mxu0 0.0
  %1533 = vmatpush1.msra.mxu0 0.0
  %1534 = vmatprep.subr.mxu0 0.0
  %1535 = vmatpush1.msra.mxu0 0.0
  %1536 = vmatprep.subr.mxu0 0.0
  %1537 = vmatpush1.msra.mxu0 0.0
  %1538 = vmatprep.subr.mxu0 0.0
  %1539 = vmatpush1.msra.mxu0 %v1510
  %1540 = vmatprep.subr.mxu0 0.0
  %1541 = vmatpush1.msra.mxu0 %v1509
  %1542 = vmatprep.subr.mxu0 0.0
  %1543 = vmatpush1.msra.mxu0 %v1508
  %1544 = vmatprep.subr.mxu0 0.0
  %1545 = vmatpush1.msra.mxu0 %v1507
  %1546 = vmatprep.subr.mxu0 0.0
  %1547 = vmatpush2.msra.mxu0 0.0
  %1548 = vmatprep.subr.mxu0 0.0
  %1549 = vmatpush2.msra.mxu0 0.0
  %1550 = vmatprep.subr.mxu0 0.0
  %1551 = vmatpush2.msra.mxu0 0.0
  %1552 = vmatprep.subr.mxu0 0.0
  %1553 = vmatpush2.msra.mxu0 0.0
  %1554 = vmatprep.subr.mxu0 0.0
  %1555 = vmatpush2.msra.mxu0 0.0
  %1556 = vmatprep.subr.mxu0 0.0
  %1557 = vmatpush2.msra.mxu0 0.0
  %1558 = vmatprep.subr.mxu0 0.0
  %1559 = vmatpush2.msra.mxu0 0.0
  %1560 = vmatprep.subr.mxu0 0.0
  %1561 = vmatpush2.msra.mxu0 0.0
  %1562 = vmatprep.subr.mxu0 0.0
  %1563 = vmatpush2.msra.mxu0 0.0
  %1564 = vmatprep.subr.mxu0 0.0
  %1565 = vmatpush2.msra.mxu0 0.0
  %1566 = vmatprep.subr.mxu0 0.0
  %1567 = vmatpush2.msra.mxu0 0.0
  %1568 = vmatprep.subr.mxu0 0.0
  %1569 = vmatpush2.msra.mxu0 0.0
  %1570 = vmatprep.subr.mxu0 0.0
  %1571 = vmatpush2.msra.mxu0 0.0
  %1572 = vmatprep.subr.mxu0 0.0
  %1573 = vmatpush2.msra.mxu0 0.0
  %1574 = vmatprep.subr.mxu0 0.0
  %1575 = vmatpush2.msra.mxu0 0.0
  %1576 = vmatprep.subr.mxu0 0.0
  %1577 = vmatpush2.msra.mxu0 0.0
  %1578 = vmatprep.mubr.f32.mxu0 0.0
  %1579 = vmatmul.mubr.f32.gmra.mxu0 %v1512
  %v1580 = vpop.f32.mrf.mxu0
  %v1581 = vadd.f32 0.0, %v1580
  %v1582 = vpop.f32.mrf.mxu0
  %1583 = vdwg.mxu0
  %v1584 = vld [vmem:[%s8] sm:$0x1]
  %v1586 = vlaneseq
  %v1587 = vshrl.u32 %v1586, 7
  %v1588 = vsub.s32 0, %v1587
  %v1589 = vrot.slane %v1584, %v1588
  %v1591 = vmul.f32 %v1581, %v1589
  %v1592 = vld [vmem:[%s9] sm:$0x1]
  %v1594 = vlaneseq
  %v1595 = vshrl.u32 %v1594, 7
  %v1596 = vsub.s32 0, %v1595
  %v1597 = vrot.slane %v1592, %v1596
  %v1599 = vadd.f32 %v1591, %v1597
  %v1600 = vmax.f32 %v1599, 0.0
  %v1601 = vld [vmem:[%s10] sm:$0xff]
  %v1602 = vld [vmem:[%s10 + $0x8] sm:$0xff]
  %v1603 = vld [vmem:[%s11] sm:$0x1]
  %v1605 = vlaneseq
  %v1606 = vshrl.u32 %v1605, 7
  %v1607 = vsub.s32 0, %v1606
  %v1608 = vrot.slane %v1603, %v1607
  %vm1610 = vcmask 130048
  %v1612 = vsel %vm1610, %v1600, 0
  %1614 = vmatprep.subr.mxu0 0.0
  %1615 = vmatpush1.msra.mxu0 0.0
  %1616 = vmatprep.subr.mxu0 0.0
  %1617 = vmatpush1.msra.mxu0 0.0
  %1618 = vmatprep.subr.mxu0 0.0
  %1619 = vmatpush1.msra.mxu0 0.0
  %1620 = vmatprep.subr.mxu0 0.0
  %1621 = vmatpush1.msra.mxu0 0.0
  %1622 = vmatprep.subr.mxu0 0.0
  %1623 = vmatpush1.msra.mxu0 0.0
  %1624 = vmatprep.subr.mxu0 0.0
  %1625 = vmatpush1.msra.mxu0 0.0
  %1626 = vmatprep.subr.mxu0 0.0
  %1627 = vmatpush1.msra.mxu0 0.0
  %1628 = vmatprep.subr.mxu0 0.0
  %1629 = vmatpush1.msra.mxu0 0.0
  %1630 = vmatprep.subr.mxu0 0.0
  %1631 = vmatpush1.msra.mxu0 0.0
  %1632 = vmatprep.subr.mxu0 0.0
  %1633 = vmatpush1.msra.mxu0 0.0
  %1634 = vmatprep.subr.mxu0 0.0
  %1635 = vmatpush1.msra.mxu0 0.0
  %1636 = vmatprep.subr.mxu0 0.0
  %1637 = vmatpush1.msra.mxu0 0.0
  %1638 = vmatprep.subr.mxu0 0.0
  %1639 = vmatpush1.msra.mxu0 0.0
  %1640 = vmatprep.subr.mxu0 0.0
  %1641 = vmatpush1.msra.mxu0 0.0
  %1642 = vmatprep.subr.mxu0 0.0
  %1643 = vmatpush1.msra.mxu0 %v1602
  %1644 = vmatprep.subr.mxu0 0.0
  %1645 = vmatpush1.msra.mxu0 %v1601
  %1646 = vmatprep.subr.mxu0 0.0
  %1647 = vmatpush2.msra.mxu0 0.0
  %1648 = vmatprep.subr.mxu0 0.0
  %1649 = vmatpush2.msra.mxu0 0.0
  %1650 = vmatprep.subr.mxu0 0.0
  %1651 = vmatpush2.msra.mxu0 0.0
  %1652 = vmatprep.subr.mxu0 0.0
  %1653 = vmatpush2.msra.mxu0 0.0
  %1654 = vmatprep.subr.mxu0 0.0
  %1655 = vmatpush2.msra.mxu0 0.0
  %1656 = vmatprep.subr.mxu0 0.0
  %1657 = vmatpush2.msra.mxu0 0.0
  %1658 = vmatprep.subr.mxu0 0.0
  %1659 = vmatpush2.msra.mxu0 0.0
  %1660 = vmatprep.subr.mxu0 0.0
  %1661 = vmatpush2.msra.mxu0 0.0
  %1662 = vmatprep.subr.mxu0 0.0
  %1663 = vmatpush2.msra.mxu0 0.0
  %1664 = vmatprep.subr.mxu0 0.0
  %1665 = vmatpush2.msra.mxu0 0.0
  %1666 = vmatprep.subr.mxu0 0.0
  %1667 = vmatpush2.msra.mxu0 0.0
  %1668 = vmatprep.subr.mxu0 0.0
  %1669 = vmatpush2.msra.mxu0 0.0
  %1670 = vmatprep.subr.mxu0 0.0
  %1671 = vmatpush2.msra.mxu0 0.0
  %1672 = vmatprep.subr.mxu0 0.0
  %1673 = vmatpush2.msra.mxu0 0.0
  %1674 = vmatprep.subr.mxu0 0.0
  %1675 = vmatpush2.msra.mxu0 0.0
  %1676 = vmatprep.subr.mxu0 0.0
  %1677 = vmatpush2.msra.mxu0 0.0
  %1678 = vmatprep.mubr.f32.mxu0 0.0
  %1679 = vmatmul.mubr.f32.gmra.mxu0 %v1612
  %v1680 = vpop.f32.mrf.mxu0
  %v1681 = vadd.f32 %v1608, %v1680
  %v1682 = vpop.f32.mrf.mxu0
  %1683 = vdwg.mxu0
  %vm1684 = vcmask 23552
  %1685 = vst.msk [vmem:[%s12] sm:$0xff] %vm1684, %v1681
  // Predicated region
  $region50: #{basic_rnn_forward.3} parent=0 // pred_check
    _
  $region51: #{basic_rnn_forward.3} parent=0 // pred_check_branch
    %1687 = sbr.rel (0) target = $region53
  $region52: #{basic_rnn_forward.3} parent=0 // pred_region
    _
  $region53: #{basic_rnn_forward.3} parent=0 // pred_fallthru
    _
  // Predicated region
  $region54: #{basic_rnn_forward.3} parent=0 // pred_check
    _
  $region55: #{basic_rnn_forward.3} parent=0 // pred_check_branch
    %1689 = sbr.rel (0) target = $region57
  $region56: #{basic_rnn_forward.3} parent=0 // pred_region
    _
  $region57: #{basic_rnn_forward.3} parent=0 // pred_fallthru
    _

// kernel: basic_rnn_forward.2
$region0: #{basic_rnn_forward.2}
  #allocation0 [shape = 'u32[]', space=smem, size = 0x4, offset = 0x4, fixed_abs, tag = 'smem constant byte address 0x4 - core index']
  #allocation1 [shape = 'u32[144,128]{1,0:T(1,128)}', space=vmem, size = 0x12000, scoped, tag = 'internal scratch']
  #allocation2 [shape = 'f32[64,256]{1,0:T(8,128)}', space=vmem, size = 0x10000, scoped, tag = 'scratch operand']
  %s0 = inlined_call_operand.vmem [shape: bf16[64,64], index: 0, kind: input, shape index: {}]
  %s1 = inlined_call_operand.hbm [shape: bf16[64,256], index: 1, kind: input, shape index: {}]
  %s2 = inlined_call_operand.vmem [shape: f32[64,256], index: 2, kind: input, shape index: {}]
  %s3 = inlined_call_operand.vmem [shape: f32[1,256], index: 3, kind: input, shape index: {}]
  %s4 = inlined_call_operand.vmem [shape: f32[64,64], index: 4, kind: output, shape index: {}]
  %s5 = sld [smem:[#allocation0]]
  $region30: #{basic_rnn_forward.2} parent=0
    _
  %s7 = ssub.s32 1, %s5
  %s8 = scalar_select 0, %s7, %s5
  $region1: #{basic_rnn_forward.2} parent=0
    #allocation3 [shape = 'u8[32768]{0}', space=vmem, size = 0x8000, scoped, tag = 'input window, operand 1, single buffered']
    #allocation4 [shape = 's32[1]{0}', space=sflag, size = 0x4, scoped, tag = 'scoped memory for basic_rnn_forward.2']
    %9 = vsyncpa [#allocation4], 0
    // Predicated region
    $region2: #{basic_rnn_forward.2} parent=1 // pred_check
      _
    $region3: #{basic_rnn_forward.2} parent=1 // pred_check_branch
      %11 = sbr.rel (0) target = $region5
    $region4: #{basic_rnn_forward.2} parent=1 // pred_region
      _
    $region5: #{basic_rnn_forward.2} parent=1 // pred_fallthru
      _
    // Predicated region
    $region6: #{basic_rnn_forward.2} parent=1 // pred_check
      _
    $region7: #{basic_rnn_forward.2} parent=1 // pred_check_branch
      %13 = sbr.rel (0) target = $region9
    $region8: #{basic_rnn_forward.2} parent=1 // pred_region
      %s15 = ssub.s32 1024, 1024
      %16 = vsyncadd [#allocation4], %s15
      %s17 = sshll.u32 [#allocation3], 4
      %s18 = int_to_ptr.vmem [resolvable:$true] %s17
      %23 = dma.hbm_to_vmem [thread:$0]  %s1, 1024, %s18, [#allocation4], 128, 128, 8
    $region9: #{basic_rnn_forward.2} parent=1 // pred_fallthru
      _
    // Predicated region
    $region10: #{basic_rnn_forward.2} parent=1 // pred_check
      _
    $region11: #{basic_rnn_forward.2} parent=1 // pred_check_branch
      %25 = sbr.rel (0) target = $region13
    $region12: #{basic_rnn_forward.2} parent=1 // pred_region
      _
    $region13: #{basic_rnn_forward.2} parent=1 // pred_fallthru
      _
    // Predicated region
    $region14: #{basic_rnn_forward.2} parent=1 // pred_check
      _
    $region15: #{basic_rnn_forward.2} parent=1 // pred_check_branch
      %27 = sbr.rel (0) target = $region17
    $region16: #{basic_rnn_forward.2} parent=1 // pred_region
      _
    $region17: #{basic_rnn_forward.2} parent=1 // pred_fallthru
      _
    // Predicated region
    $region18: #{basic_rnn_forward.2} parent=1 // pred_check
      _
    $region19: #{basic_rnn_forward.2} parent=1 // pred_check_branch
      %29 = sbr.rel (0) target = $region21
    $region20: #{basic_rnn_forward.2} parent=1 // pred_region
      %30 = dma.done [#allocation4], 1024
    $region21: #{basic_rnn_forward.2} parent=1 // pred_fallthru
      _
    %v32 = vld [vmem:[%s0] sm:$0xf]
    %v33 = vld [vmem:[%s0 + $0x4] sm:$0xf]
    %v34 = vld [vmem:[%s0 + $0x8] sm:$0xf]
    %v35 = vld [vmem:[%s0 + $0xc] sm:$0xf]
    %v36 = vld [vmem:[%s0 + $0x10] sm:$0xf]
    %v37 = vld [vmem:[%s0 + $0x14] sm:$0xf]
    %v38 = vld [vmem:[%s0 + $0x18] sm:$0xf]
    %v39 = vld [vmem:[%s0 + $0x1c] sm:$0xf]
    %v40 = vld [vmem:[#allocation3] sm:$0xff]
    %v41 = vld [vmem:[#allocation3 + $0x8] sm:$0xff]
    %v42 = vld [vmem:[#allocation3 + $0x10] sm:$0xff]
    %v43 = vld [vmem:[#allocation3 + $0x18] sm:$0xff]
    %v44 = vld [vmem:[#allocation3 + $0x20] sm:$0xff]
    %v45 = vld [vmem:[#allocation3 + $0x28] sm:$0xff]
    %v46 = vld [vmem:[#allocation3 + $0x30] sm:$0xff]
    %v47 = vld [vmem:[#allocation3 + $0x38] sm:$0xff]
    %v48 = vld [vmem:[%s3] sm:$0x3]
    %v50 = vlaneseq
    %v51 = vshrl.u32 %v50, 7
    %v52 = vsub.s32 0, %v51
    %v53 = vrot.slane %v48, %v52
    %v54 = vlaneseq
    %v55 = vshrl.u32 %v54, 7
    %v56 = vsub.s32 1, %v55
    %v57 = vrot.slane %v48, %v56
    %v68 = vunpack.c.l.b16 %v32
    %v69 = vunpack.c.l.b16 %v33
    %v70 = vunpack.c.l.b16 %v34
    %v71 = vunpack.c.l.b16 %v35
    %v72 = vunpack.c.l.b16 %v36
    %v73 = vunpack.c.l.b16 %v37
    %v74 = vunpack.c.l.b16 %v38
    %v75 = vunpack.c.l.b16 %v39
    %v76 = vpack.c.b16 %v69, %v68
    %v77 = vpack.c.b16 %v71, %v70
    %v78 = vpack.c.b16 %v73, %v72
    %v79 = vpack.c.b16 %v75, %v74
    %v88 = vunpack.c.l.b16 %v40
    %v89 = vunpack.c.h.b16 %v40
    %v90 = vunpack.c.l.b16 %v41
    %v91 = vunpack.c.h.b16 %v41
    %v92 = vunpack.c.l.b16 %v42
    %v93 = vunpack.c.h.b16 %v42
    %v94 = vunpack.c.l.b16 %v43
    %v95 = vunpack.c.h.b16 %v43
    %v96 = vunpack.c.l.b16 %v44
    %v97 = vunpack.c.h.b16 %v44
    %v98 = vunpack.c.l.b16 %v45
    %v99 = vunpack.c.h.b16 %v45
    %v100 = vunpack.c.l.b16 %v46
    %v101 = vunpack.c.h.b16 %v46
    %v102 = vunpack.c.l.b16 %v47
    %v103 = vunpack.c.h.b16 %v47
    %v104 = vpack.c.b16 %v90, %v88
    %v105 = vpack.c.b16 %v91, %v89
    %v106 = vpack.c.b16 %v94, %v92
    %v107 = vpack.c.b16 %v95, %v93
    %v108 = vpack.c.b16 %v98, %v96
    %v109 = vpack.c.b16 %v99, %v97
    %v110 = vpack.c.b16 %v102, %v100
    %v111 = vpack.c.b16 %v103, %v101
    %vm120 = vcmask 523264
    %v122 = vsel %vm120, %v76, 0
    %v125 = vsel %vm120, %v77, 0
    %v128 = vsel %vm120, %v78, 0
    %v131 = vsel %vm120, %v79, 0
    %133 = vmatprep.subr.bf16.mxu0 0
    %134 = vmatpush1.bf16.msra.mxu0 0
    %135 = vmatprep.subr.bf16.mxu0 0
    %136 = vmatpush1.bf16.msra.mxu0 0
    %137 = vmatprep.subr.bf16.mxu0 0
    %138 = vmatpush1.bf16.msra.mxu0 0
    %139 = vmatprep.subr.bf16.mxu0 0
    %140 = vmatpush1.bf16.msra.mxu0 0
    %141 = vmatprep.subr.bf16.mxu0 %v111
    %142 = vmatpush1.bf16.msra.mxu0 %v110
    %143 = vmatprep.subr.bf16.mxu0 %v109
    %144 = vmatpush1.bf16.msra.mxu0 %v108
    %145 = vmatprep.subr.bf16.mxu0 %v107
    %146 = vmatpush1.bf16.msra.mxu0 %v106
    %147 = vmatprep.subr.bf16.mxu0 %v105
    %148 = vmatpush1.bf16.msra.mxu0 %v104
    %149 = vmatprep.subr.bf16.mxu0 0
    %150 = vmatpush2.bf16.msra.mxu0 0
    %151 = vmatprep.subr.bf16.mxu0 0
    %152 = vmatpush2.bf16.msra.mxu0 0
    %153 = vmatprep.subr.bf16.mxu0 0
    %154 = vmatpush2.bf16.msra.mxu0 0
    %155 = vmatprep.subr.bf16.mxu0 0
    %156 = vmatpush2.bf16.msra.mxu0 0
    %157 = vmatprep.subr.bf16.mxu0 0
    %158 = vmatpush2.bf16.msra.mxu0 0
    %159 = vmatprep.subr.bf16.mxu0 0
    %160 = vmatpush2.bf16.msra.mxu0 0
    %161 = vmatprep.subr.bf16.mxu0 0
    %162 = vmatpush2.bf16.msra.mxu0 0
    %163 = vmatprep.subr.bf16.mxu0 0
    %164 = vmatpush2.bf16.msra.mxu0 0
    %165 = vmatprep.mubr.bf16.mxu0 0
    %166 = vmatmul.mubr.bf16.gmra.mxu0 %v122
    %v167 = vpop.f32.mrf.mxu0
    %v168 = vadd.f32 %v53, %v167
    %v169 = vpop.f32.mrf.mxu0
    %v170 = vadd.f32 %v57, %v169
    %v171 = vpop.f32.mrf.mxu0
    %v172 = vadd.f32 %v53, %v171
    %v173 = vpop.f32.mrf.mxu0
    %v174 = vadd.f32 %v57, %v173
    %175 = vmatprep.mubr.bf16.mxu0 0
    %176 = vmatmul.mubr.bf16.gmra.mxu0 %v125
    %v177 = vpop.f32.mrf.mxu0
    %v178 = vadd.f32 %v53, %v177
    %v179 = vpop.f32.mrf.mxu0
    %v180 = vadd.f32 %v57, %v179
    %v181 = vpop.f32.mrf.mxu0
    %v182 = vadd.f32 %v53, %v181
    %v183 = vpop.f32.mrf.mxu0
    %v184 = vadd.f32 %v57, %v183
    %185 = vmatprep.mubr.bf16.mxu0 0
    %186 = vmatmul.mubr.bf16.gmra.mxu0 %v128
    %v187 = vpop.f32.mrf.mxu0
    %v188 = vadd.f32 %v53, %v187
    %v189 = vpop.f32.mrf.mxu0
    %v190 = vadd.f32 %v57, %v189
    %v191 = vpop.f32.mrf.mxu0
    %v192 = vadd.f32 %v53, %v191
    %v193 = vpop.f32.mrf.mxu0
    %v194 = vadd.f32 %v57, %v193
    %195 = vmatprep.mubr.bf16.mxu0 0
    %196 = vmatmul.mubr.bf16.gmra.mxu0 %v131
    %v197 = vpop.f32.mrf.mxu0
    %v198 = vadd.f32 %v53, %v197
    %v199 = vpop.f32.mrf.mxu0
    %v200 = vadd.f32 %v57, %v199
    %v201 = vpop.f32.mrf.mxu0
    %v202 = vadd.f32 %v53, %v201
    %v203 = vpop.f32.mrf.mxu0
    %v204 = vadd.f32 %v57, %v203
    %205 = vdwg.mxu0
    %206 = vst [vmem:[#allocation2] sm:$0xff] %v168
    %207 = vst [vmem:[#allocation2 + $0x8] sm:$0xff] %v170
    %208 = vst [vmem:[#allocation2 + $0x10] sm:$0xff] %v172
    %209 = vst [vmem:[#allocation2 + $0x18] sm:$0xff] %v174
    %210 = vst [vmem:[#allocation2 + $0x20] sm:$0xff] %v178
    %211 = vst [vmem:[#allocation2 + $0x28] sm:$0xff] %v180
    %212 = vst [vmem:[#allocation2 + $0x30] sm:$0xff] %v182
    %213 = vst [vmem:[#allocation2 + $0x38] sm:$0xff] %v184
    %214 = vst [vmem:[#allocation2 + $0x40] sm:$0xff] %v188
    %215 = vst [vmem:[#allocation2 + $0x48] sm:$0xff] %v190
    %216 = vst [vmem:[#allocation2 + $0x50] sm:$0xff] %v192
    %217 = vst [vmem:[#allocation2 + $0x58] sm:$0xff] %v194
    %218 = vst [vmem:[#allocation2 + $0x60] sm:$0xff] %v198
    %219 = vst [vmem:[#allocation2 + $0x68] sm:$0xff] %v200
    %220 = vst [vmem:[#allocation2 + $0x70] sm:$0xff] %v202
    %221 = vst [vmem:[#allocation2 + $0x78] sm:$0xff] %v204
    %v222 = vld [vmem:[%s2] sm:$0xff]
    %v223 = vld [vmem:[%s2 + $0x8] sm:$0xff]
    %v224 = vld [vmem:[%s2 + $0x10] sm:$0xff]
    %v225 = vld [vmem:[%s2 + $0x18] sm:$0xff]
    %v226 = vld [vmem:[%s2 + $0x20] sm:$0xff]
    %v227 = vld [vmem:[%s2 + $0x28] sm:$0xff]
    %v228 = vld [vmem:[%s2 + $0x30] sm:$0xff]
    %v229 = vld [vmem:[%s2 + $0x38] sm:$0xff]
    %v230 = vld [vmem:[%s2 + $0x40] sm:$0xff]
    %v231 = vld [vmem:[%s2 + $0x48] sm:$0xff]
    %v232 = vld [vmem:[%s2 + $0x50] sm:$0xff]
    %v233 = vld [vmem:[%s2 + $0x58] sm:$0xff]
    %v234 = vld [vmem:[%s2 + $0x60] sm:$0xff]
    %v235 = vld [vmem:[%s2 + $0x68] sm:$0xff]
    %v236 = vld [vmem:[%s2 + $0x70] sm:$0xff]
    %v237 = vld [vmem:[%s2 + $0x78] sm:$0xff]
    %v239 = vsel %vm120, 0.0, 0
    %241 = vmatprep.subr.mxu0 0.0
    %242 = vmatpush1.msra.mxu0 0.0
    %243 = vmatprep.subr.mxu0 0.0
    %244 = vmatpush1.msra.mxu0 0.0
    %245 = vmatprep.subr.mxu0 0.0
    %246 = vmatpush1.msra.mxu0 0.0
    %247 = vmatprep.subr.mxu0 0.0
    %248 = vmatpush1.msra.mxu0 0.0
    %249 = vmatprep.subr.mxu0 0.0
    %250 = vmatpush1.msra.mxu0 0.0
    %251 = vmatprep.subr.mxu0 0.0
    %252 = vmatpush1.msra.mxu0 0.0
    %253 = vmatprep.subr.mxu0 0.0
    %254 = vmatpush1.msra.mxu0 0.0
    %255 = vmatprep.subr.mxu0 0.0
    %256 = vmatpush1.msra.mxu0 0.0
    %257 = vmatprep.subr.mxu0 %v237
    %258 = vmatpush1.msra.mxu0 %v236
    %259 = vmatprep.subr.mxu0 %v235
    %260 = vmatpush1.msra.mxu0 %v234
    %261 = vmatprep.subr.mxu0 %v233
    %262 = vmatpush1.msra.mxu0 %v232
    %263 = vmatprep.subr.mxu0 %v231
    %264 = vmatpush1.msra.mxu0 %v230
    %265 = vmatprep.subr.mxu0 %v229
    %266 = vmatpush1.msra.mxu0 %v228
    %267 = vmatprep.subr.mxu0 %v227
    %268 = vmatpush1.msra.mxu0 %v226
    %269 = vmatprep.subr.mxu0 %v225
    %270 = vmatpush1.msra.mxu0 %v224
    %271 = vmatprep.subr.mxu0 %v223
    %272 = vmatpush1.msra.mxu0 %v222
    %273 = vmatprep.subr.mxu0 0.0
    %274 = vmatpush2.msra.mxu0 0.0
    %275 = vmatprep.subr.mxu0 0.0
    %276 = vmatpush2.msra.mxu0 0.0
    %277 = vmatprep.subr.mxu0 0.0
    %278 = vmatpush2.msra.mxu0 0.0
    %279 = vmatprep.subr.mxu0 0.0
    %280 = vmatpush2.msra.mxu0 0.0
    %281 = vmatprep.subr.mxu0 0.0
    %282 = vmatpush2.msra.mxu0 0.0
    %283 = vmatprep.subr.mxu0 0.0
    %284 = vmatpush2.msra.mxu0 0.0
    %285 = vmatprep.subr.mxu0 0.0
    %286 = vmatpush2.msra.mxu0 0.0
    %287 = vmatprep.subr.mxu0 0.0
    %288 = vmatpush2.msra.mxu0 0.0
    %289 = vmatprep.subr.mxu0 0.0
    %290 = vmatpush2.msra.mxu0 0.0
    %291 = vmatprep.subr.mxu0 0.0
    %292 = vmatpush2.msra.mxu0 0.0
    %293 = vmatprep.subr.mxu0 0.0
    %294 = vmatpush2.msra.mxu0 0.0
    %295 = vmatprep.subr.mxu0 0.0
    %296 = vmatpush2.msra.mxu0 0.0
    %297 = vmatprep.subr.mxu0 0.0
    %298 = vmatpush2.msra.mxu0 0.0
    %299 = vmatprep.subr.mxu0 0.0
    %300 = vmatpush2.msra.mxu0 0.0
    %301 = vmatprep.subr.mxu0 0.0
    %302 = vmatpush2.msra.mxu0 0.0
    %303 = vmatprep.subr.mxu0 0.0
    %304 = vmatpush2.msra.mxu0 0.0
    %305 = vmatprep.mubr.f32.mxu0 0.0
    %306 = vmatmul.mubr.f32.gmra.mxu0 %v239
    %v307 = vpop.f32.mrf.mxu0
    %v308 = vadd.f32 0.0, %v307
    %v309 = vpop.f32.mrf.mxu0
    %v310 = vadd.f32 0.0, %v309
    %311 = vdwg.mxu0
    %s312 = smul.u32 0, 2
    %s313 = smul.addr %s312, 8
    %s314 = scalar_lea.vmem [#allocation2], %s313
    %v315 = vld [vmem:[%s314] sm:$0xff]
    %s316 = smul.u32 7, 2
    %s317 = smul.addr %s316, 8
    %s318 = scalar_lea.vmem [#allocation2], %s317
    %v319 = vld [vmem:[%s318 + $0x8] sm:$0xff]
    %v320 = vadd.f32 %v315, %v308
    %v321 = vadd.f32 %v319, %v310
    %v322 = vxor.u32 %v320, 2147483648
    %v323 = vmul.f32 %v322, 1.442695
    %v324 = vpow.pop %v323
    %v325 = vadd.f32 %v324, 1.0
    %v326 = vrcp.pop %v325
    %v327 = vmul.f32 1.0, %v326
    %v328 = vtanh.pop %v320
    %v329 = vmul.f32 %v327, 0.0
    %331 = vrot.lane.b32.xlu0 %v328, 32
    %v332 = vpop.permute.xlu0 %331
    %v334 = vmul.f32 %v327, %v332
    %336 = vrot.lane.b32.xlu0 %v334, 32
    %v337 = vpop.permute.xlu0 %336
    %v339 = vadd.f32 %v329, %v337
    %v340 = vtanh.pop %v339
    %342 = vrot.lane.b32.xlu0 %v340, 32
    %v343 = vpop.permute.xlu0 %342
    %v345 = vmul.f32 %v327, %v343
    %v346 = vxor.u32 %v321, 2147483648
    %v347 = vmul.f32 %v346, 1.442695
    %v348 = vpow.pop %v347
    %v349 = vadd.f32 %v348, 1.0
    %v350 = vrcp.pop %v349
    %v351 = vmul.f32 1.0, %v350
    %v352 = vtanh.pop %v321
    %v353 = vmul.f32 %v351, 0.0
    %355 = vrot.lane.b32.xlu0 %v352, 32
    %v356 = vpop.permute.xlu0 %355
    %v358 = vmul.f32 %v351, %v356
    %360 = vrot.lane.b32.xlu0 %v358, 32
    %v361 = vpop.permute.xlu0 %360
    %v363 = vadd.f32 %v353, %v361
    %v364 = vtanh.pop %v363
    %366 = vrot.lane.b32.xlu0 %v364, 32
    %v367 = vpop.permute.xlu0 %366
    %v369 = vmul.f32 %v351, %v367
    %371 = vrot.lane.b32.xlu0 %v345, 64
    %v372 = vpop.permute.xlu0 %371
    %vm374 = vcmask 261120
    %375 = vst.msk [vmem:[%s4] sm:$0xff] %vm374, %v372
    %377 = vrot.lane.b32.xlu0 %v369, 96
    %v378 = vpop.permute.xlu0 %377
    %s380 = scalar_lea.vmem %s4, 56
    %vm381 = vcmask 523520
    %382 = vst.msk [vmem:[%s380] sm:$0xff] %vm381, %v378
    %v383 = vsel %vm374, %v372, %v378
    %385 = vrot.lane.b32.xlu0 %v339, 96
    %v386 = vpop.permute.xlu0 %385
    %v388 = vsel %vm374, %v386, %v363
    %v390 = vsel %vm120, %v383, 0
    %392 = vmatprep.subr.mxu0 0.0
    %393 = vmatpush1.msra.mxu0 0.0
    %394 = vmatprep.subr.mxu0 0.0
    %395 = vmatpush1.msra.mxu0 0.0
    %396 = vmatprep.subr.mxu0 0.0
    %397 = vmatpush1.msra.mxu0 0.0
    %398 = vmatprep.subr.mxu0 0.0
    %399 = vmatpush1.msra.mxu0 0.0
    %400 = vmatprep.subr.mxu0 0.0
    %401 = vmatpush1.msra.mxu0 0.0
    %402 = vmatprep.subr.mxu0 0.0
    %403 = vmatpush1.msra.mxu0 0.0
    %404 = vmatprep.subr.mxu0 0.0
    %405 = vmatpush1.msra.mxu0 0.0
    %406 = vmatprep.subr.mxu0 0.0
    %407 = vmatpush1.msra.mxu0 0.0
    %408 = vmatprep.subr.mxu0 %v237
    %409 = vmatpush1.msra.mxu0 %v236
    %410 = vmatprep.subr.mxu0 %v235
    %411 = vmatpush1.msra.mxu0 %v234
    %412 = vmatprep.subr.mxu0 %v233
    %413 = vmatpush1.msra.mxu0 %v232
    %414 = vmatprep.subr.mxu0 %v231
    %415 = vmatpush1.msra.mxu0 %v230
    %416 = vmatprep.subr.mxu0 %v229
    %417 = vmatpush1.msra.mxu0 %v228
    %418 = vmatprep.subr.mxu0 %v227
    %419 = vmatpush1.msra.mxu0 %v226
    %420 = vmatprep.subr.mxu0 %v225
    %421 = vmatpush1.msra.mxu0 %v224
    %422 = vmatprep.subr.mxu0 %v223
    %423 = vmatpush1.msra.mxu0 %v222
    %424 = vmatprep.subr.mxu0 0.0
    %425 = vmatpush2.msra.mxu0 0.0
    %426 = vmatprep.subr.mxu0 0.0
    %427 = vmatpush2.msra.mxu0 0.0
    %428 = vmatprep.subr.mxu0 0.0
    %429 = vmatpush2.msra.mxu0 0.0
    %430 = vmatprep.subr.mxu0 0.0
    %431 = vmatpush2.msra.mxu0 0.0
    %432 = vmatprep.subr.mxu0 0.0
    %433 = vmatpush2.msra.mxu0 0.0
    %434 = vmatprep.subr.mxu0 0.0
    %435 = vmatpush2.msra.mxu0 0.0
    %436 = vmatprep.subr.mxu0 0.0
    %437 = vmatpush2.msra.mxu0 0.0
    %438 = vmatprep.subr.mxu0 0.0
    %439 = vmatpush2.msra.mxu0 0.0
    %440 = vmatprep.subr.mxu0 0.0
    %441 = vmatpush2.msra.mxu0 0.0
    %442 = vmatprep.subr.mxu0 0.0
    %443 = vmatpush2.msra.mxu0 0.0
    %444 = vmatprep.subr.mxu0 0.0
    %445 = vmatpush2.msra.mxu0 0.0
    %446 = vmatprep.subr.mxu0 0.0
    %447 = vmatpush2.msra.mxu0 0.0
    %448 = vmatprep.subr.mxu0 0.0
    %449 = vmatpush2.msra.mxu0 0.0
    %450 = vmatprep.subr.mxu0 0.0
    %451 = vmatpush2.msra.mxu0 0.0
    %452 = vmatprep.subr.mxu0 0.0
    %453 = vmatpush2.msra.mxu0 0.0
    %454 = vmatprep.subr.mxu0 0.0
    %455 = vmatpush2.msra.mxu0 0.0
    %456 = vmatprep.mubr.f32.mxu0 0.0
    %457 = vmatmul.mubr.f32.gmra.mxu0 %v390
    %v458 = vpop.f32.mrf.mxu0
    %v459 = vadd.f32 0.0, %v458
    %v460 = vpop.f32.mrf.mxu0
    %v461 = vadd.f32 0.0, %v460
    %462 = vdwg.mxu0
    %s463 = smul.u32 1, 2
    %s464 = smul.addr %s463, 8
    %s465 = scalar_lea.vmem [#allocation2], %s464
    %v466 = vld [vmem:[%s465] sm:$0xff]
    %s467 = smul.u32 6, 2
    %s468 = smul.addr %s467, 8
    %s469 = scalar_lea.vmem [#allocation2], %s468
    %v470 = vld [vmem:[%s469 + $0x8] sm:$0xff]
    %v471 = vadd.f32 %v466, %v459
    %v472 = vadd.f32 %v470, %v461
    %v473 = vxor.u32 %v471, 2147483648
    %v474 = vmul.f32 %v473, 1.442695
    %v475 = vpow.pop %v474
    %v476 = vadd.f32 %v475, 1.0
    %v477 = vrcp.pop %v476
    %v478 = vmul.f32 1.0, %v477
    %v479 = vtanh.pop %v471
    %481 = vrot.lane.b32.xlu0 %v388, 32
    %v482 = vpop.permute.xlu0 %481
    %v484 = vmul.f32 %v478, %v482
    %486 = vrot.lane.b32.xlu0 %v479, 32
    %v487 = vpop.permute.xlu0 %486
    %v489 = vmul.f32 %v478, %v487
    %491 = vrot.lane.b32.xlu0 %v489, 32
    %v492 = vpop.permute.xlu0 %491
    %v494 = vadd.f32 %v484, %v492
    %v495 = vtanh.pop %v494
    %497 = vrot.lane.b32.xlu0 %v495, 32
    %v498 = vpop.permute.xlu0 %497
    %v500 = vmul.f32 %v478, %v498
    %v501 = vxor.u32 %v472, 2147483648
    %v502 = vmul.f32 %v501, 1.442695
    %v503 = vpow.pop %v502
    %v504 = vadd.f32 %v503, 1.0
    %v505 = vrcp.pop %v504
    %v506 = vmul.f32 1.0, %v505
    %v507 = vtanh.pop %v472
    %v508 = vmul.f32 %v506, %v388
    %510 = vrot.lane.b32.xlu0 %v507, 32
    %v511 = vpop.permute.xlu0 %510
    %v513 = vmul.f32 %v506, %v511
    %515 = vrot.lane.b32.xlu0 %v513, 32
    %v516 = vpop.permute.xlu0 %515
    %v518 = vadd.f32 %v508, %v516
    %v519 = vtanh.pop %v518
    %521 = vrot.lane.b32.xlu0 %v519, 32
    %v522 = vpop.permute.xlu0 %521
    %v524 = vmul.f32 %v506, %v522
    %526 = vrot.lane.b32.xlu0 %v500, 64
    %v527 = vpop.permute.xlu0 %526
    %s529 = scalar_lea.vmem %s4, 8
    %530 = vst.msk [vmem:[%s529] sm:$0xff] %vm374, %v527
    %532 = vrot.lane.b32.xlu0 %v524, 96
    %v533 = vpop.permute.xlu0 %532
    %s535 = scalar_lea.vmem %s4, 48
    %536 = vst.msk [vmem:[%s535] sm:$0xff] %vm381, %v533
    %v537 = vsel %vm374, %v527, %v533
    %539 = vrot.lane.b32.xlu0 %v494, 96
    %v540 = vpop.permute.xlu0 %539
    %v542 = vsel %vm374, %v540, %v518
    %v544 = vsel %vm120, %v537, 0
    %546 = vmatprep.subr.mxu0 0.0
    %547 = vmatpush1.msra.mxu0 0.0
    %548 = vmatprep.subr.mxu0 0.0
    %549 = vmatpush1.msra.mxu0 0.0
    %550 = vmatprep.subr.mxu0 0.0
    %551 = vmatpush1.msra.mxu0 0.0
    %552 = vmatprep.subr.mxu0 0.0
    %553 = vmatpush1.msra.mxu0 0.0
    %554 = vmatprep.subr.mxu0 0.0
    %555 = vmatpush1.msra.mxu0 0.0
    %556 = vmatprep.subr.mxu0 0.0
    %557 = vmatpush1.msra.mxu0 0.0
    %558 = vmatprep.subr.mxu0 0.0
    %559 = vmatpush1.msra.mxu0 0.0
    %560 = vmatprep.subr.mxu0 0.0
    %561 = vmatpush1.msra.mxu0 0.0
    %562 = vmatprep.subr.mxu0 %v237
    %563 = vmatpush1.msra.mxu0 %v236
    %564 = vmatprep.subr.mxu0 %v235
    %565 = vmatpush1.msra.mxu0 %v234
    %566 = vmatprep.subr.mxu0 %v233
    %567 = vmatpush1.msra.mxu0 %v232
    %568 = vmatprep.subr.mxu0 %v231
    %569 = vmatpush1.msra.mxu0 %v230
    %570 = vmatprep.subr.mxu0 %v229
    %571 = vmatpush1.msra.mxu0 %v228
    %572 = vmatprep.subr.mxu0 %v227
    %573 = vmatpush1.msra.mxu0 %v226
    %574 = vmatprep.subr.mxu0 %v225
    %575 = vmatpush1.msra.mxu0 %v224
    %576 = vmatprep.subr.mxu0 %v223
    %577 = vmatpush1.msra.mxu0 %v222
    %578 = vmatprep.subr.mxu0 0.0
    %579 = vmatpush2.msra.mxu0 0.0
    %580 = vmatprep.subr.mxu0 0.0
    %581 = vmatpush2.msra.mxu0 0.0
    %582 = vmatprep.subr.mxu0 0.0
    %583 = vmatpush2.msra.mxu0 0.0
    %584 = vmatprep.subr.mxu0 0.0
    %585 = vmatpush2.msra.mxu0 0.0
    %586 = vmatprep.subr.mxu0 0.0
    %587 = vmatpush2.msra.mxu0 0.0
    %588 = vmatprep.subr.mxu0 0.0
    %589 = vmatpush2.msra.mxu0 0.0
    %590 = vmatprep.subr.mxu0 0.0
    %591 = vmatpush2.msra.mxu0 0.0
    %592 = vmatprep.subr.mxu0 0.0
    %593 = vmatpush2.msra.mxu0 0.0
    %594 = vmatprep.subr.mxu0 0.0
    %595 = vmatpush2.msra.mxu0 0.0
    %596 = vmatprep.subr.mxu0 0.0
    %597 = vmatpush2.msra.mxu0 0.0
    %598 = vmatprep.subr.mxu0 0.0
    %599 = vmatpush2.msra.mxu0 0.0
    %600 = vmatprep.subr.mxu0 0.0
    %601 = vmatpush2.msra.mxu0 0.0
    %602 = vmatprep.subr.mxu0 0.0
    %603 = vmatpush2.msra.mxu0 0.0
    %604 = vmatprep.subr.mxu0 0.0
    %605 = vmatpush2.msra.mxu0 0.0
    %606 = vmatprep.subr.mxu0 0.0
    %607 = vmatpush2.msra.mxu0 0.0
    %608 = vmatprep.subr.mxu0 0.0
    %609 = vmatpush2.msra.mxu0 0.0
    %610 = vmatprep.mubr.f32.mxu0 0.0
    %611 = vmatmul.mubr.f32.gmra.mxu0 %v544
    %v612 = vpop.f32.mrf.mxu0
    %v613 = vadd.f32 0.0, %v612
    %v614 = vpop.f32.mrf.mxu0
    %v615 = vadd.f32 0.0, %v614
    %616 = vdwg.mxu0
    %s617 = smul.u32 2, 2
    %s618 = smul.addr %s617, 8
    %s619 = scalar_lea.vmem [#allocation2], %s618
    %v620 = vld [vmem:[%s619] sm:$0xff]
    %s621 = smul.u32 5, 2
    %s622 = smul.addr %s621, 8
    %s623 = scalar_lea.vmem [#allocation2], %s622
    %v624 = vld [vmem:[%s623 + $0x8] sm:$0xff]
    %v625 = vadd.f32 %v620, %v613
    %v626 = vadd.f32 %v624, %v615
    %v627 = vxor.u32 %v625, 2147483648
    %v628 = vmul.f32 %v627, 1.442695
    %v629 = vpow.pop %v628
    %v630 = vadd.f32 %v629, 1.0
    %v631 = vrcp.pop %v630
    %v632 = vmul.f32 1.0, %v631
    %v633 = vtanh.pop %v625
    %635 = vrot.lane.b32.xlu0 %v542, 32
    %v636 = vpop.permute.xlu0 %635
    %v638 = vmul.f32 %v632, %v636
    %640 = vrot.lane.b32.xlu0 %v633, 32
    %v641 = vpop.permute.xlu0 %640
    %v643 = vmul.f32 %v632, %v641
    %645 = vrot.lane.b32.xlu0 %v643, 32
    %v646 = vpop.permute.xlu0 %645
    %v648 = vadd.f32 %v638, %v646
    %v649 = vtanh.pop %v648
    %651 = vrot.lane.b32.xlu0 %v649, 32
    %v652 = vpop.permute.xlu0 %651
    %v654 = vmul.f32 %v632, %v652
    %v655 = vxor.u32 %v626, 2147483648
    %v656 = vmul.f32 %v655, 1.442695
    %v657 = vpow.pop %v656
    %v658 = vadd.f32 %v657, 1.0
    %v659 = vrcp.pop %v658
    %v660 = vmul.f32 1.0, %v659
    %v661 = vtanh.pop %v626
    %v662 = vmul.f32 %v660, %v542
    %664 = vrot.lane.b32.xlu0 %v661, 32
    %v665 = vpop.permute.xlu0 %664
    %v667 = vmul.f32 %v660, %v665
    %669 = vrot.lane.b32.xlu0 %v667, 32
    %v670 = vpop.permute.xlu0 %669
    %v672 = vadd.f32 %v662, %v670
    %v673 = vtanh.pop %v672
    %675 = vrot.lane.b32.xlu0 %v673, 32
    %v676 = vpop.permute.xlu0 %675
    %v678 = vmul.f32 %v660, %v676
    %680 = vrot.lane.b32.xlu0 %v654, 64
    %v681 = vpop.permute.xlu0 %680
    %s683 = scalar_lea.vmem %s4, 16
    %684 = vst.msk [vmem:[%s683] sm:$0xff] %vm374, %v681
    %686 = vrot.lane.b32.xlu0 %v678, 96
    %v687 = vpop.permute.xlu0 %686
    %s689 = scalar_lea.vmem %s4, 40
    %690 = vst.msk [vmem:[%s689] sm:$0xff] %vm381, %v687
    %v691 = vsel %vm374, %v681, %v687
    %693 = vrot.lane.b32.xlu0 %v648, 96
    %v694 = vpop.permute.xlu0 %693
    %v696 = vsel %vm374, %v694, %v672
    %v698 = vsel %vm120, %v691, 0
    %700 = vmatprep.subr.mxu0 0.0
    %701 = vmatpush1.msra.mxu0 0.0
    %702 = vmatprep.subr.mxu0 0.0
    %703 = vmatpush1.msra.mxu0 0.0
    %704 = vmatprep.subr.mxu0 0.0
    %705 = vmatpush1.msra.mxu0 0.0
    %706 = vmatprep.subr.mxu0 0.0
    %707 = vmatpush1.msra.mxu0 0.0
    %708 = vmatprep.subr.mxu0 0.0
    %709 = vmatpush1.msra.mxu0 0.0
    %710 = vmatprep.subr.mxu0 0.0
    %711 = vmatpush1.msra.mxu0 0.0
    %712 = vmatprep.subr.mxu0 0.0
    %713 = vmatpush1.msra.mxu0 0.0
    %714 = vmatprep.subr.mxu0 0.0
    %715 = vmatpush1.msra.mxu0 0.0
    %716 = vmatprep.subr.mxu0 %v237
    %717 = vmatpush1.msra.mxu0 %v236
    %718 = vmatprep.subr.mxu0 %v235
    %719 = vmatpush1.msra.mxu0 %v234
    %720 = vmatprep.subr.mxu0 %v233
    %721 = vmatpush1.msra.mxu0 %v232
    %722 = vmatprep.subr.mxu0 %v231
    %723 = vmatpush1.msra.mxu0 %v230
    %724 = vmatprep.subr.mxu0 %v229
    %725 = vmatpush1.msra.mxu0 %v228
    %726 = vmatprep.subr.mxu0 %v227
    %727 = vmatpush1.msra.mxu0 %v226
    %728 = vmatprep.subr.mxu0 %v225
    %729 = vmatpush1.msra.mxu0 %v224
    %730 = vmatprep.subr.mxu0 %v223
    %731 = vmatpush1.msra.mxu0 %v222
    %732 = vmatprep.subr.mxu0 0.0
    %733 = vmatpush2.msra.mxu0 0.0
    %734 = vmatprep.subr.mxu0 0.0
    %735 = vmatpush2.msra.mxu0 0.0
    %736 = vmatprep.subr.mxu0 0.0
    %737 = vmatpush2.msra.mxu0 0.0
    %738 = vmatprep.subr.mxu0 0.0
    %739 = vmatpush2.msra.mxu0 0.0
    %740 = vmatprep.subr.mxu0 0.0
    %741 = vmatpush2.msra.mxu0 0.0
    %742 = vmatprep.subr.mxu0 0.0
    %743 = vmatpush2.msra.mxu0 0.0
    %744 = vmatprep.subr.mxu0 0.0
    %745 = vmatpush2.msra.mxu0 0.0
    %746 = vmatprep.subr.mxu0 0.0
    %747 = vmatpush2.msra.mxu0 0.0
    %748 = vmatprep.subr.mxu0 0.0
    %749 = vmatpush2.msra.mxu0 0.0
    %750 = vmatprep.subr.mxu0 0.0
    %751 = vmatpush2.msra.mxu0 0.0
    %752 = vmatprep.subr.mxu0 0.0
    %753 = vmatpush2.msra.mxu0 0.0
    %754 = vmatprep.subr.mxu0 0.0
    %755 = vmatpush2.msra.mxu0 0.0
    %756 = vmatprep.subr.mxu0 0.0
    %757 = vmatpush2.msra.mxu0 0.0
    %758 = vmatprep.subr.mxu0 0.0
    %759 = vmatpush2.msra.mxu0 0.0
    %760 = vmatprep.subr.mxu0 0.0
    %761 = vmatpush2.msra.mxu0 0.0
    %762 = vmatprep.subr.mxu0 0.0
    %763 = vmatpush2.msra.mxu0 0.0
    %764 = vmatprep.mubr.f32.mxu0 0.0
    %765 = vmatmul.mubr.f32.gmra.mxu0 %v698
    %v766 = vpop.f32.mrf.mxu0
    %v767 = vadd.f32 0.0, %v766
    %v768 = vpop.f32.mrf.mxu0
    %v769 = vadd.f32 0.0, %v768
    %770 = vdwg.mxu0
    %s771 = smul.u32 3, 2
    %s772 = smul.addr %s771, 8
    %s773 = scalar_lea.vmem [#allocation2], %s772
    %v774 = vld [vmem:[%s773] sm:$0xff]
    %s775 = smul.u32 4, 2
    %s776 = smul.addr %s775, 8
    %s777 = scalar_lea.vmem [#allocation2], %s776
    %v778 = vld [vmem:[%s777 + $0x8] sm:$0xff]
    %v779 = vadd.f32 %v774, %v767
    %v780 = vadd.f32 %v778, %v769
    %v781 = vxor.u32 %v779, 2147483648
    %v782 = vmul.f32 %v781, 1.442695
    %v783 = vpow.pop %v782
    %v784 = vadd.f32 %v783, 1.0
    %v785 = vrcp.pop %v784
    %v786 = vmul.f32 1.0, %v785
    %v787 = vtanh.pop %v779
    %789 = vrot.lane.b32.xlu0 %v696, 32
    %v790 = vpop.permute.xlu0 %789
    %v792 = vmul.f32 %v786, %v790
    %794 = vrot.lane.b32.xlu0 %v787, 32
    %v795 = vpop.permute.xlu0 %794
    %v797 = vmul.f32 %v786, %v795
    %799 = vrot.lane.b32.xlu0 %v797, 32
    %v800 = vpop.permute.xlu0 %799
    %v802 = vadd.f32 %v792, %v800
    %v803 = vtanh.pop %v802
    %805 = vrot.lane.b32.xlu0 %v803, 32
    %v806 = vpop.permute.xlu0 %805
    %v808 = vmul.f32 %v786, %v806
    %v809 = vxor.u32 %v780, 2147483648
    %v810 = vmul.f32 %v809, 1.442695
    %v811 = vpow.pop %v810
    %v812 = vadd.f32 %v811, 1.0
    %v813 = vrcp.pop %v812
    %v814 = vmul.f32 1.0, %v813
    %v815 = vtanh.pop %v780
    %v816 = vmul.f32 %v814, %v696
    %818 = vrot.lane.b32.xlu0 %v815, 32
    %v819 = vpop.permute.xlu0 %818
    %v821 = vmul.f32 %v814, %v819
    %823 = vrot.lane.b32.xlu0 %v821, 32
    %v824 = vpop.permute.xlu0 %823
    %v826 = vadd.f32 %v816, %v824
    %v827 = vtanh.pop %v826
    %829 = vrot.lane.b32.xlu0 %v827, 32
    %v830 = vpop.permute.xlu0 %829
    %v832 = vmul.f32 %v814, %v830
    %834 = vrot.lane.b32.xlu0 %v808, 64
    %v835 = vpop.permute.xlu0 %834
    %s837 = scalar_lea.vmem %s4, 24
    %838 = vst.msk [vmem:[%s837] sm:$0xff] %vm374, %v835
    %840 = vrot.lane.b32.xlu0 %v832, 96
    %v841 = vpop.permute.xlu0 %840
    %s843 = scalar_lea.vmem %s4, 32
    %844 = vst.msk [vmem:[%s843] sm:$0xff] %vm381, %v841
    %v845 = vsel %vm374, %v835, %v841
    %847 = vrot.lane.b32.xlu0 %v802, 96
    %v848 = vpop.permute.xlu0 %847
    %v850 = vsel %vm374, %v848, %v826
    %v852 = vsel %vm120, %v845, 0
    %854 = vmatprep.subr.mxu0 0.0
    %855 = vmatpush1.msra.mxu0 0.0
    %856 = vmatprep.subr.mxu0 0.0
    %857 = vmatpush1.msra.mxu0 0.0
    %858 = vmatprep.subr.mxu0 0.0
    %859 = vmatpush1.msra.mxu0 0.0
    %860 = vmatprep.subr.mxu0 0.0
    %861 = vmatpush1.msra.mxu0 0.0
    %862 = vmatprep.subr.mxu0 0.0
    %863 = vmatpush1.msra.mxu0 0.0
    %864 = vmatprep.subr.mxu0 0.0
    %865 = vmatpush1.msra.mxu0 0.0
    %866 = vmatprep.subr.mxu0 0.0
    %867 = vmatpush1.msra.mxu0 0.0
    %868 = vmatprep.subr.mxu0 0.0
    %869 = vmatpush1.msra.mxu0 0.0
    %870 = vmatprep.subr.mxu0 %v237
    %871 = vmatpush1.msra.mxu0 %v236
    %872 = vmatprep.subr.mxu0 %v235
    %873 = vmatpush1.msra.mxu0 %v234
    %874 = vmatprep.subr.mxu0 %v233
    %875 = vmatpush1.msra.mxu0 %v232
    %876 = vmatprep.subr.mxu0 %v231
    %877 = vmatpush1.msra.mxu0 %v230
    %878 = vmatprep.subr.mxu0 %v229
    %879 = vmatpush1.msra.mxu0 %v228
    %880 = vmatprep.subr.mxu0 %v227
    %881 = vmatpush1.msra.mxu0 %v226
    %882 = vmatprep.subr.mxu0 %v225
    %883 = vmatpush1.msra.mxu0 %v224
    %884 = vmatprep.subr.mxu0 %v223
    %885 = vmatpush1.msra.mxu0 %v222
    %886 = vmatprep.subr.mxu0 0.0
    %887 = vmatpush2.msra.mxu0 0.0
    %888 = vmatprep.subr.mxu0 0.0
    %889 = vmatpush2.msra.mxu0 0.0
    %890 = vmatprep.subr.mxu0 0.0
    %891 = vmatpush2.msra.mxu0 0.0
    %892 = vmatprep.subr.mxu0 0.0
    %893 = vmatpush2.msra.mxu0 0.0
    %894 = vmatprep.subr.mxu0 0.0
    %895 = vmatpush2.msra.mxu0 0.0
    %896 = vmatprep.subr.mxu0 0.0
    %897 = vmatpush2.msra.mxu0 0.0
    %898 = vmatprep.subr.mxu0 0.0
    %899 = vmatpush2.msra.mxu0 0.0
    %900 = vmatprep.subr.mxu0 0.0
    %901 = vmatpush2.msra.mxu0 0.0
    %902 = vmatprep.subr.mxu0 0.0
    %903 = vmatpush2.msra.mxu0 0.0
    %904 = vmatprep.subr.mxu0 0.0
    %905 = vmatpush2.msra.mxu0 0.0
    %906 = vmatprep.subr.mxu0 0.0
    %907 = vmatpush2.msra.mxu0 0.0
    %908 = vmatprep.subr.mxu0 0.0
    %909 = vmatpush2.msra.mxu0 0.0
    %910 = vmatprep.subr.mxu0 0.0
    %911 = vmatpush2.msra.mxu0 0.0
    %912 = vmatprep.subr.mxu0 0.0
    %913 = vmatpush2.msra.mxu0 0.0
    %914 = vmatprep.subr.mxu0 0.0
    %915 = vmatpush2.msra.mxu0 0.0
    %916 = vmatprep.subr.mxu0 0.0
    %917 = vmatpush2.msra.mxu0 0.0
    %918 = vmatprep.mubr.f32.mxu0 0.0
    %919 = vmatmul.mubr.f32.gmra.mxu0 %v852
    %v920 = vpop.f32.mrf.mxu0
    %v921 = vadd.f32 0.0, %v920
    %v922 = vpop.f32.mrf.mxu0
    %v923 = vadd.f32 0.0, %v922
    %924 = vdwg.mxu0
    %v925 = vld [vmem:[%s777] sm:$0xff]
    %v926 = vld [vmem:[%s773 + $0x8] sm:$0xff]
    %v927 = vadd.f32 %v925, %v921
    %v928 = vadd.f32 %v926, %v923
    %v929 = vxor.u32 %v927, 2147483648
    %v930 = vmul.f32 %v929, 1.442695
    %v931 = vpow.pop %v930
    %v932 = vadd.f32 %v931, 1.0
    %v933 = vrcp.pop %v932
    %v934 = vmul.f32 1.0, %v933
    %v935 = vtanh.pop %v927
    %937 = vrot.lane.b32.xlu0 %v850, 32
    %v938 = vpop.permute.xlu0 %937
    %v940 = vmul.f32 %v934, %v938
    %942 = vrot.lane.b32.xlu0 %v935, 32
    %v943 = vpop.permute.xlu0 %942
    %v945 = vmul.f32 %v934, %v943
    %947 = vrot.lane.b32.xlu0 %v945, 32
    %v948 = vpop.permute.xlu0 %947
    %v950 = vadd.f32 %v940, %v948
    %v951 = vtanh.pop %v950
    %953 = vrot.lane.b32.xlu0 %v951, 32
    %v954 = vpop.permute.xlu0 %953
    %v956 = vmul.f32 %v934, %v954
    %v957 = vxor.u32 %v928, 2147483648
    %v958 = vmul.f32 %v957, 1.442695
    %v959 = vpow.pop %v958
    %v960 = vadd.f32 %v959, 1.0
    %v961 = vrcp.pop %v960
    %v962 = vmul.f32 1.0, %v961
    %v963 = vtanh.pop %v928
    %v964 = vmul.f32 %v962, %v850
    %966 = vrot.lane.b32.xlu0 %v963, 32
    %v967 = vpop.permute.xlu0 %966
    %v969 = vmul.f32 %v962, %v967
    %971 = vrot.lane.b32.xlu0 %v969, 32
    %v972 = vpop.permute.xlu0 %971
    %v974 = vadd.f32 %v964, %v972
    %v975 = vtanh.pop %v974
    %977 = vrot.lane.b32.xlu0 %v975, 32
    %v978 = vpop.permute.xlu0 %977
    %v980 = vmul.f32 %v962, %v978
    %982 = vrot.lane.b32.xlu0 %v956, 64
    %v983 = vpop.permute.xlu0 %982
    %985 = vst.msk [vmem:[%s843] sm:$0xff] %vm374, %v983
    %987 = vrot.lane.b32.xlu0 %v980, 96
    %v988 = vpop.permute.xlu0 %987
    %990 = vst.msk [vmem:[%s837] sm:$0xff] %vm381, %v988
    %v991 = vsel %vm374, %v983, %v988
    %993 = vrot.lane.b32.xlu0 %v950, 96
    %v994 = vpop.permute.xlu0 %993
    %v996 = vsel %vm374, %v994, %v974
    %v998 = vsel %vm120, %v991, 0
    %1000 = vmatprep.subr.mxu0 0.0
    %1001 = vmatpush1.msra.mxu0 0.0
    %1002 = vmatprep.subr.mxu0 0.0
    %1003 = vmatpush1.msra.mxu0 0.0
    %1004 = vmatprep.subr.mxu0 0.0
    %1005 = vmatpush1.msra.mxu0 0.0
    %1006 = vmatprep.subr.mxu0 0.0
    %1007 = vmatpush1.msra.mxu0 0.0
    %1008 = vmatprep.subr.mxu0 0.0
    %1009 = vmatpush1.msra.mxu0 0.0
    %1010 = vmatprep.subr.mxu0 0.0
    %1011 = vmatpush1.msra.mxu0 0.0
    %1012 = vmatprep.subr.mxu0 0.0
    %1013 = vmatpush1.msra.mxu0 0.0
    %1014 = vmatprep.subr.mxu0 0.0
    %1015 = vmatpush1.msra.mxu0 0.0
    %1016 = vmatprep.subr.mxu0 %v237
    %1017 = vmatpush1.msra.mxu0 %v236
    %1018 = vmatprep.subr.mxu0 %v235
    %1019 = vmatpush1.msra.mxu0 %v234
    %1020 = vmatprep.subr.mxu0 %v233
    %1021 = vmatpush1.msra.mxu0 %v232
    %1022 = vmatprep.subr.mxu0 %v231
    %1023 = vmatpush1.msra.mxu0 %v230
    %1024 = vmatprep.subr.mxu0 %v229
    %1025 = vmatpush1.msra.mxu0 %v228
    %1026 = vmatprep.subr.mxu0 %v227
    %1027 = vmatpush1.msra.mxu0 %v226
    %1028 = vmatprep.subr.mxu0 %v225
    %1029 = vmatpush1.msra.mxu0 %v224
    %1030 = vmatprep.subr.mxu0 %v223
    %1031 = vmatpush1.msra.mxu0 %v222
    %1032 = vmatprep.subr.mxu0 0.0
    %1033 = vmatpush2.msra.mxu0 0.0
    %1034 = vmatprep.subr.mxu0 0.0
    %1035 = vmatpush2.msra.mxu0 0.0
    %1036 = vmatprep.subr.mxu0 0.0
    %1037 = vmatpush2.msra.mxu0 0.0
    %1038 = vmatprep.subr.mxu0 0.0
    %1039 = vmatpush2.msra.mxu0 0.0
    %1040 = vmatprep.subr.mxu0 0.0
    %1041 = vmatpush2.msra.mxu0 0.0
    %1042 = vmatprep.subr.mxu0 0.0
    %1043 = vmatpush2.msra.mxu0 0.0
    %1044 = vmatprep.subr.mxu0 0.0
    %1045 = vmatpush2.msra.mxu0 0.0
    %1046 = vmatprep.subr.mxu0 0.0
    %1047 = vmatpush2.msra.mxu0 0.0
    %1048 = vmatprep.subr.mxu0 0.0
    %1049 = vmatpush2.msra.mxu0 0.0
    %1050 = vmatprep.subr.mxu0 0.0
    %1051 = vmatpush2.msra.mxu0 0.0
    %1052 = vmatprep.subr.mxu0 0.0
    %1053 = vmatpush2.msra.mxu0 0.0
    %1054 = vmatprep.subr.mxu0 0.0
    %1055 = vmatpush2.msra.mxu0 0.0
    %1056 = vmatprep.subr.mxu0 0.0
    %1057 = vmatpush2.msra.mxu0 0.0
    %1058 = vmatprep.subr.mxu0 0.0
    %1059 = vmatpush2.msra.mxu0 0.0
    %1060 = vmatprep.subr.mxu0 0.0
    %1061 = vmatpush2.msra.mxu0 0.0
    %1062 = vmatprep.subr.mxu0 0.0
    %1063 = vmatpush2.msra.mxu0 0.0
    %1064 = vmatprep.mubr.f32.mxu0 0.0
    %1065 = vmatmul.mubr.f32.gmra.mxu0 %v998
    %v1066 = vpop.f32.mrf.mxu0
    %v1067 = vadd.f32 0.0, %v1066
    %v1068 = vpop.f32.mrf.mxu0
    %v1069 = vadd.f32 0.0, %v1068
    %1070 = vdwg.mxu0
    %v1071 = vld [vmem:[%s623] sm:$0xff]
    %v1072 = vld [vmem:[%s619 + $0x8] sm:$0xff]
    %v1073 = vadd.f32 %v1071, %v1067
    %v1074 = vadd.f32 %v1072, %v1069
    %v1075 = vxor.u32 %v1073, 2147483648
    %v1076 = vmul.f32 %v1075, 1.442695
    %v1077 = vpow.pop %v1076
    %v1078 = vadd.f32 %v1077, 1.0
    %v1079 = vrcp.pop %v1078
    %v1080 = vmul.f32 1.0, %v1079
    %v1081 = vtanh.pop %v1073
    %1083 = vrot.lane.b32.xlu0 %v996, 32
    %v1084 = vpop.permute.xlu0 %1083
    %v1086 = vmul.f32 %v1080, %v1084
    %1088 = vrot.lane.b32.xlu0 %v1081, 32
    %v1089 = vpop.permute.xlu0 %1088
    %v1091 = vmul.f32 %v1080, %v1089
    %1093 = vrot.lane.b32.xlu0 %v1091, 32
    %v1094 = vpop.permute.xlu0 %1093
    %v1096 = vadd.f32 %v1086, %v1094
    %v1097 = vtanh.pop %v1096
    %1099 = vrot.lane.b32.xlu0 %v1097, 32
    %v1100 = vpop.permute.xlu0 %1099
    %v1102 = vmul.f32 %v1080, %v1100
    %v1103 = vxor.u32 %v1074, 2147483648
    %v1104 = vmul.f32 %v1103, 1.442695
    %v1105 = vpow.pop %v1104
    %v1106 = vadd.f32 %v1105, 1.0
    %v1107 = vrcp.pop %v1106
    %v1108 = vmul.f32 1.0, %v1107
    %v1109 = vtanh.pop %v1074
    %v1110 = vmul.f32 %v1108, %v996
    %1112 = vrot.lane.b32.xlu0 %v1109, 32
    %v1113 = vpop.permute.xlu0 %1112
    %v1115 = vmul.f32 %v1108, %v1113
    %1117 = vrot.lane.b32.xlu0 %v1115, 32
    %v1118 = vpop.permute.xlu0 %1117
    %v1120 = vadd.f32 %v1110, %v1118
    %v1121 = vtanh.pop %v1120
    %1123 = vrot.lane.b32.xlu0 %v1121, 32
    %v1124 = vpop.permute.xlu0 %1123
    %v1126 = vmul.f32 %v1108, %v1124
    %1128 = vrot.lane.b32.xlu0 %v1102, 64
    %v1129 = vpop.permute.xlu0 %1128
    %1131 = vst.msk [vmem:[%s689] sm:$0xff] %vm374, %v1129
    %1133 = vrot.lane.b32.xlu0 %v1126, 96
    %v1134 = vpop.permute.xlu0 %1133
    %1136 = vst.msk [vmem:[%s683] sm:$0xff] %vm381, %v1134
    %v1137 = vsel %vm374, %v1129, %v1134
    %1139 = vrot.lane.b32.xlu0 %v1096, 96
    %v1140 = vpop.permute.xlu0 %1139
    %v1142 = vsel %vm374, %v1140, %v1120
    %v1144 = vsel %vm120, %v1137, 0
    %1146 = vmatprep.subr.mxu0 0.0
    %1147 = vmatpush1.msra.mxu0 0.0
    %1148 = vmatprep.subr.mxu0 0.0
    %1149 = vmatpush1.msra.mxu0 0.0
    %1150 = vmatprep.subr.mxu0 0.0
    %1151 = vmatpush1.msra.mxu0 0.0
    %1152 = vmatprep.subr.mxu0 0.0
    %1153 = vmatpush1.msra.mxu0 0.0
    %1154 = vmatprep.subr.mxu0 0.0
    %1155 = vmatpush1.msra.mxu0 0.0
    %1156 = vmatprep.subr.mxu0 0.0
    %1157 = vmatpush1.msra.mxu0 0.0
    %1158 = vmatprep.subr.mxu0 0.0
    %1159 = vmatpush1.msra.mxu0 0.0
    %1160 = vmatprep.subr.mxu0 0.0
    %1161 = vmatpush1.msra.mxu0 0.0
    %1162 = vmatprep.subr.mxu0 %v237
    %1163 = vmatpush1.msra.mxu0 %v236
    %1164 = vmatprep.subr.mxu0 %v235
    %1165 = vmatpush1.msra.mxu0 %v234
    %1166 = vmatprep.subr.mxu0 %v233
    %1167 = vmatpush1.msra.mxu0 %v232
    %1168 = vmatprep.subr.mxu0 %v231
    %1169 = vmatpush1.msra.mxu0 %v230
    %1170 = vmatprep.subr.mxu0 %v229
    %1171 = vmatpush1.msra.mxu0 %v228
    %1172 = vmatprep.subr.mxu0 %v227
    %1173 = vmatpush1.msra.mxu0 %v226
    %1174 = vmatprep.subr.mxu0 %v225
    %1175 = vmatpush1.msra.mxu0 %v224
    %1176 = vmatprep.subr.mxu0 %v223
    %1177 = vmatpush1.msra.mxu0 %v222
    %1178 = vmatprep.subr.mxu0 0.0
    %1179 = vmatpush2.msra.mxu0 0.0
    %1180 = vmatprep.subr.mxu0 0.0
    %1181 = vmatpush2.msra.mxu0 0.0
    %1182 = vmatprep.subr.mxu0 0.0
    %1183 = vmatpush2.msra.mxu0 0.0
    %1184 = vmatprep.subr.mxu0 0.0
    %1185 = vmatpush2.msra.mxu0 0.0
    %1186 = vmatprep.subr.mxu0 0.0
    %1187 = vmatpush2.msra.mxu0 0.0
    %1188 = vmatprep.subr.mxu0 0.0
    %1189 = vmatpush2.msra.mxu0 0.0
    %1190 = vmatprep.subr.mxu0 0.0
    %1191 = vmatpush2.msra.mxu0 0.0
    %1192 = vmatprep.subr.mxu0 0.0
    %1193 = vmatpush2.msra.mxu0 0.0
    %1194 = vmatprep.subr.mxu0 0.0
    %1195 = vmatpush2.msra.mxu0 0.0
    %1196 = vmatprep.subr.mxu0 0.0
    %1197 = vmatpush2.msra.mxu0 0.0
    %1198 = vmatprep.subr.mxu0 0.0
    %1199 = vmatpush2.msra.mxu0 0.0
    %1200 = vmatprep.subr.mxu0 0.0
    %1201 = vmatpush2.msra.mxu0 0.0
    %1202 = vmatprep.subr.mxu0 0.0
    %1203 = vmatpush2.msra.mxu0 0.0
    %1204 = vmatprep.subr.mxu0 0.0
    %1205 = vmatpush2.msra.mxu0 0.0
    %1206 = vmatprep.subr.mxu0 0.0
    %1207 = vmatpush2.msra.mxu0 0.0
    %1208 = vmatprep.subr.mxu0 0.0
    %1209 = vmatpush2.msra.mxu0 0.0
    %1210 = vmatprep.mubr.f32.mxu0 0.0
    %1211 = vmatmul.mubr.f32.gmra.mxu0 %v1144
    %v1212 = vpop.f32.mrf.mxu0
    %v1213 = vadd.f32 0.0, %v1212
    %v1214 = vpop.f32.mrf.mxu0
    %v1215 = vadd.f32 0.0, %v1214
    %1216 = vdwg.mxu0
    %v1217 = vld [vmem:[%s469] sm:$0xff]
    %v1218 = vld [vmem:[%s465 + $0x8] sm:$0xff]
    %v1219 = vadd.f32 %v1217, %v1213
    %v1220 = vadd.f32 %v1218, %v1215
    %v1221 = vxor.u32 %v1219, 2147483648
    %v1222 = vmul.f32 %v1221, 1.442695
    %v1223 = vpow.pop %v1222
    %v1224 = vadd.f32 %v1223, 1.0
    %v1225 = vrcp.pop %v1224
    %v1226 = vmul.f32 1.0, %v1225
    %v1227 = vtanh.pop %v1219
    %1229 = vrot.lane.b32.xlu0 %v1142, 32
    %v1230 = vpop.permute.xlu0 %1229
    %v1232 = vmul.f32 %v1226, %v1230
    %1234 = vrot.lane.b32.xlu0 %v1227, 32
    %v1235 = vpop.permute.xlu0 %1234
    %v1237 = vmul.f32 %v1226, %v1235
    %1239 = vrot.lane.b32.xlu0 %v1237, 32
    %v1240 = vpop.permute.xlu0 %1239
    %v1242 = vadd.f32 %v1232, %v1240
    %v1243 = vtanh.pop %v1242
    %1245 = vrot.lane.b32.xlu0 %v1243, 32
    %v1246 = vpop.permute.xlu0 %1245
    %v1248 = vmul.f32 %v1226, %v1246
    %v1249 = vxor.u32 %v1220, 2147483648
    %v1250 = vmul.f32 %v1249, 1.442695
    %v1251 = vpow.pop %v1250
    %v1252 = vadd.f32 %v1251, 1.0
    %v1253 = vrcp.pop %v1252
    %v1254 = vmul.f32 1.0, %v1253
    %v1255 = vtanh.pop %v1220
    %v1256 = vmul.f32 %v1254, %v1142
    %1258 = vrot.lane.b32.xlu0 %v1255, 32
    %v1259 = vpop.permute.xlu0 %1258
    %v1261 = vmul.f32 %v1254, %v1259
    %1263 = vrot.lane.b32.xlu0 %v1261, 32
    %v1264 = vpop.permute.xlu0 %1263
    %v1266 = vadd.f32 %v1256, %v1264
    %v1267 = vtanh.pop %v1266
    %1269 = vrot.lane.b32.xlu0 %v1267, 32
    %v1270 = vpop.permute.xlu0 %1269
    %v1272 = vmul.f32 %v1254, %v1270
    %1274 = vrot.lane.b32.xlu0 %v1248, 64
    %v1275 = vpop.permute.xlu0 %1274
    %1277 = vst.msk [vmem:[%s535] sm:$0xff] %vm374, %v1275
    %1279 = vrot.lane.b32.xlu0 %v1272, 96
    %v1280 = vpop.permute.xlu0 %1279
    %1282 = vst.msk [vmem:[%s529] sm:$0xff] %vm381, %v1280
    %v1283 = vsel %vm374, %v1275, %v1280
    %1285 = vrot.lane.b32.xlu0 %v1242, 96
    %v1286 = vpop.permute.xlu0 %1285
    %v1288 = vsel %vm374, %v1286, %v1266
    %v1290 = vsel %vm120, %v1283, 0
    %1292 = vmatprep.subr.mxu0 0.0
    %1293 = vmatpush1.msra.mxu0 0.0
    %1294 = vmatprep.subr.mxu0 0.0
    %1295 = vmatpush1.msra.mxu0 0.0
    %1296 = vmatprep.subr.mxu0 0.0
    %1297 = vmatpush1.msra.mxu0 0.0
    %1298 = vmatprep.subr.mxu0 0.0
    %1299 = vmatpush1.msra.mxu0 0.0
    %1300 = vmatprep.subr.mxu0 0.0
    %1301 = vmatpush1.msra.mxu0 0.0
    %1302 = vmatprep.subr.mxu0 0.0
    %1303 = vmatpush1.msra.mxu0 0.0
    %1304 = vmatprep.subr.mxu0 0.0
    %1305 = vmatpush1.msra.mxu0 0.0
    %1306 = vmatprep.subr.mxu0 0.0
    %1307 = vmatpush1.msra.mxu0 0.0
    %1308 = vmatprep.subr.mxu0 %v237
    %1309 = vmatpush1.msra.mxu0 %v236
    %1310 = vmatprep.subr.mxu0 %v235
    %1311 = vmatpush1.msra.mxu0 %v234
    %1312 = vmatprep.subr.mxu0 %v233
    %1313 = vmatpush1.msra.mxu0 %v232
    %1314 = vmatprep.subr.mxu0 %v231
    %1315 = vmatpush1.msra.mxu0 %v230
    %1316 = vmatprep.subr.mxu0 %v229
    %1317 = vmatpush1.msra.mxu0 %v228
    %1318 = vmatprep.subr.mxu0 %v227
    %1319 = vmatpush1.msra.mxu0 %v226
    %1320 = vmatprep.subr.mxu0 %v225
    %1321 = vmatpush1.msra.mxu0 %v224
    %1322 = vmatprep.subr.mxu0 %v223
    %1323 = vmatpush1.msra.mxu0 %v222
    %1324 = vmatprep.subr.mxu0 0.0
    %1325 = vmatpush2.msra.mxu0 0.0
    %1326 = vmatprep.subr.mxu0 0.0
    %1327 = vmatpush2.msra.mxu0 0.0
    %1328 = vmatprep.subr.mxu0 0.0
    %1329 = vmatpush2.msra.mxu0 0.0
    %1330 = vmatprep.subr.mxu0 0.0
    %1331 = vmatpush2.msra.mxu0 0.0
    %1332 = vmatprep.subr.mxu0 0.0
    %1333 = vmatpush2.msra.mxu0 0.0
    %1334 = vmatprep.subr.mxu0 0.0
    %1335 = vmatpush2.msra.mxu0 0.0
    %1336 = vmatprep.subr.mxu0 0.0
    %1337 = vmatpush2.msra.mxu0 0.0
    %1338 = vmatprep.subr.mxu0 0.0
    %1339 = vmatpush2.msra.mxu0 0.0
    %1340 = vmatprep.subr.mxu0 0.0
    %1341 = vmatpush2.msra.mxu0 0.0
    %1342 = vmatprep.subr.mxu0 0.0
    %1343 = vmatpush2.msra.mxu0 0.0
    %1344 = vmatprep.subr.mxu0 0.0
    %1345 = vmatpush2.msra.mxu0 0.0
    %1346 = vmatprep.subr.mxu0 0.0
    %1347 = vmatpush2.msra.mxu0 0.0
    %1348 = vmatprep.subr.mxu0 0.0
    %1349 = vmatpush2.msra.mxu0 0.0
    %1350 = vmatprep.subr.mxu0 0.0
    %1351 = vmatpush2.msra.mxu0 0.0
    %1352 = vmatprep.subr.mxu0 0.0
    %1353 = vmatpush2.msra.mxu0 0.0
    %1354 = vmatprep.subr.mxu0 0.0
    %1355 = vmatpush2.msra.mxu0 0.0
    %1356 = vmatprep.mubr.f32.mxu0 0.0
    %1357 = vmatmul.mubr.f32.gmra.mxu0 %v1290
    %v1358 = vpop.f32.mrf.mxu0
    %v1359 = vadd.f32 0.0, %v1358
    %v1360 = vpop.f32.mrf.mxu0
    %v1361 = vadd.f32 0.0, %v1360
    %1362 = vdwg.mxu0
    %v1363 = vld [vmem:[%s318] sm:$0xff]
    %v1364 = vld [vmem:[%s314 + $0x8] sm:$0xff]
    %v1365 = vadd.f32 %v1363, %v1359
    %v1366 = vadd.f32 %v1364, %v1361
    %v1367 = vxor.u32 %v1365, 2147483648
    %v1368 = vmul.f32 %v1367, 1.442695
    %v1369 = vpow.pop %v1368
    %v1370 = vadd.f32 %v1369, 1.0
    %v1371 = vrcp.pop %v1370
    %v1372 = vmul.f32 1.0, %v1371
    %v1373 = vtanh.pop %v1365
    %1375 = vrot.lane.b32.xlu0 %v1288, 32
    %v1376 = vpop.permute.xlu0 %1375
    %v1378 = vmul.f32 %v1372, %v1376
    %1380 = vrot.lane.b32.xlu0 %v1373, 32
    %v1381 = vpop.permute.xlu0 %1380
    %v1383 = vmul.f32 %v1372, %v1381
    %1385 = vrot.lane.b32.xlu0 %v1383, 32
    %v1386 = vpop.permute.xlu0 %1385
    %v1388 = vadd.f32 %v1378, %v1386
    %v1389 = vtanh.pop %v1388
    %1391 = vrot.lane.b32.xlu0 %v1389, 32
    %v1392 = vpop.permute.xlu0 %1391
    %v1394 = vmul.f32 %v1372, %v1392
    %v1395 = vxor.u32 %v1366, 2147483648
    %v1396 = vmul.f32 %v1395, 1.442695
    %v1397 = vpow.pop %v1396
    %v1398 = vadd.f32 %v1397, 1.0
    %v1399 = vrcp.pop %v1398
    %v1400 = vmul.f32 1.0, %v1399
    %v1401 = vtanh.pop %v1366
    %v1402 = vmul.f32 %v1400, %v1288
    %1404 = vrot.lane.b32.xlu0 %v1401, 32
    %v1405 = vpop.permute.xlu0 %1404
    %v1407 = vmul.f32 %v1400, %v1405
    %1409 = vrot.lane.b32.xlu0 %v1407, 32
    %v1410 = vpop.permute.xlu0 %1409
    %v1412 = vadd.f32 %v1402, %v1410
    %v1413 = vtanh.pop %v1412
    %1415 = vrot.lane.b32.xlu0 %v1413, 32
    %v1416 = vpop.permute.xlu0 %1415
    %v1418 = vmul.f32 %v1400, %v1416
    %1420 = vrot.lane.b32.xlu0 %v1394, 64
    %v1421 = vpop.permute.xlu0 %1420
    %1423 = vst.msk [vmem:[%s380] sm:$0xff] %vm374, %v1421
    %1425 = vrot.lane.b32.xlu0 %v1418, 96
    %v1426 = vpop.permute.xlu0 %1425
    %1428 = vst.msk [vmem:[%s4] sm:$0xff] %vm381, %v1426
    // Predicated region
    $region22: #{basic_rnn_forward.2} parent=1 // pred_check
      _
    $region23: #{basic_rnn_forward.2} parent=1 // pred_check_branch
      %1430 = sbr.rel (0) target = $region25
    $region24: #{basic_rnn_forward.2} parent=1 // pred_region
      _
    $region25: #{basic_rnn_forward.2} parent=1 // pred_fallthru
      _
    // Predicated region
    $region26: #{basic_rnn_forward.2} parent=1 // pred_check
      _
    $region27: #{basic_rnn_forward.2} parent=1 // pred_check_branch
      %1432 = sbr.rel (0) target = $region29
    $region28: #{basic_rnn_forward.2} parent=1 // pred_region
      _
    $region29: #{basic_rnn_forward.2} parent=1 // pred_fallthru
      _
    %1433 = vsyncpa [#allocation4], 1

</llo_original>
